<compile_context>
chip_gen: v7x
topology: tpu7x:2x2x1
jax: 0.10.0
libtpu: 0.0.40
codegen_flags: <defaults>
</compile_context>

<pallas_src>
import jax
import jax.numpy as jnp
from jax.experimental import pallas as pl
from jax.experimental.pallas import tpu as pltpu

# -----------------------------------------------------------------------------
# Model hyper-parameters.  c_dim must equal hidden_size for the PyTorch forward
# to be well formed (the sampled feature c is fed to DenseLayer(hidden, hidden)).
# -----------------------------------------------------------------------------
C_DIM = 32          # feature dim (== hidden_size)
HIDDEN = 32         # hidden size
N_BLOCKS = 5
SKIPS = (2,)        # skip connection after pts_linears[2]
COLOR = False       # output dim 1, squeezed at the end

PACK = 4                        # points packed per 128-lane row (4 * 32 = 128)
LANES = PACK * HIDDEN           # 128
TM_POINTS = 4096                # points per grid step (sweep 1024-4096)
TM_ROWS = TM_POINTS // PACK     # packed rows per grid step (1024)
OUT_W = PACK * (4 if COLOR else 1)   # packed output width (4)


# -----------------------------------------------------------------------------
# Pallas kernel: the fused MLP hot path.
#   c_ref : (TM_ROWS, 128)  bf16   4 points per row, 32 features each
#   w_ref : (6, 128, 128)   bf16   [w0, w1, w2, w3_c, w3_h, w4] block-diagonals
#   b_ref : (5, 1, 128)     f32    [b0..b4], each tiled x4 across the lanes
#   wo_ref: (128, OUT_W)    bf16   block-diagonal output weight
#   bo_ref: (1, OUT_W)      f32
#   out   : (TM_ROWS, OUT_W) f32
# -----------------------------------------------------------------------------
def _mlp_kernel(c_ref, w_ref, b_ref, wo_ref, bo_ref, out_ref):
    c = c_ref[...]                                     # bf16, kept for the skip

    def lin_relu(x, wk, bk):
        y = jnp.dot(x, w_ref[wk], preferred_element_type=jnp.float32)
        y = jnp.maximum(y + b_ref[bk], 0.0)            # f32 bias + ReLU
        return y.astype(jnp.bfloat16)                  # back to bf16 for the MXU

    h = lin_relu(c, 0, 0)          # pts_linears[0]
    h = lin_relu(h, 1, 1)          # pts_linears[1]
    h = lin_relu(h, 2, 2)          # pts_linears[2]

    # skip at i==2: cat([c, h], -1) @ W3  ==  c @ W3[:c_dim] + h @ W3[c_dim:]
    y = (jnp.dot(c, w_ref[3], preferred_element_type=jnp.float32)
         + jnp.dot(h, w_ref[4], preferred_element_type=jnp.float32)
         + b_ref[3])
    h = jnp.maximum(y, 0.0).astype(jnp.bfloat16)

    h = lin_relu(h, 5, 4)          # pts_linears[4]

    # output_linear (no activation), folded through the block-diag wo
    out_ref[...] = (jnp.dot(h, wo_ref[...], preferred_element_type=jnp.float32)
                    + bo_ref[...])


def mlp_no_xyz_pallas(c_packed, packed_params):
    """c_packed: (R, 128) bf16 with R % TM_ROWS == 0.  Returns (R, OUT_W) f32."""
    w_stack, b_stack, wo_bd, bo_t = packed_params
    r, lanes = c_packed.shape
    assert lanes == LANES and r % TM_ROWS == 0

    return pl.pallas_call(
        _mlp_kernel,
        out_shape=jax.ShapeDtypeStruct((r, OUT_W), jnp.float32),
        grid_spec=pltpu.PrefetchScalarGridSpec(
            num_scalar_prefetch=0,
            grid=(r // TM_ROWS,),
            in_specs=[
                pl.BlockSpec((TM_ROWS, LANES), lambda i: (i, 0)),   # c tile
                pl.BlockSpec(w_stack.shape, lambda i: (0, 0, 0)),   # resident
                pl.BlockSpec(b_stack.shape, lambda i: (0, 0, 0)),   # resident
                pl.BlockSpec(wo_bd.shape, lambda i: (0, 0)),        # resident
                pl.BlockSpec(bo_t.shape, lambda i: (0, 0)),         # resident
            ],
            out_specs=pl.BlockSpec((TM_ROWS, OUT_W), lambda i: (i, 0)),
        ),
        compiler_params=pltpu.CompilerParams(
            dimension_semantics=("parallel",)),
    )(c_packed, w_stack, b_stack, wo_bd, bo_t)


# -----------------------------------------------------------------------------
# JAX glue: normalize_3d_coordinate + F.grid_sample(mode='bilinear',
# padding_mode='border', align_corners=True) on a 3D feature grid, done
# channels-last so the gather emits (N, C) directly (no (C,N)->(N,C) pass).
# TODO(synk): move the 8-corner gather into the Pallas kernel (scalar-prefetch /
# pl.Element row gather) so c never round-trips HBM.
# -----------------------------------------------------------------------------
def normalize_3d_coordinate(p, bound):
    lo = bound[:, 0]
    hi = bound[:, 1]
    return (p - lo) / (hi - lo) * 2.0 - 1.0


def sample_grid_feature(p, grid_feature, bound, sample_mode="bilinear"):
    """p: (N, 3); grid_feature: (1, C, D, H, W)  ->  (N, C) bf16."""
    assert sample_mode == "bilinear"
    grid = jnp.transpose(grid_feature[0], (1, 2, 3, 0))   # (D, H, W, C)
    D, H, W, C = grid.shape
    p_nor = normalize_3d_coordinate(p, bound)              # (N, 3)

    # F.grid_sample convention: coord x -> W, y -> H, z -> D (NICE-SLAM's
    # normalize_3d_coordinate does not reorder axes); align_corners=True,
    # padding_mode='border' => clamp.
    x = jnp.clip((p_nor[:, 0] + 1.0) * 0.5 * (W - 1), 0.0, W - 1)
    y = jnp.clip((p_nor[:, 1] + 1.0) * 0.5 * (H - 1), 0.0, H - 1)
    z = jnp.clip((p_nor[:, 2] + 1.0) * 0.5 * (D - 1), 0.0, D - 1)

    x0 = jnp.floor(x).astype(jnp.int32); x1 = jnp.clip(x0 + 1, 0, W - 1)
    y0 = jnp.floor(y).astype(jnp.int32); y1 = jnp.clip(y0 + 1, 0, H - 1)
    z0 = jnp.floor(z).astype(jnp.int32); z1 = jnp.clip(z0 + 1, 0, D - 1)

    wx = (x - x0)[:, None]; wy = (y - y0)[:, None]; wz = (z - z0)[:, None]

    def g(zi, yi, xi):                                     # -> (N, C)
        return grid[zi, yi, xi]

    out = (g(z0, y0, x0) * ((1 - wz) * (1 - wy) * (1 - wx)) +
           g(z0, y0, x1) * ((1 - wz) * (1 - wy) * wx) +
           g(z0, y1, x0) * ((1 - wz) * wy * (1 - wx)) +
           g(z0, y1, x1) * ((1 - wz) * wy * wx) +
           g(z1, y0, x0) * (wz * (1 - wy) * (1 - wx)) +
           g(z1, y0, x1) * (wz * (1 - wy) * wx) +
           g(z1, y1, x0) * (wz * wy * (1 - wx)) +
           g(z1, y1, x1) * (wz * wy * wx))
    return out.astype(jnp.bfloat16)     # bf16 feed into the MXU (f32 accumulate)


# -----------------------------------------------------------------------------
# Parameters.  DenseLayer init: xavier_uniform(gain=calculate_gain(act)),
# zero bias.  Weights stored (in_dim, out_dim) for x @ W + b.
# (If importing from PyTorch nn.Linear, which stores (out,in), transpose first.)
# -----------------------------------------------------------------------------
def _xavier_uniform(key, in_dim, out_dim, gain):
    bound = gain * jnp.sqrt(6.0 / (in_dim + out_dim))
    return jax.random.uniform(key, (in_dim, out_dim), jnp.float32, -bound, bound)


def init_params(key):
    gain_relu = jnp.sqrt(2.0)
    in_dims = [HIDDEN] + [HIDDEN + C_DIM if i in SKIPS else HIDDEN
                          for i in range(N_BLOCKS - 1)]
    keys = jax.random.split(key, N_BLOCKS + 1)
    params = []
    for li in range(N_BLOCKS):
        w = _xavier_uniform(keys[li], in_dims[li], HIDDEN, gain_relu)
        b = jnp.zeros((HIDDEN,), jnp.float32)
        params.append((w, b))
    out_dim = 4 if COLOR else 1
    wo = _xavier_uniform(keys[-1], HIDDEN, out_dim, 1.0)
    bo = jnp.zeros((out_dim,), jnp.float32)
    params.append((wo, bo))
    return params


def pack_params(params):
    """Expand each 32x32 weight into a 128x128 block-diagonal (PACK replicas),
    split the skip layer W3 into its c/h halves, stack into kernel operands."""
    (w0, b0), (w1, b1), (w2, b2), (w3, b3), (w4, b4), (wo, bo) = params
    eye = jnp.eye(PACK, dtype=jnp.float32)
    bd = lambda w: jnp.kron(eye, w)                       # block-diag, PACK copies

    w_stack = jnp.stack([bd(w0), bd(w1), bd(w2),
                         bd(w3[:HIDDEN]), bd(w3[HIDDEN:]),
                         bd(w4)]).astype(jnp.bfloat16)    # (6, 128, 128) bf16
    b_stack = jnp.stack([jnp.tile(b, PACK)[None, :]
                         for b in (b0, b1, b2, b3, b4)])  # (5, 1, 128) f32
    wo_bd = bd(wo).astype(jnp.bfloat16)                   # (128, OUT_W) bf16
    bo_t = jnp.tile(bo, PACK)[None, :]                    # (1, OUT_W) f32
    return w_stack, b_stack, wo_bd, bo_t


# -----------------------------------------------------------------------------
# Full forward (MLP_no_xyz.forward equivalent, color=False -> (N,) output).
# -----------------------------------------------------------------------------
def mlp_no_xyz_forward(p, grid_feature, bound, packed_params):
    n = p.shape[0]
    n_pad = ((n + TM_POINTS - 1) // TM_POINTS) * TM_POINTS
    # Pad the *points* (12 B/pt) instead of the features (128 B/pt): the gather
    # then produces c directly at the padded size -> no extra full-c HBM pass.
    p_pad = jnp.pad(p, ((0, n_pad - n), (0, 0)))
    c = sample_grid_feature(p_pad, grid_feature, bound)   # (n_pad, 32) bf16
    c_packed = c.reshape(n_pad // PACK, LANES)            # free row-major reshape
    out = mlp_no_xyz_pallas(c_packed, packed_params)      # (n_pad/4, 4) f32
    return out.reshape(-1)[:n]                            # row-major == point order


# -----------------------------------------------------------------------------
if __name__ == "__main__":
    key = jax.random.PRNGKey(0)
    k_p, k_g, k_w = jax.random.split(key, 3)

    N = 256                                   # number of query points
    D = Hh = W = 8                            # feature-grid spatial size
    bound = jnp.array([[-1.0, 1.0], [-1.0, 1.0], [-1.0, 1.0]], jnp.float32)

    p = jax.random.uniform(k_p, (N, 3), jnp.float32, -1.0, 1.0)
    grid_feature = jax.random.normal(k_g, (1, C_DIM, D, Hh, W), jnp.float32)
    packed_params = pack_params(init_params(k_w))

    fwd = jax.jit(mlp_no_xyz_forward)
    out = fwd(p, grid_feature, bound, packed_params)
    jax.block_until_ready(out)
    assert out.shape == (N,)
    print("KERNEL_OK")
</pallas_src>

<mosaic_0001>
module attributes {stable_mosaic.version = 11 : i64} {
  func.func @_mlp_kernel(%arg0: i32, %arg1: memref<1024x128xbf16, #tpu.memory_space<vmem>>, %arg2: memref<6x128x128xbf16, #tpu.memory_space<vmem>>, %arg3: memref<5x1x128xf32, #tpu.memory_space<vmem>>, %arg4: memref<128x4xbf16, #tpu.memory_space<vmem>>, %arg5: memref<1x4xf32, #tpu.memory_space<vmem>>, %arg6: memref<1024x4xf32, #tpu.memory_space<vmem>>) attributes {dimension_semantics = [#tpu.dimension_semantics<parallel>], iteration_bounds = array<i64: 1>, scalar_prefetch = 0 : i64, scratch_operands = 0 : i64, tpu.core_type = #tpu.core_type<tc>, window_params = [{transform_indices = @transform_0, window_bounds = array<i64: 1024, 128>}, {pipeline_mode = #tpu.pipeline_mode<synchronous>, transform_indices = @transform_1, window_bounds = array<i64: 6, 128, 128>}, {pipeline_mode = #tpu.pipeline_mode<synchronous>, transform_indices = @transform_2, window_bounds = array<i64: 5, 1, 128>}, {pipeline_mode = #tpu.pipeline_mode<synchronous>, transform_indices = @transform_3, window_bounds = array<i64: 128, 4>}, {pipeline_mode = #tpu.pipeline_mode<synchronous>, transform_indices = @transform_4, window_bounds = array<i64: 1, 4>}, {transform_indices = @transform_5, window_bounds = array<i64: 1024, 4>}]} {
    %c0 = arith.constant 0 : index
    %c0_0 = arith.constant 0 : index
    %0 = vector.load %arg1[%c0, %c0_0] : memref<1024x128xbf16, #tpu.memory_space<vmem>>, vector<1024x128xbf16>
    %c0_1 = arith.constant 0 : index
    %c0_2 = arith.constant 0 : index
    %c0_3 = arith.constant 0 : index
    %1 = vector.load %arg2[%c0_1, %c0_2, %c0_3] : memref<6x128x128xbf16, #tpu.memory_space<vmem>>, vector<1x128x128xbf16>
    %2 = vector.shape_cast %1 : vector<1x128x128xbf16> to vector<128x128xbf16>
    %cst = arith.constant dense<0.000000e+00> : vector<1024x128xf32>
    %3 = tpu.matmul %0, %2, %cst {dimension_numbers = #tpu.dot_dimension_numbers<[1], [0], [0], [1], [0, 0, 1, 1], [], []>} : vector<1024x128xbf16>, vector<128x128xbf16>, vector<1024x128xf32> -> vector<1024x128xf32>
    %c0_4 = arith.constant 0 : index
    %c0_5 = arith.constant 0 : index
    %c0_6 = arith.constant 0 : index
    %4 = vector.load %arg3[%c0_4, %c0_5, %c0_6] : memref<5x1x128xf32, #tpu.memory_space<vmem>>, vector<1x1x128xf32>
    %5 = vector.shape_cast %4 : vector<1x1x128xf32> to vector<1x128xf32>
    %6 = vector.broadcast %5 : vector<1x128xf32> to vector<1024x128xf32>
    %7 = arith.addf %3, %6 : vector<1024x128xf32>
    %cst_7 = arith.constant 0.000000e+00 : f32
    %8 = vector.broadcast %cst_7 : f32 to vector<1024x128xf32>
    %9 = arith.maximumf %7, %8 : vector<1024x128xf32>
    %10 = arith.truncf %9 : vector<1024x128xf32> to vector<1024x128xbf16>
    %c1 = arith.constant 1 : index
    %c0_8 = arith.constant 0 : index
    %c0_9 = arith.constant 0 : index
    %11 = vector.load %arg2[%c1, %c0_8, %c0_9] : memref<6x128x128xbf16, #tpu.memory_space<vmem>>, vector<1x128x128xbf16>
    %12 = vector.shape_cast %11 : vector<1x128x128xbf16> to vector<128x128xbf16>
    %cst_10 = arith.constant dense<0.000000e+00> : vector<1024x128xf32>
    %13 = tpu.matmul %10, %12, %cst_10 {dimension_numbers = #tpu.dot_dimension_numbers<[1], [0], [0], [1], [0, 0, 1, 1], [], []>} : vector<1024x128xbf16>, vector<128x128xbf16>, vector<1024x128xf32> -> vector<1024x128xf32>
    %c1_11 = arith.constant 1 : index
    %c0_12 = arith.constant 0 : index
    %c0_13 = arith.constant 0 : index
    %14 = vector.load %arg3[%c1_11, %c0_12, %c0_13] : memref<5x1x128xf32, #tpu.memory_space<vmem>>, vector<1x1x128xf32>
    %15 = vector.shape_cast %14 : vector<1x1x128xf32> to vector<1x128xf32>
    %16 = vector.broadcast %15 : vector<1x128xf32> to vector<1024x128xf32>
    %17 = arith.addf %13, %16 : vector<1024x128xf32>
    %cst_14 = arith.constant 0.000000e+00 : f32
    %18 = vector.broadcast %cst_14 : f32 to vector<1024x128xf32>
    %19 = arith.maximumf %17, %18 : vector<1024x128xf32>
    %20 = arith.truncf %19 : vector<1024x128xf32> to vector<1024x128xbf16>
    %c2 = arith.constant 2 : index
    %c0_15 = arith.constant 0 : index
    %c0_16 = arith.constant 0 : index
    %21 = vector.load %arg2[%c2, %c0_15, %c0_16] : memref<6x128x128xbf16, #tpu.memory_space<vmem>>, vector<1x128x128xbf16>
    %22 = vector.shape_cast %21 : vector<1x128x128xbf16> to vector<128x128xbf16>
    %cst_17 = arith.constant dense<0.000000e+00> : vector<1024x128xf32>
    %23 = tpu.matmul %20, %22, %cst_17 {dimension_numbers = #tpu.dot_dimension_numbers<[1], [0], [0], [1], [0, 0, 1, 1], [], []>} : vector<1024x128xbf16>, vector<128x128xbf16>, vector<1024x128xf32> -> vector<1024x128xf32>
    %c2_18 = arith.constant 2 : index
    %c0_19 = arith.constant 0 : index
    %c0_20 = arith.constant 0 : index
    %24 = vector.load %arg3[%c2_18, %c0_19, %c0_20] : memref<5x1x128xf32, #tpu.memory_space<vmem>>, vector<1x1x128xf32>
    %25 = vector.shape_cast %24 : vector<1x1x128xf32> to vector<1x128xf32>
    %26 = vector.broadcast %25 : vector<1x128xf32> to vector<1024x128xf32>
    %27 = arith.addf %23, %26 : vector<1024x128xf32>
    %cst_21 = arith.constant 0.000000e+00 : f32
    %28 = vector.broadcast %cst_21 : f32 to vector<1024x128xf32>
    %29 = arith.maximumf %27, %28 : vector<1024x128xf32>
    %30 = arith.truncf %29 : vector<1024x128xf32> to vector<1024x128xbf16>
    %c3 = arith.constant 3 : index
    %c0_22 = arith.constant 0 : index
    %c0_23 = arith.constant 0 : index
    %31 = vector.load %arg2[%c3, %c0_22, %c0_23] : memref<6x128x128xbf16, #tpu.memory_space<vmem>>, vector<1x128x128xbf16>
    %32 = vector.shape_cast %31 : vector<1x128x128xbf16> to vector<128x128xbf16>
    %cst_24 = arith.constant dense<0.000000e+00> : vector<1024x128xf32>
    %33 = tpu.matmul %0, %32, %cst_24 {dimension_numbers = #tpu.dot_dimension_numbers<[1], [0], [0], [1], [0, 0, 1, 1], [], []>} : vector<1024x128xbf16>, vector<128x128xbf16>, vector<1024x128xf32> -> vector<1024x128xf32>
    %c4 = arith.constant 4 : index
    %c0_25 = arith.constant 0 : index
    %c0_26 = arith.constant 0 : index
    %34 = vector.load %arg2[%c4, %c0_25, %c0_26] : memref<6x128x128xbf16, #tpu.memory_space<vmem>>, vector<1x128x128xbf16>
    %35 = vector.shape_cast %34 : vector<1x128x128xbf16> to vector<128x128xbf16>
    %cst_27 = arith.constant dense<0.000000e+00> : vector<1024x128xf32>
    %36 = tpu.matmul %30, %35, %cst_27 {dimension_numbers = #tpu.dot_dimension_numbers<[1], [0], [0], [1], [0, 0, 1, 1], [], []>} : vector<1024x128xbf16>, vector<128x128xbf16>, vector<1024x128xf32> -> vector<1024x128xf32>
    %37 = arith.addf %33, %36 : vector<1024x128xf32>
    %c3_28 = arith.constant 3 : index
    %c0_29 = arith.constant 0 : index
    %c0_30 = arith.constant 0 : index
    %38 = vector.load %arg3[%c3_28, %c0_29, %c0_30] : memref<5x1x128xf32, #tpu.memory_space<vmem>>, vector<1x1x128xf32>
    %39 = vector.shape_cast %38 : vector<1x1x128xf32> to vector<1x128xf32>
    %40 = vector.broadcast %39 : vector<1x128xf32> to vector<1024x128xf32>
    %41 = arith.addf %37, %40 : vector<1024x128xf32>
    %cst_31 = arith.constant 0.000000e+00 : f32
    %42 = vector.broadcast %cst_31 : f32 to vector<1024x128xf32>
    %43 = arith.maximumf %41, %42 : vector<1024x128xf32>
    %44 = arith.truncf %43 : vector<1024x128xf32> to vector<1024x128xbf16>
    %c5 = arith.constant 5 : index
    %c0_32 = arith.constant 0 : index
    %c0_33 = arith.constant 0 : index
    %45 = vector.load %arg2[%c5, %c0_32, %c0_33] : memref<6x128x128xbf16, #tpu.memory_space<vmem>>, vector<1x128x128xbf16>
    %46 = vector.shape_cast %45 : vector<1x128x128xbf16> to vector<128x128xbf16>
    %cst_34 = arith.constant dense<0.000000e+00> : vector<1024x128xf32>
    %47 = tpu.matmul %44, %46, %cst_34 {dimension_numbers = #tpu.dot_dimension_numbers<[1], [0], [0], [1], [0, 0, 1, 1], [], []>} : vector<1024x128xbf16>, vector<128x128xbf16>, vector<1024x128xf32> -> vector<1024x128xf32>
    %c4_35 = arith.constant 4 : index
    %c0_36 = arith.constant 0 : index
    %c0_37 = arith.constant 0 : index
    %48 = vector.load %arg3[%c4_35, %c0_36, %c0_37] : memref<5x1x128xf32, #tpu.memory_space<vmem>>, vector<1x1x128xf32>
    %49 = vector.shape_cast %48 : vector<1x1x128xf32> to vector<1x128xf32>
    %50 = vector.broadcast %49 : vector<1x128xf32> to vector<1024x128xf32>
    %51 = arith.addf %47, %50 : vector<1024x128xf32>
    %cst_38 = arith.constant 0.000000e+00 : f32
    %52 = vector.broadcast %cst_38 : f32 to vector<1024x128xf32>
    %53 = arith.maximumf %51, %52 : vector<1024x128xf32>
    %54 = arith.truncf %53 : vector<1024x128xf32> to vector<1024x128xbf16>
    %c0_39 = arith.constant 0 : index
    %c0_40 = arith.constant 0 : index
    %55 = vector.load %arg4[%c0_39, %c0_40] : memref<128x4xbf16, #tpu.memory_space<vmem>>, vector<128x4xbf16>
    %cst_41 = arith.constant dense<0.000000e+00> : vector<1024x4xf32>
    %56 = tpu.matmul %54, %55, %cst_41 {dimension_numbers = #tpu.dot_dimension_numbers<[1], [0], [0], [1], [0, 0, 1, 1], [], []>} : vector<1024x128xbf16>, vector<128x4xbf16>, vector<1024x4xf32> -> vector<1024x4xf32>
    %c0_42 = arith.constant 0 : index
    %c0_43 = arith.constant 0 : index
    %57 = vector.load %arg5[%c0_42, %c0_43] : memref<1x4xf32, #tpu.memory_space<vmem>>, vector<1x4xf32>
    %58 = vector.broadcast %57 : vector<1x4xf32> to vector<1024x4xf32>
    %59 = arith.addf %56, %58 : vector<1024x4xf32>
    %c0_44 = arith.constant 0 : index
    %c0_45 = arith.constant 0 : index
    %60 = vector.load %arg6[%c0_44, %c0_45] : memref<1024x4xf32, #tpu.memory_space<vmem>>, vector<1024x4xf32>
    tpu.vector_store %arg6[%c0_44, %c0_45], %59 {strides = array<i32>} : memref<1024x4xf32, #tpu.memory_space<vmem>>, vector<1024x4xf32>,
    return
  }
  func.func @transform_0(%arg0: i32) -> (i32, i32) {
    %c0_i32 = arith.constant 0 : i32
    %c0_i32_0 = arith.constant 0 : i32
    return %arg0, %c0_i32 : i32, i32
  }
  func.func @transform_1(%arg0: i32) -> (i32, i32, i32) {
    %c0_i32 = arith.constant 0 : i32
    %c0_i32_0 = arith.constant 0 : i32
    %c0_i32_1 = arith.constant 0 : i32
    %c0_i32_2 = arith.constant 0 : i32
    return %c0_i32, %c0_i32_0, %c0_i32_1 : i32, i32, i32
  }
  func.func @transform_2(%arg0: i32) -> (i32, i32, i32) {
    %c0_i32 = arith.constant 0 : i32
    %c0_i32_0 = arith.constant 0 : i32
    %c0_i32_1 = arith.constant 0 : i32
    %c0_i32_2 = arith.constant 0 : i32
    return %c0_i32, %c0_i32_0, %c0_i32_1 : i32, i32, i32
  }
  func.func @transform_3(%arg0: i32) -> (i32, i32) {
    %c0_i32 = arith.constant 0 : i32
    %c0_i32_0 = arith.constant 0 : i32
    %c0_i32_1 = arith.constant 0 : i32
    return %c0_i32, %c0_i32_0 : i32, i32
  }
  func.func @transform_4(%arg0: i32) -> (i32, i32) {
    %c0_i32 = arith.constant 0 : i32
    %c0_i32_0 = arith.constant 0 : i32
    %c0_i32_1 = arith.constant 0 : i32
    return %c0_i32, %c0_i32_0 : i32, i32
  }
  func.func @transform_5(%arg0: i32) -> (i32, i32) {
    %c0_i32 = arith.constant 0 : i32
    %c0_i32_0 = arith.constant 0 : i32
    return %arg0, %c0_i32 : i32, i32
  }
}

</mosaic_0001>

<llo_original>
// kernel: mlp_no_xyz_forward.1
$region0: #{mlp_no_xyz_forward.1}
  #allocation0 [shape = 'u32[]', space=smem, size = 0x4, offset = 0x4, fixed_abs, tag = 'smem constant byte address 0x4 - core index']
  #allocation1 [shape = 'u32[144,128]{1,0:T(1,128)}', space=vmem, size = 0x12000, scoped, tag = 'internal scratch']
  %s0 = inlined_call_operand.vmem [shape: bf16[1024,128], index: 0, kind: input, shape index: {}]
  %s1 = inlined_call_operand.vmem [shape: bf16[6,128,128], index: 1, kind: input, shape index: {}]
  %s2 = inlined_call_operand.vmem [shape: f32[5,1,128], index: 2, kind: input, shape index: {}]
  %s3 = inlined_call_operand.vmem [shape: bf16[128,4], index: 3, kind: input, shape index: {}]
  %s4 = inlined_call_operand.vmem [shape: f32[1,4], index: 4, kind: input, shape index: {}]
  %s5 = inlined_call_operand.vmem [shape: f32[1024,4], index: 5, kind: output, shape index: {}]
  %s6 = sld [smem:[#allocation0]]
  $region30: #{mlp_no_xyz_forward.1} parent=0
    _
  %s8 = ssub.s32 1, %s6
  %s9 = scalar_select 0, %s8, %s6
  // Predicated region
  $region2: #{mlp_no_xyz_forward.1} parent=0 // pred_check
    _
  $region3: #{mlp_no_xyz_forward.1} parent=0 // pred_check_branch
    %11 = sbr.rel (0) target = $region5
  $region4: #{mlp_no_xyz_forward.1} parent=0 // pred_region
    _
  $region5: #{mlp_no_xyz_forward.1} parent=0 // pred_fallthru
    _
  // Predicated region
  $region6: #{mlp_no_xyz_forward.1} parent=0 // pred_check
    _
  $region7: #{mlp_no_xyz_forward.1} parent=0 // pred_check_branch
    %13 = sbr.rel (0) target = $region9
  $region8: #{mlp_no_xyz_forward.1} parent=0 // pred_region
    _
  $region9: #{mlp_no_xyz_forward.1} parent=0 // pred_fallthru
    _
  // Predicated region
  $region10: #{mlp_no_xyz_forward.1} parent=0 // pred_check
    _
  $region11: #{mlp_no_xyz_forward.1} parent=0 // pred_check_branch
    %15 = sbr.rel (0) target = $region13
  $region12: #{mlp_no_xyz_forward.1} parent=0 // pred_region
    _
  $region13: #{mlp_no_xyz_forward.1} parent=0 // pred_fallthru
    _
  // Predicated region
  $region14: #{mlp_no_xyz_forward.1} parent=0 // pred_check
    _
  $region15: #{mlp_no_xyz_forward.1} parent=0 // pred_check_branch
    %17 = sbr.rel (0) target = $region17
  $region16: #{mlp_no_xyz_forward.1} parent=0 // pred_region
    _
  $region17: #{mlp_no_xyz_forward.1} parent=0 // pred_fallthru
    _
  // Predicated region
  $region18: #{mlp_no_xyz_forward.1} parent=0 // pred_check
    _
  $region19: #{mlp_no_xyz_forward.1} parent=0 // pred_check_branch
    %19 = sbr.rel (0) target = $region21
  $region20: #{mlp_no_xyz_forward.1} parent=0 // pred_region
    _
  $region21: #{mlp_no_xyz_forward.1} parent=0 // pred_fallthru
    _
  %v21 = vld [vmem:[%s0] sm:$0xf]
  %v22 = vld [vmem:[%s0 + $0x4] sm:$0xf]
  %v23 = vld [vmem:[%s0 + $0x8] sm:$0xf]
  %v24 = vld [vmem:[%s0 + $0xc] sm:$0xf]
  %v25 = vld [vmem:[%s0 + $0x10] sm:$0xf]
  %v26 = vld [vmem:[%s0 + $0x14] sm:$0xf]
  %v27 = vld [vmem:[%s0 + $0x18] sm:$0xf]
  %v28 = vld [vmem:[%s0 + $0x1c] sm:$0xf]
  %v29 = vld [vmem:[%s0 + $0x20] sm:$0xf]
  %v30 = vld [vmem:[%s0 + $0x24] sm:$0xf]
  %v31 = vld [vmem:[%s0 + $0x28] sm:$0xf]
  %v32 = vld [vmem:[%s0 + $0x2c] sm:$0xf]
  %v33 = vld [vmem:[%s0 + $0x30] sm:$0xf]
  %v34 = vld [vmem:[%s0 + $0x34] sm:$0xf]
  %v35 = vld [vmem:[%s0 + $0x38] sm:$0xf]
  %v36 = vld [vmem:[%s0 + $0x3c] sm:$0xf]
  %v37 = vld [vmem:[%s0 + $0x40] sm:$0xf]
  %v38 = vld [vmem:[%s0 + $0x44] sm:$0xf]
  %v39 = vld [vmem:[%s0 + $0x48] sm:$0xf]
  %v40 = vld [vmem:[%s0 + $0x4c] sm:$0xf]
  %v41 = vld [vmem:[%s0 + $0x50] sm:$0xf]
  %v42 = vld [vmem:[%s0 + $0x54] sm:$0xf]
  %v43 = vld [vmem:[%s0 + $0x58] sm:$0xf]
  %v44 = vld [vmem:[%s0 + $0x5c] sm:$0xf]
  %v45 = vld [vmem:[%s0 + $0x60] sm:$0xf]
  %v46 = vld [vmem:[%s0 + $0x64] sm:$0xf]
  %v47 = vld [vmem:[%s0 + $0x68] sm:$0xf]
  %v48 = vld [vmem:[%s0 + $0x6c] sm:$0xf]
  %v49 = vld [vmem:[%s0 + $0x70] sm:$0xf]
  %v50 = vld [vmem:[%s0 + $0x74] sm:$0xf]
  %v51 = vld [vmem:[%s0 + $0x78] sm:$0xf]
  %v52 = vld [vmem:[%s0 + $0x7c] sm:$0xf]
  %v53 = vld [vmem:[%s0 + $0x80] sm:$0xf]
  %v54 = vld [vmem:[%s0 + $0x84] sm:$0xf]
  %v55 = vld [vmem:[%s0 + $0x88] sm:$0xf]
  %v56 = vld [vmem:[%s0 + $0x8c] sm:$0xf]
  %v57 = vld [vmem:[%s0 + $0x90] sm:$0xf]
  %v58 = vld [vmem:[%s0 + $0x94] sm:$0xf]
  %v59 = vld [vmem:[%s0 + $0x98] sm:$0xf]
  %v60 = vld [vmem:[%s0 + $0x9c] sm:$0xf]
  %v61 = vld [vmem:[%s0 + $0xa0] sm:$0xf]
  %v62 = vld [vmem:[%s0 + $0xa4] sm:$0xf]
  %v63 = vld [vmem:[%s0 + $0xa8] sm:$0xf]
  %v64 = vld [vmem:[%s0 + $0xac] sm:$0xf]
  %v65 = vld [vmem:[%s0 + $0xb0] sm:$0xf]
  %v66 = vld [vmem:[%s0 + $0xb4] sm:$0xf]
  %v67 = vld [vmem:[%s0 + $0xb8] sm:$0xf]
  %v68 = vld [vmem:[%s0 + $0xbc] sm:$0xf]
  %v69 = vld [vmem:[%s0 + $0xc0] sm:$0xf]
  %v70 = vld [vmem:[%s0 + $0xc4] sm:$0xf]
  %v71 = vld [vmem:[%s0 + $0xc8] sm:$0xf]
  %v72 = vld [vmem:[%s0 + $0xcc] sm:$0xf]
  %v73 = vld [vmem:[%s0 + $0xd0] sm:$0xf]
  %v74 = vld [vmem:[%s0 + $0xd4] sm:$0xf]
  %v75 = vld [vmem:[%s0 + $0xd8] sm:$0xf]
  %v76 = vld [vmem:[%s0 + $0xdc] sm:$0xf]
  %v77 = vld [vmem:[%s0 + $0xe0] sm:$0xf]
  %v78 = vld [vmem:[%s0 + $0xe4] sm:$0xf]
  %v79 = vld [vmem:[%s0 + $0xe8] sm:$0xf]
  %v80 = vld [vmem:[%s0 + $0xec] sm:$0xf]
  %v81 = vld [vmem:[%s0 + $0xf0] sm:$0xf]
  %v82 = vld [vmem:[%s0 + $0xf4] sm:$0xf]
  %v83 = vld [vmem:[%s0 + $0xf8] sm:$0xf]
  %v84 = vld [vmem:[%s0 + $0xfc] sm:$0xf]
  %v85 = vld [vmem:[%s0 + $0x100] sm:$0xf]
  %v86 = vld [vmem:[%s0 + $0x104] sm:$0xf]
  %v87 = vld [vmem:[%s0 + $0x108] sm:$0xf]
  %v88 = vld [vmem:[%s0 + $0x10c] sm:$0xf]
  %v89 = vld [vmem:[%s0 + $0x110] sm:$0xf]
  %v90 = vld [vmem:[%s0 + $0x114] sm:$0xf]
  %v91 = vld [vmem:[%s0 + $0x118] sm:$0xf]
  %v92 = vld [vmem:[%s0 + $0x11c] sm:$0xf]
  %v93 = vld [vmem:[%s0 + $0x120] sm:$0xf]
  %v94 = vld [vmem:[%s0 + $0x124] sm:$0xf]
  %v95 = vld [vmem:[%s0 + $0x128] sm:$0xf]
  %v96 = vld [vmem:[%s0 + $0x12c] sm:$0xf]
  %v97 = vld [vmem:[%s0 + $0x130] sm:$0xf]
  %v98 = vld [vmem:[%s0 + $0x134] sm:$0xf]
  %v99 = vld [vmem:[%s0 + $0x138] sm:$0xf]
  %v100 = vld [vmem:[%s0 + $0x13c] sm:$0xf]
  %v101 = vld [vmem:[%s0 + $0x140] sm:$0xf]
  %v102 = vld [vmem:[%s0 + $0x144] sm:$0xf]
  %v103 = vld [vmem:[%s0 + $0x148] sm:$0xf]
  %v104 = vld [vmem:[%s0 + $0x14c] sm:$0xf]
  %v105 = vld [vmem:[%s0 + $0x150] sm:$0xf]
  %v106 = vld [vmem:[%s0 + $0x154] sm:$0xf]
  %v107 = vld [vmem:[%s0 + $0x158] sm:$0xf]
  %v108 = vld [vmem:[%s0 + $0x15c] sm:$0xf]
  %v109 = vld [vmem:[%s0 + $0x160] sm:$0xf]
  %v110 = vld [vmem:[%s0 + $0x164] sm:$0xf]
  %v111 = vld [vmem:[%s0 + $0x168] sm:$0xf]
  %v112 = vld [vmem:[%s0 + $0x16c] sm:$0xf]
  %v113 = vld [vmem:[%s0 + $0x170] sm:$0xf]
  %v114 = vld [vmem:[%s0 + $0x174] sm:$0xf]
  %v115 = vld [vmem:[%s0 + $0x178] sm:$0xf]
  %v116 = vld [vmem:[%s0 + $0x17c] sm:$0xf]
  %v117 = vld [vmem:[%s0 + $0x180] sm:$0xf]
  %v118 = vld [vmem:[%s0 + $0x184] sm:$0xf]
  %v119 = vld [vmem:[%s0 + $0x188] sm:$0xf]
  %v120 = vld [vmem:[%s0 + $0x18c] sm:$0xf]
  %v121 = vld [vmem:[%s0 + $0x190] sm:$0xf]
  %v122 = vld [vmem:[%s0 + $0x194] sm:$0xf]
  %v123 = vld [vmem:[%s0 + $0x198] sm:$0xf]
  %v124 = vld [vmem:[%s0 + $0x19c] sm:$0xf]
  %v125 = vld [vmem:[%s0 + $0x1a0] sm:$0xf]
  %v126 = vld [vmem:[%s0 + $0x1a4] sm:$0xf]
  %v127 = vld [vmem:[%s0 + $0x1a8] sm:$0xf]
  %v128 = vld [vmem:[%s0 + $0x1ac] sm:$0xf]
  %v129 = vld [vmem:[%s0 + $0x1b0] sm:$0xf]
  %v130 = vld [vmem:[%s0 + $0x1b4] sm:$0xf]
  %v131 = vld [vmem:[%s0 + $0x1b8] sm:$0xf]
  %v132 = vld [vmem:[%s0 + $0x1bc] sm:$0xf]
  %v133 = vld [vmem:[%s0 + $0x1c0] sm:$0xf]
  %v134 = vld [vmem:[%s0 + $0x1c4] sm:$0xf]
  %v135 = vld [vmem:[%s0 + $0x1c8] sm:$0xf]
  %v136 = vld [vmem:[%s0 + $0x1cc] sm:$0xf]
  %v137 = vld [vmem:[%s0 + $0x1d0] sm:$0xf]
  %v138 = vld [vmem:[%s0 + $0x1d4] sm:$0xf]
  %v139 = vld [vmem:[%s0 + $0x1d8] sm:$0xf]
  %v140 = vld [vmem:[%s0 + $0x1dc] sm:$0xf]
  %v141 = vld [vmem:[%s0 + $0x1e0] sm:$0xf]
  %v142 = vld [vmem:[%s0 + $0x1e4] sm:$0xf]
  %v143 = vld [vmem:[%s0 + $0x1e8] sm:$0xf]
  %v144 = vld [vmem:[%s0 + $0x1ec] sm:$0xf]
  %v145 = vld [vmem:[%s0 + $0x1f0] sm:$0xf]
  %v146 = vld [vmem:[%s0 + $0x1f4] sm:$0xf]
  %v147 = vld [vmem:[%s0 + $0x1f8] sm:$0xf]
  %v148 = vld [vmem:[%s0 + $0x1fc] sm:$0xf]
  %v149 = vld [vmem:[%s1] sm:$0xf]
  %v150 = vld [vmem:[%s1 + $0x4] sm:$0xf]
  %v151 = vld [vmem:[%s1 + $0x8] sm:$0xf]
  %v152 = vld [vmem:[%s1 + $0xc] sm:$0xf]
  %v153 = vld [vmem:[%s1 + $0x10] sm:$0xf]
  %v154 = vld [vmem:[%s1 + $0x14] sm:$0xf]
  %v155 = vld [vmem:[%s1 + $0x18] sm:$0xf]
  %v156 = vld [vmem:[%s1 + $0x1c] sm:$0xf]
  %v157 = vld [vmem:[%s1 + $0x20] sm:$0xf]
  %v158 = vld [vmem:[%s1 + $0x24] sm:$0xf]
  %v159 = vld [vmem:[%s1 + $0x28] sm:$0xf]
  %v160 = vld [vmem:[%s1 + $0x2c] sm:$0xf]
  %v161 = vld [vmem:[%s1 + $0x30] sm:$0xf]
  %v162 = vld [vmem:[%s1 + $0x34] sm:$0xf]
  %v163 = vld [vmem:[%s1 + $0x38] sm:$0xf]
  %v164 = vld [vmem:[%s1 + $0x3c] sm:$0xf]
  %v165 = vld [vmem:[%s2] sm:$0x1]
  %v167 = vlaneseq
  %v168 = vshrl.u32 %v167, 7
  %v169 = vsub.s32 0, %v168
  %v170 = vrot.slane %v165, %v169
  %v300 = vunpack.c.l.b16 %v21
  %v301 = vunpack.c.l.b16 %v22
  %v302 = vunpack.c.l.b16 %v23
  %v303 = vunpack.c.l.b16 %v24
  %v304 = vunpack.c.l.b16 %v25
  %v305 = vunpack.c.l.b16 %v26
  %v306 = vunpack.c.l.b16 %v27
  %v307 = vunpack.c.l.b16 %v28
  %v308 = vunpack.c.l.b16 %v29
  %v309 = vunpack.c.l.b16 %v30
  %v310 = vunpack.c.l.b16 %v31
  %v311 = vunpack.c.l.b16 %v32
  %v312 = vunpack.c.l.b16 %v33
  %v313 = vunpack.c.l.b16 %v34
  %v314 = vunpack.c.l.b16 %v35
  %v315 = vunpack.c.l.b16 %v36
  %v316 = vunpack.c.l.b16 %v37
  %v317 = vunpack.c.l.b16 %v38
  %v318 = vunpack.c.l.b16 %v39
  %v319 = vunpack.c.l.b16 %v40
  %v320 = vunpack.c.l.b16 %v41
  %v321 = vunpack.c.l.b16 %v42
  %v322 = vunpack.c.l.b16 %v43
  %v323 = vunpack.c.l.b16 %v44
  %v324 = vunpack.c.l.b16 %v45
  %v325 = vunpack.c.l.b16 %v46
  %v326 = vunpack.c.l.b16 %v47
  %v327 = vunpack.c.l.b16 %v48
  %v328 = vunpack.c.l.b16 %v49
  %v329 = vunpack.c.l.b16 %v50
  %v330 = vunpack.c.l.b16 %v51
  %v331 = vunpack.c.l.b16 %v52
  %v332 = vunpack.c.l.b16 %v53
  %v333 = vunpack.c.l.b16 %v54
  %v334 = vunpack.c.l.b16 %v55
  %v335 = vunpack.c.l.b16 %v56
  %v336 = vunpack.c.l.b16 %v57
  %v337 = vunpack.c.l.b16 %v58
  %v338 = vunpack.c.l.b16 %v59
  %v339 = vunpack.c.l.b16 %v60
  %v340 = vunpack.c.l.b16 %v61
  %v341 = vunpack.c.l.b16 %v62
  %v342 = vunpack.c.l.b16 %v63
  %v343 = vunpack.c.l.b16 %v64
  %v344 = vunpack.c.l.b16 %v65
  %v345 = vunpack.c.l.b16 %v66
  %v346 = vunpack.c.l.b16 %v67
  %v347 = vunpack.c.l.b16 %v68
  %v348 = vunpack.c.l.b16 %v69
  %v349 = vunpack.c.l.b16 %v70
  %v350 = vunpack.c.l.b16 %v71
  %v351 = vunpack.c.l.b16 %v72
  %v352 = vunpack.c.l.b16 %v73
  %v353 = vunpack.c.l.b16 %v74
  %v354 = vunpack.c.l.b16 %v75
  %v355 = vunpack.c.l.b16 %v76
  %v356 = vunpack.c.l.b16 %v77
  %v357 = vunpack.c.l.b16 %v78
  %v358 = vunpack.c.l.b16 %v79
  %v359 = vunpack.c.l.b16 %v80
  %v360 = vunpack.c.l.b16 %v81
  %v361 = vunpack.c.l.b16 %v82
  %v362 = vunpack.c.l.b16 %v83
  %v363 = vunpack.c.l.b16 %v84
  %v364 = vunpack.c.l.b16 %v85
  %v365 = vunpack.c.l.b16 %v86
  %v366 = vunpack.c.l.b16 %v87
  %v367 = vunpack.c.l.b16 %v88
  %v368 = vunpack.c.l.b16 %v89
  %v369 = vunpack.c.l.b16 %v90
  %v370 = vunpack.c.l.b16 %v91
  %v371 = vunpack.c.l.b16 %v92
  %v372 = vunpack.c.l.b16 %v93
  %v373 = vunpack.c.l.b16 %v94
  %v374 = vunpack.c.l.b16 %v95
  %v375 = vunpack.c.l.b16 %v96
  %v376 = vunpack.c.l.b16 %v97
  %v377 = vunpack.c.l.b16 %v98
  %v378 = vunpack.c.l.b16 %v99
  %v379 = vunpack.c.l.b16 %v100
  %v380 = vunpack.c.l.b16 %v101
  %v381 = vunpack.c.l.b16 %v102
  %v382 = vunpack.c.l.b16 %v103
  %v383 = vunpack.c.l.b16 %v104
  %v384 = vunpack.c.l.b16 %v105
  %v385 = vunpack.c.l.b16 %v106
  %v386 = vunpack.c.l.b16 %v107
  %v387 = vunpack.c.l.b16 %v108
  %v388 = vunpack.c.l.b16 %v109
  %v389 = vunpack.c.l.b16 %v110
  %v390 = vunpack.c.l.b16 %v111
  %v391 = vunpack.c.l.b16 %v112
  %v392 = vunpack.c.l.b16 %v113
  %v393 = vunpack.c.l.b16 %v114
  %v394 = vunpack.c.l.b16 %v115
  %v395 = vunpack.c.l.b16 %v116
  %v396 = vunpack.c.l.b16 %v117
  %v397 = vunpack.c.l.b16 %v118
  %v398 = vunpack.c.l.b16 %v119
  %v399 = vunpack.c.l.b16 %v120
  %v400 = vunpack.c.l.b16 %v121
  %v401 = vunpack.c.l.b16 %v122
  %v402 = vunpack.c.l.b16 %v123
  %v403 = vunpack.c.l.b16 %v124
  %v404 = vunpack.c.l.b16 %v125
  %v405 = vunpack.c.l.b16 %v126
  %v406 = vunpack.c.l.b16 %v127
  %v407 = vunpack.c.l.b16 %v128
  %v408 = vunpack.c.l.b16 %v129
  %v409 = vunpack.c.l.b16 %v130
  %v410 = vunpack.c.l.b16 %v131
  %v411 = vunpack.c.l.b16 %v132
  %v412 = vunpack.c.l.b16 %v133
  %v413 = vunpack.c.l.b16 %v134
  %v414 = vunpack.c.l.b16 %v135
  %v415 = vunpack.c.l.b16 %v136
  %v416 = vunpack.c.l.b16 %v137
  %v417 = vunpack.c.l.b16 %v138
  %v418 = vunpack.c.l.b16 %v139
  %v419 = vunpack.c.l.b16 %v140
  %v420 = vunpack.c.l.b16 %v141
  %v421 = vunpack.c.l.b16 %v142
  %v422 = vunpack.c.l.b16 %v143
  %v423 = vunpack.c.l.b16 %v144
  %v424 = vunpack.c.l.b16 %v145
  %v425 = vunpack.c.l.b16 %v146
  %v426 = vunpack.c.l.b16 %v147
  %v427 = vunpack.c.l.b16 %v148
  %v428 = vpack.c.b16 %v301, %v300
  %v429 = vpack.c.b16 %v303, %v302
  %v430 = vpack.c.b16 %v305, %v304
  %v431 = vpack.c.b16 %v307, %v306
  %v432 = vpack.c.b16 %v309, %v308
  %v433 = vpack.c.b16 %v311, %v310
  %v434 = vpack.c.b16 %v313, %v312
  %v435 = vpack.c.b16 %v315, %v314
  %v436 = vpack.c.b16 %v317, %v316
  %v437 = vpack.c.b16 %v319, %v318
  %v438 = vpack.c.b16 %v321, %v320
  %v439 = vpack.c.b16 %v323, %v322
  %v440 = vpack.c.b16 %v325, %v324
  %v441 = vpack.c.b16 %v327, %v326
  %v442 = vpack.c.b16 %v329, %v328
  %v443 = vpack.c.b16 %v331, %v330
  %v444 = vpack.c.b16 %v333, %v332
  %v445 = vpack.c.b16 %v335, %v334
  %v446 = vpack.c.b16 %v337, %v336
  %v447 = vpack.c.b16 %v339, %v338
  %v448 = vpack.c.b16 %v341, %v340
  %v449 = vpack.c.b16 %v343, %v342
  %v450 = vpack.c.b16 %v345, %v344
  %v451 = vpack.c.b16 %v347, %v346
  %v452 = vpack.c.b16 %v349, %v348
  %v453 = vpack.c.b16 %v351, %v350
  %v454 = vpack.c.b16 %v353, %v352
  %v455 = vpack.c.b16 %v355, %v354
  %v456 = vpack.c.b16 %v357, %v356
  %v457 = vpack.c.b16 %v359, %v358
  %v458 = vpack.c.b16 %v361, %v360
  %v459 = vpack.c.b16 %v363, %v362
  %v460 = vpack.c.b16 %v365, %v364
  %v461 = vpack.c.b16 %v367, %v366
  %v462 = vpack.c.b16 %v369, %v368
  %v463 = vpack.c.b16 %v371, %v370
  %v464 = vpack.c.b16 %v373, %v372
  %v465 = vpack.c.b16 %v375, %v374
  %v466 = vpack.c.b16 %v377, %v376
  %v467 = vpack.c.b16 %v379, %v378
  %v468 = vpack.c.b16 %v381, %v380
  %v469 = vpack.c.b16 %v383, %v382
  %v470 = vpack.c.b16 %v385, %v384
  %v471 = vpack.c.b16 %v387, %v386
  %v472 = vpack.c.b16 %v389, %v388
  %v473 = vpack.c.b16 %v391, %v390
  %v474 = vpack.c.b16 %v393, %v392
  %v475 = vpack.c.b16 %v395, %v394
  %v476 = vpack.c.b16 %v397, %v396
  %v477 = vpack.c.b16 %v399, %v398
  %v478 = vpack.c.b16 %v401, %v400
  %v479 = vpack.c.b16 %v403, %v402
  %v480 = vpack.c.b16 %v405, %v404
  %v481 = vpack.c.b16 %v407, %v406
  %v482 = vpack.c.b16 %v409, %v408
  %v483 = vpack.c.b16 %v411, %v410
  %v484 = vpack.c.b16 %v413, %v412
  %v485 = vpack.c.b16 %v415, %v414
  %v486 = vpack.c.b16 %v417, %v416
  %v487 = vpack.c.b16 %v419, %v418
  %v488 = vpack.c.b16 %v421, %v420
  %v489 = vpack.c.b16 %v423, %v422
  %v490 = vpack.c.b16 %v425, %v424
  %v491 = vpack.c.b16 %v427, %v426
  %v572 = vunpack.c.l.b16 %v149
  %v573 = vunpack.c.l.b16 %v150
  %v574 = vunpack.c.l.b16 %v151
  %v575 = vunpack.c.l.b16 %v152
  %v576 = vunpack.c.l.b16 %v153
  %v577 = vunpack.c.l.b16 %v154
  %v578 = vunpack.c.l.b16 %v155
  %v579 = vunpack.c.l.b16 %v156
  %v580 = vunpack.c.l.b16 %v157
  %v581 = vunpack.c.l.b16 %v158
  %v582 = vunpack.c.l.b16 %v159
  %v583 = vunpack.c.l.b16 %v160
  %v584 = vunpack.c.l.b16 %v161
  %v585 = vunpack.c.l.b16 %v162
  %v586 = vunpack.c.l.b16 %v163
  %v587 = vunpack.c.l.b16 %v164
  %v588 = vpack.c.b16 %v573, %v572
  %v589 = vpack.c.b16 %v575, %v574
  %v590 = vpack.c.b16 %v577, %v576
  %v591 = vpack.c.b16 %v579, %v578
  %v592 = vpack.c.b16 %v581, %v580
  %v593 = vpack.c.b16 %v583, %v582
  %v594 = vpack.c.b16 %v585, %v584
  %v595 = vpack.c.b16 %v587, %v586
  %604 = vmatprep.subr.bf16.mxu0 0
  %605 = vmatpush1.bf16.msra.mxu0 %v588
  %606 = vmatprep.subr.bf16.mxu0 0
  %607 = vmatpush1.bf16.msra.mxu0 %v589
  %608 = vmatprep.subr.bf16.mxu0 0
  %609 = vmatpush1.bf16.msra.mxu0 %v590
  %610 = vmatprep.subr.bf16.mxu0 0
  %611 = vmatpush1.bf16.msra.mxu0 %v591
  %612 = vmatprep.subr.bf16.mxu0 0
  %613 = vmatpush1.bf16.msra.mxu0 %v592
  %614 = vmatprep.subr.bf16.mxu0 0
  %615 = vmatpush1.bf16.msra.mxu0 %v593
  %616 = vmatprep.subr.bf16.mxu0 0
  %617 = vmatpush1.bf16.msra.mxu0 %v594
  %618 = vmatprep.subr.bf16.mxu0 0
  %619 = vmatpush1.bf16.msra.mxu0 %v595
  %620 = vmatprep.subr.bf16.mxu0 0
  %621 = vmatpush1.bf16.msra.mxu0 0
  %622 = vmatprep.subr.bf16.mxu0 0
  %623 = vmatpush1.bf16.msra.mxu0 0
  %624 = vmatprep.subr.bf16.mxu0 0
  %625 = vmatpush1.bf16.msra.mxu0 0
  %626 = vmatprep.subr.bf16.mxu0 0
  %627 = vmatpush1.bf16.msra.mxu0 0
  %628 = vmatprep.subr.bf16.mxu0 0
  %629 = vmatpush1.bf16.msra.mxu0 0
  %630 = vmatprep.subr.bf16.mxu0 0
  %631 = vmatpush1.bf16.msra.mxu0 0
  %632 = vmatprep.subr.bf16.mxu0 0
  %633 = vmatpush1.bf16.msra.mxu0 0
  %634 = vmatprep.subr.bf16.mxu0 0
  %635 = vmatpush1.bf16.msra.mxu0 0
  %636 = vmatprep.mubr.bf16.mxu0 0
  %637 = vmatmul.mubr.bf16.gmra.mrb[0].mxu0 %v428
  %v638 = vpop.f32.mrb[0].mxu0
  %v639 = vadd.f32 %v170, %v638
  %v640 = vpop.f32.mrb[0].mxu0
  %v641 = vpop.f32.mrb[0].mxu0
  %v642 = vadd.f32 %v170, %v641
  %v643 = vpop.f32.mrb[0].mxu0
  %644 = vmatprep.mubr.bf16.mxu0 0
  %645 = vmatmul.mubr.bf16.gmra.mrb[0].mxu0 %v429
  %v646 = vpop.f32.mrb[0].mxu0
  %v647 = vadd.f32 %v170, %v646
  %v648 = vpop.f32.mrb[0].mxu0
  %v649 = vpop.f32.mrb[0].mxu0
  %v650 = vadd.f32 %v170, %v649
  %v651 = vpop.f32.mrb[0].mxu0
  %652 = vmatprep.mubr.bf16.mxu0 0
  %653 = vmatmul.mubr.bf16.gmra.mrb[0].mxu0 %v430
  %v654 = vpop.f32.mrb[0].mxu0
  %v655 = vadd.f32 %v170, %v654
  %v656 = vpop.f32.mrb[0].mxu0
  %v657 = vpop.f32.mrb[0].mxu0
  %v658 = vadd.f32 %v170, %v657
  %v659 = vpop.f32.mrb[0].mxu0
  %660 = vmatprep.mubr.bf16.mxu0 0
  %661 = vmatmul.mubr.bf16.gmra.mrb[0].mxu0 %v431
  %v662 = vpop.f32.mrb[0].mxu0
  %v663 = vadd.f32 %v170, %v662
  %v664 = vpop.f32.mrb[0].mxu0
  %v665 = vpop.f32.mrb[0].mxu0
  %v666 = vadd.f32 %v170, %v665
  %v667 = vpop.f32.mrb[0].mxu0
  %668 = vmatprep.mubr.bf16.mxu0 0
  %669 = vmatmul.mubr.bf16.gmra.mrb[0].mxu0 %v432
  %v670 = vpop.f32.mrb[0].mxu0
  %v671 = vadd.f32 %v170, %v670
  %v672 = vpop.f32.mrb[0].mxu0
  %v673 = vpop.f32.mrb[0].mxu0
  %v674 = vadd.f32 %v170, %v673
  %v675 = vpop.f32.mrb[0].mxu0
  %676 = vmatprep.mubr.bf16.mxu0 0
  %677 = vmatmul.mubr.bf16.gmra.mrb[0].mxu0 %v433
  %v678 = vpop.f32.mrb[0].mxu0
  %v679 = vadd.f32 %v170, %v678
  %v680 = vpop.f32.mrb[0].mxu0
  %v681 = vpop.f32.mrb[0].mxu0
  %v682 = vadd.f32 %v170, %v681
  %v683 = vpop.f32.mrb[0].mxu0
  %684 = vmatprep.mubr.bf16.mxu0 0
  %685 = vmatmul.mubr.bf16.gmra.mrb[0].mxu0 %v434
  %v686 = vpop.f32.mrb[0].mxu0
  %v687 = vadd.f32 %v170, %v686
  %v688 = vpop.f32.mrb[0].mxu0
  %v689 = vpop.f32.mrb[0].mxu0
  %v690 = vadd.f32 %v170, %v689
  %v691 = vpop.f32.mrb[0].mxu0
  %692 = vmatprep.mubr.bf16.mxu0 0
  %693 = vmatmul.mubr.bf16.gmra.mrb[0].mxu0 %v435
  %v694 = vpop.f32.mrb[0].mxu0
  %v695 = vadd.f32 %v170, %v694
  %v696 = vpop.f32.mrb[0].mxu0
  %v697 = vpop.f32.mrb[0].mxu0
  %v698 = vadd.f32 %v170, %v697
  %v699 = vpop.f32.mrb[0].mxu0
  %700 = vmatprep.mubr.bf16.mxu0 0
  %701 = vmatmul.mubr.bf16.gmra.mrb[0].mxu0 %v436
  %v702 = vpop.f32.mrb[0].mxu0
  %v703 = vadd.f32 %v170, %v702
  %v704 = vpop.f32.mrb[0].mxu0
  %v705 = vpop.f32.mrb[0].mxu0
  %v706 = vadd.f32 %v170, %v705
  %v707 = vpop.f32.mrb[0].mxu0
  %708 = vmatprep.mubr.bf16.mxu0 0
  %709 = vmatmul.mubr.bf16.gmra.mrb[0].mxu0 %v437
  %v710 = vpop.f32.mrb[0].mxu0
  %v711 = vadd.f32 %v170, %v710
  %v712 = vpop.f32.mrb[0].mxu0
  %v713 = vpop.f32.mrb[0].mxu0
  %v714 = vadd.f32 %v170, %v713
  %v715 = vpop.f32.mrb[0].mxu0
  %716 = vmatprep.mubr.bf16.mxu0 0
  %717 = vmatmul.mubr.bf16.gmra.mrb[0].mxu0 %v438
  %v718 = vpop.f32.mrb[0].mxu0
  %v719 = vadd.f32 %v170, %v718
  %v720 = vpop.f32.mrb[0].mxu0
  %v721 = vpop.f32.mrb[0].mxu0
  %v722 = vadd.f32 %v170, %v721
  %v723 = vpop.f32.mrb[0].mxu0
  %724 = vmatprep.mubr.bf16.mxu0 0
  %725 = vmatmul.mubr.bf16.gmra.mrb[0].mxu0 %v439
  %v726 = vpop.f32.mrb[0].mxu0
  %v727 = vadd.f32 %v170, %v726
  %v728 = vpop.f32.mrb[0].mxu0
  %v729 = vpop.f32.mrb[0].mxu0
  %v730 = vadd.f32 %v170, %v729
  %v731 = vpop.f32.mrb[0].mxu0
  %732 = vmatprep.mubr.bf16.mxu0 0
  %733 = vmatmul.mubr.bf16.gmra.mrb[0].mxu0 %v440
  %v734 = vpop.f32.mrb[0].mxu0
  %v735 = vadd.f32 %v170, %v734
  %v736 = vpop.f32.mrb[0].mxu0
  %v737 = vpop.f32.mrb[0].mxu0
  %v738 = vadd.f32 %v170, %v737
  %v739 = vpop.f32.mrb[0].mxu0
  %740 = vmatprep.mubr.bf16.mxu0 0
  %741 = vmatmul.mubr.bf16.gmra.mrb[0].mxu0 %v441
  %v742 = vpop.f32.mrb[0].mxu0
  %v743 = vadd.f32 %v170, %v742
  %v744 = vpop.f32.mrb[0].mxu0
  %v745 = vpop.f32.mrb[0].mxu0
  %v746 = vadd.f32 %v170, %v745
  %v747 = vpop.f32.mrb[0].mxu0
  %748 = vmatprep.mubr.bf16.mxu0 0
  %749 = vmatmul.mubr.bf16.gmra.mrb[0].mxu0 %v442
  %v750 = vpop.f32.mrb[0].mxu0
  %v751 = vadd.f32 %v170, %v750
  %v752 = vpop.f32.mrb[0].mxu0
  %v753 = vpop.f32.mrb[0].mxu0
  %v754 = vadd.f32 %v170, %v753
  %v755 = vpop.f32.mrb[0].mxu0
  %756 = vmatprep.mubr.bf16.mxu0 0
  %757 = vmatmul.mubr.bf16.gmra.mrb[0].mxu0 %v443
  %v758 = vpop.f32.mrb[0].mxu0
  %v759 = vadd.f32 %v170, %v758
  %v760 = vpop.f32.mrb[0].mxu0
  %v761 = vpop.f32.mrb[0].mxu0
  %v762 = vadd.f32 %v170, %v761
  %v763 = vpop.f32.mrb[0].mxu0
  %764 = vmatprep.mubr.bf16.mxu0 0
  %765 = vmatmul.mubr.bf16.gmra.mrb[0].mxu0 %v444
  %v766 = vpop.f32.mrb[0].mxu0
  %v767 = vadd.f32 %v170, %v766
  %v768 = vpop.f32.mrb[0].mxu0
  %v769 = vpop.f32.mrb[0].mxu0
  %v770 = vadd.f32 %v170, %v769
  %v771 = vpop.f32.mrb[0].mxu0
  %772 = vmatprep.mubr.bf16.mxu0 0
  %773 = vmatmul.mubr.bf16.gmra.mrb[0].mxu0 %v445
  %v774 = vpop.f32.mrb[0].mxu0
  %v775 = vadd.f32 %v170, %v774
  %v776 = vpop.f32.mrb[0].mxu0
  %v777 = vpop.f32.mrb[0].mxu0
  %v778 = vadd.f32 %v170, %v777
  %v779 = vpop.f32.mrb[0].mxu0
  %780 = vmatprep.mubr.bf16.mxu0 0
  %781 = vmatmul.mubr.bf16.gmra.mrb[0].mxu0 %v446
  %v782 = vpop.f32.mrb[0].mxu0
  %v783 = vadd.f32 %v170, %v782
  %v784 = vpop.f32.mrb[0].mxu0
  %v785 = vpop.f32.mrb[0].mxu0
  %v786 = vadd.f32 %v170, %v785
  %v787 = vpop.f32.mrb[0].mxu0
  %788 = vmatprep.mubr.bf16.mxu0 0
  %789 = vmatmul.mubr.bf16.gmra.mrb[0].mxu0 %v447
  %v790 = vpop.f32.mrb[0].mxu0
  %v791 = vadd.f32 %v170, %v790
  %v792 = vpop.f32.mrb[0].mxu0
  %v793 = vpop.f32.mrb[0].mxu0
  %v794 = vadd.f32 %v170, %v793
  %v795 = vpop.f32.mrb[0].mxu0
  %796 = vmatprep.mubr.bf16.mxu0 0
  %797 = vmatmul.mubr.bf16.gmra.mrb[0].mxu0 %v448
  %v798 = vpop.f32.mrb[0].mxu0
  %v799 = vadd.f32 %v170, %v798
  %v800 = vpop.f32.mrb[0].mxu0
  %v801 = vpop.f32.mrb[0].mxu0
  %v802 = vadd.f32 %v170, %v801
  %v803 = vpop.f32.mrb[0].mxu0
  %804 = vmatprep.mubr.bf16.mxu0 0
  %805 = vmatmul.mubr.bf16.gmra.mrb[0].mxu0 %v449
  %v806 = vpop.f32.mrb[0].mxu0
  %v807 = vadd.f32 %v170, %v806
  %v808 = vpop.f32.mrb[0].mxu0
  %v809 = vpop.f32.mrb[0].mxu0
  %v810 = vadd.f32 %v170, %v809
  %v811 = vpop.f32.mrb[0].mxu0
  %812 = vmatprep.mubr.bf16.mxu0 0
  %813 = vmatmul.mubr.bf16.gmra.mrb[0].mxu0 %v450
  %v814 = vpop.f32.mrb[0].mxu0
  %v815 = vadd.f32 %v170, %v814
  %v816 = vpop.f32.mrb[0].mxu0
  %v817 = vpop.f32.mrb[0].mxu0
  %v818 = vadd.f32 %v170, %v817
  %v819 = vpop.f32.mrb[0].mxu0
  %820 = vmatprep.mubr.bf16.mxu0 0
  %821 = vmatmul.mubr.bf16.gmra.mrb[0].mxu0 %v451
  %v822 = vpop.f32.mrb[0].mxu0
  %v823 = vadd.f32 %v170, %v822
  %v824 = vpop.f32.mrb[0].mxu0
  %v825 = vpop.f32.mrb[0].mxu0
  %v826 = vadd.f32 %v170, %v825
  %v827 = vpop.f32.mrb[0].mxu0
  %828 = vmatprep.mubr.bf16.mxu0 0
  %829 = vmatmul.mubr.bf16.gmra.mrb[0].mxu0 %v452
  %v830 = vpop.f32.mrb[0].mxu0
  %v831 = vadd.f32 %v170, %v830
  %v832 = vpop.f32.mrb[0].mxu0
  %v833 = vpop.f32.mrb[0].mxu0
  %v834 = vadd.f32 %v170, %v833
  %v835 = vpop.f32.mrb[0].mxu0
  %836 = vmatprep.mubr.bf16.mxu0 0
  %837 = vmatmul.mubr.bf16.gmra.mrb[0].mxu0 %v453
  %v838 = vpop.f32.mrb[0].mxu0
  %v839 = vadd.f32 %v170, %v838
  %v840 = vpop.f32.mrb[0].mxu0
  %v841 = vpop.f32.mrb[0].mxu0
  %v842 = vadd.f32 %v170, %v841
  %v843 = vpop.f32.mrb[0].mxu0
  %844 = vmatprep.mubr.bf16.mxu0 0
  %845 = vmatmul.mubr.bf16.gmra.mrb[0].mxu0 %v454
  %v846 = vpop.f32.mrb[0].mxu0
  %v847 = vadd.f32 %v170, %v846
  %v848 = vpop.f32.mrb[0].mxu0
  %v849 = vpop.f32.mrb[0].mxu0
  %v850 = vadd.f32 %v170, %v849
  %v851 = vpop.f32.mrb[0].mxu0
  %852 = vmatprep.mubr.bf16.mxu0 0
  %853 = vmatmul.mubr.bf16.gmra.mrb[0].mxu0 %v455
  %v854 = vpop.f32.mrb[0].mxu0
  %v855 = vadd.f32 %v170, %v854
  %v856 = vpop.f32.mrb[0].mxu0
  %v857 = vpop.f32.mrb[0].mxu0
  %v858 = vadd.f32 %v170, %v857
  %v859 = vpop.f32.mrb[0].mxu0
  %860 = vmatprep.mubr.bf16.mxu0 0
  %861 = vmatmul.mubr.bf16.gmra.mrb[0].mxu0 %v456
  %v862 = vpop.f32.mrb[0].mxu0
  %v863 = vadd.f32 %v170, %v862
  %v864 = vpop.f32.mrb[0].mxu0
  %v865 = vpop.f32.mrb[0].mxu0
  %v866 = vadd.f32 %v170, %v865
  %v867 = vpop.f32.mrb[0].mxu0
  %868 = vmatprep.mubr.bf16.mxu0 0
  %869 = vmatmul.mubr.bf16.gmra.mrb[0].mxu0 %v457
  %v870 = vpop.f32.mrb[0].mxu0
  %v871 = vadd.f32 %v170, %v870
  %v872 = vpop.f32.mrb[0].mxu0
  %v873 = vpop.f32.mrb[0].mxu0
  %v874 = vadd.f32 %v170, %v873
  %v875 = vpop.f32.mrb[0].mxu0
  %876 = vmatprep.mubr.bf16.mxu0 0
  %877 = vmatmul.mubr.bf16.gmra.mrb[0].mxu0 %v458
  %v878 = vpop.f32.mrb[0].mxu0
  %v879 = vadd.f32 %v170, %v878
  %v880 = vpop.f32.mrb[0].mxu0
  %v881 = vpop.f32.mrb[0].mxu0
  %v882 = vadd.f32 %v170, %v881
  %v883 = vpop.f32.mrb[0].mxu0
  %884 = vmatprep.mubr.bf16.mxu0 0
  %885 = vmatmul.mubr.bf16.gmra.mrb[0].mxu0 %v459
  %v886 = vpop.f32.mrb[0].mxu0
  %v887 = vadd.f32 %v170, %v886
  %v888 = vpop.f32.mrb[0].mxu0
  %v889 = vpop.f32.mrb[0].mxu0
  %v890 = vadd.f32 %v170, %v889
  %v891 = vpop.f32.mrb[0].mxu0
  %892 = vmatprep.mubr.bf16.mxu0 0
  %893 = vmatmul.mubr.bf16.gmra.mrb[0].mxu0 %v460
  %v894 = vpop.f32.mrb[0].mxu0
  %v895 = vadd.f32 %v170, %v894
  %v896 = vpop.f32.mrb[0].mxu0
  %v897 = vpop.f32.mrb[0].mxu0
  %v898 = vadd.f32 %v170, %v897
  %v899 = vpop.f32.mrb[0].mxu0
  %900 = vmatprep.mubr.bf16.mxu0 0
  %901 = vmatmul.mubr.bf16.gmra.mrb[0].mxu0 %v461
  %v902 = vpop.f32.mrb[0].mxu0
  %v903 = vadd.f32 %v170, %v902
  %v904 = vpop.f32.mrb[0].mxu0
  %v905 = vpop.f32.mrb[0].mxu0
  %v906 = vadd.f32 %v170, %v905
  %v907 = vpop.f32.mrb[0].mxu0
  %908 = vmatprep.mubr.bf16.mxu0 0
  %909 = vmatmul.mubr.bf16.gmra.mrb[0].mxu0 %v462
  %v910 = vpop.f32.mrb[0].mxu0
  %v911 = vadd.f32 %v170, %v910
  %v912 = vpop.f32.mrb[0].mxu0
  %v913 = vpop.f32.mrb[0].mxu0
  %v914 = vadd.f32 %v170, %v913
  %v915 = vpop.f32.mrb[0].mxu0
  %916 = vmatprep.mubr.bf16.mxu0 0
  %917 = vmatmul.mubr.bf16.gmra.mrb[0].mxu0 %v463
  %v918 = vpop.f32.mrb[0].mxu0
  %v919 = vadd.f32 %v170, %v918
  %v920 = vpop.f32.mrb[0].mxu0
  %v921 = vpop.f32.mrb[0].mxu0
  %v922 = vadd.f32 %v170, %v921
  %v923 = vpop.f32.mrb[0].mxu0
  %924 = vmatprep.mubr.bf16.mxu0 0
  %925 = vmatmul.mubr.bf16.gmra.mrb[0].mxu0 %v464
  %v926 = vpop.f32.mrb[0].mxu0
  %v927 = vadd.f32 %v170, %v926
  %v928 = vpop.f32.mrb[0].mxu0
  %v929 = vpop.f32.mrb[0].mxu0
  %v930 = vadd.f32 %v170, %v929
  %v931 = vpop.f32.mrb[0].mxu0
  %932 = vmatprep.mubr.bf16.mxu0 0
  %933 = vmatmul.mubr.bf16.gmra.mrb[0].mxu0 %v465
  %v934 = vpop.f32.mrb[0].mxu0
  %v935 = vadd.f32 %v170, %v934
  %v936 = vpop.f32.mrb[0].mxu0
  %v937 = vpop.f32.mrb[0].mxu0
  %v938 = vadd.f32 %v170, %v937
  %v939 = vpop.f32.mrb[0].mxu0
  %940 = vmatprep.mubr.bf16.mxu0 0
  %941 = vmatmul.mubr.bf16.gmra.mrb[0].mxu0 %v466
  %v942 = vpop.f32.mrb[0].mxu0
  %v943 = vadd.f32 %v170, %v942
  %v944 = vpop.f32.mrb[0].mxu0
  %v945 = vpop.f32.mrb[0].mxu0
  %v946 = vadd.f32 %v170, %v945
  %v947 = vpop.f32.mrb[0].mxu0
  %948 = vmatprep.mubr.bf16.mxu0 0
  %949 = vmatmul.mubr.bf16.gmra.mrb[0].mxu0 %v467
  %v950 = vpop.f32.mrb[0].mxu0
  %v951 = vadd.f32 %v170, %v950
  %v952 = vpop.f32.mrb[0].mxu0
  %v953 = vpop.f32.mrb[0].mxu0
  %v954 = vadd.f32 %v170, %v953
  %v955 = vpop.f32.mrb[0].mxu0
  %956 = vmatprep.mubr.bf16.mxu0 0
  %957 = vmatmul.mubr.bf16.gmra.mrb[0].mxu0 %v468
  %v958 = vpop.f32.mrb[0].mxu0
  %v959 = vadd.f32 %v170, %v958
  %v960 = vpop.f32.mrb[0].mxu0
  %v961 = vpop.f32.mrb[0].mxu0
  %v962 = vadd.f32 %v170, %v961
  %v963 = vpop.f32.mrb[0].mxu0
  %964 = vmatprep.mubr.bf16.mxu0 0
  %965 = vmatmul.mubr.bf16.gmra.mrb[0].mxu0 %v469
  %v966 = vpop.f32.mrb[0].mxu0
  %v967 = vadd.f32 %v170, %v966
  %v968 = vpop.f32.mrb[0].mxu0
  %v969 = vpop.f32.mrb[0].mxu0
  %v970 = vadd.f32 %v170, %v969
  %v971 = vpop.f32.mrb[0].mxu0
  %972 = vmatprep.mubr.bf16.mxu0 0
  %973 = vmatmul.mubr.bf16.gmra.mrb[0].mxu0 %v470
  %v974 = vpop.f32.mrb[0].mxu0
  %v975 = vadd.f32 %v170, %v974
  %v976 = vpop.f32.mrb[0].mxu0
  %v977 = vpop.f32.mrb[0].mxu0
  %v978 = vadd.f32 %v170, %v977
  %v979 = vpop.f32.mrb[0].mxu0
  %980 = vmatprep.mubr.bf16.mxu0 0
  %981 = vmatmul.mubr.bf16.gmra.mrb[0].mxu0 %v471
  %v982 = vpop.f32.mrb[0].mxu0
  %v983 = vadd.f32 %v170, %v982
  %v984 = vpop.f32.mrb[0].mxu0
  %v985 = vpop.f32.mrb[0].mxu0
  %v986 = vadd.f32 %v170, %v985
  %v987 = vpop.f32.mrb[0].mxu0
  %988 = vmatprep.mubr.bf16.mxu0 0
  %989 = vmatmul.mubr.bf16.gmra.mrb[0].mxu0 %v472
  %v990 = vpop.f32.mrb[0].mxu0
  %v991 = vadd.f32 %v170, %v990
  %v992 = vpop.f32.mrb[0].mxu0
  %v993 = vpop.f32.mrb[0].mxu0
  %v994 = vadd.f32 %v170, %v993
  %v995 = vpop.f32.mrb[0].mxu0
  %996 = vmatprep.mubr.bf16.mxu0 0
  %997 = vmatmul.mubr.bf16.gmra.mrb[0].mxu0 %v473
  %v998 = vpop.f32.mrb[0].mxu0
  %v999 = vadd.f32 %v170, %v998
  %v1000 = vpop.f32.mrb[0].mxu0
  %v1001 = vpop.f32.mrb[0].mxu0
  %v1002 = vadd.f32 %v170, %v1001
  %v1003 = vpop.f32.mrb[0].mxu0
  %1004 = vmatprep.mubr.bf16.mxu0 0
  %1005 = vmatmul.mubr.bf16.gmra.mrb[0].mxu0 %v474
  %v1006 = vpop.f32.mrb[0].mxu0
  %v1007 = vadd.f32 %v170, %v1006
  %v1008 = vpop.f32.mrb[0].mxu0
  %v1009 = vpop.f32.mrb[0].mxu0
  %v1010 = vadd.f32 %v170, %v1009
  %v1011 = vpop.f32.mrb[0].mxu0
  %1012 = vmatprep.mubr.bf16.mxu0 0
  %1013 = vmatmul.mubr.bf16.gmra.mrb[0].mxu0 %v475
  %v1014 = vpop.f32.mrb[0].mxu0
  %v1015 = vadd.f32 %v170, %v1014
  %v1016 = vpop.f32.mrb[0].mxu0
  %v1017 = vpop.f32.mrb[0].mxu0
  %v1018 = vadd.f32 %v170, %v1017
  %v1019 = vpop.f32.mrb[0].mxu0
  %1020 = vmatprep.mubr.bf16.mxu0 0
  %1021 = vmatmul.mubr.bf16.gmra.mrb[0].mxu0 %v476
  %v1022 = vpop.f32.mrb[0].mxu0
  %v1023 = vadd.f32 %v170, %v1022
  %v1024 = vpop.f32.mrb[0].mxu0
  %v1025 = vpop.f32.mrb[0].mxu0
  %v1026 = vadd.f32 %v170, %v1025
  %v1027 = vpop.f32.mrb[0].mxu0
  %1028 = vmatprep.mubr.bf16.mxu0 0
  %1029 = vmatmul.mubr.bf16.gmra.mrb[0].mxu0 %v477
  %v1030 = vpop.f32.mrb[0].mxu0
  %v1031 = vadd.f32 %v170, %v1030
  %v1032 = vpop.f32.mrb[0].mxu0
  %v1033 = vpop.f32.mrb[0].mxu0
  %v1034 = vadd.f32 %v170, %v1033
  %v1035 = vpop.f32.mrb[0].mxu0
  %1036 = vmatprep.mubr.bf16.mxu0 0
  %1037 = vmatmul.mubr.bf16.gmra.mrb[0].mxu0 %v478
  %v1038 = vpop.f32.mrb[0].mxu0
  %v1039 = vadd.f32 %v170, %v1038
  %v1040 = vpop.f32.mrb[0].mxu0
  %v1041 = vpop.f32.mrb[0].mxu0
  %v1042 = vadd.f32 %v170, %v1041
  %v1043 = vpop.f32.mrb[0].mxu0
  %1044 = vmatprep.mubr.bf16.mxu0 0
  %1045 = vmatmul.mubr.bf16.gmra.mrb[0].mxu0 %v479
  %v1046 = vpop.f32.mrb[0].mxu0
  %v1047 = vadd.f32 %v170, %v1046
  %v1048 = vpop.f32.mrb[0].mxu0
  %v1049 = vpop.f32.mrb[0].mxu0
  %v1050 = vadd.f32 %v170, %v1049
  %v1051 = vpop.f32.mrb[0].mxu0
  %1052 = vmatprep.mubr.bf16.mxu0 0
  %1053 = vmatmul.mubr.bf16.gmra.mrb[0].mxu0 %v480
  %v1054 = vpop.f32.mrb[0].mxu0
  %v1055 = vadd.f32 %v170, %v1054
  %v1056 = vpop.f32.mrb[0].mxu0
  %v1057 = vpop.f32.mrb[0].mxu0
  %v1058 = vadd.f32 %v170, %v1057
  %v1059 = vpop.f32.mrb[0].mxu0
  %1060 = vmatprep.mubr.bf16.mxu0 0
  %1061 = vmatmul.mubr.bf16.gmra.mrb[0].mxu0 %v481
  %v1062 = vpop.f32.mrb[0].mxu0
  %v1063 = vadd.f32 %v170, %v1062
  %v1064 = vpop.f32.mrb[0].mxu0
  %v1065 = vpop.f32.mrb[0].mxu0
  %v1066 = vadd.f32 %v170, %v1065
  %v1067 = vpop.f32.mrb[0].mxu0
  %1068 = vmatprep.mubr.bf16.mxu0 0
  %1069 = vmatmul.mubr.bf16.gmra.mrb[0].mxu0 %v482
  %v1070 = vpop.f32.mrb[0].mxu0
  %v1071 = vadd.f32 %v170, %v1070
  %v1072 = vpop.f32.mrb[0].mxu0
  %v1073 = vpop.f32.mrb[0].mxu0
  %v1074 = vadd.f32 %v170, %v1073
  %v1075 = vpop.f32.mrb[0].mxu0
  %1076 = vmatprep.mubr.bf16.mxu0 0
  %1077 = vmatmul.mubr.bf16.gmra.mrb[0].mxu0 %v483
  %v1078 = vpop.f32.mrb[0].mxu0
  %v1079 = vadd.f32 %v170, %v1078
  %v1080 = vpop.f32.mrb[0].mxu0
  %v1081 = vpop.f32.mrb[0].mxu0
  %v1082 = vadd.f32 %v170, %v1081
  %v1083 = vpop.f32.mrb[0].mxu0
  %1084 = vmatprep.mubr.bf16.mxu0 0
  %1085 = vmatmul.mubr.bf16.gmra.mrb[0].mxu0 %v484
  %v1086 = vpop.f32.mrb[0].mxu0
  %v1087 = vadd.f32 %v170, %v1086
  %v1088 = vpop.f32.mrb[0].mxu0
  %v1089 = vpop.f32.mrb[0].mxu0
  %v1090 = vadd.f32 %v170, %v1089
  %v1091 = vpop.f32.mrb[0].mxu0
  %1092 = vmatprep.mubr.bf16.mxu0 0
  %1093 = vmatmul.mubr.bf16.gmra.mrb[0].mxu0 %v485
  %v1094 = vpop.f32.mrb[0].mxu0
  %v1095 = vadd.f32 %v170, %v1094
  %v1096 = vpop.f32.mrb[0].mxu0
  %v1097 = vpop.f32.mrb[0].mxu0
  %v1098 = vadd.f32 %v170, %v1097
  %v1099 = vpop.f32.mrb[0].mxu0
  %1100 = vmatprep.mubr.bf16.mxu0 0
  %1101 = vmatmul.mubr.bf16.gmra.mrb[0].mxu0 %v486
  %v1102 = vpop.f32.mrb[0].mxu0
  %v1103 = vadd.f32 %v170, %v1102
  %v1104 = vpop.f32.mrb[0].mxu0
  %v1105 = vpop.f32.mrb[0].mxu0
  %v1106 = vadd.f32 %v170, %v1105
  %v1107 = vpop.f32.mrb[0].mxu0
  %1108 = vmatprep.mubr.bf16.mxu0 0
  %1109 = vmatmul.mubr.bf16.gmra.mrb[0].mxu0 %v487
  %v1110 = vpop.f32.mrb[0].mxu0
  %v1111 = vadd.f32 %v170, %v1110
  %v1112 = vpop.f32.mrb[0].mxu0
  %v1113 = vpop.f32.mrb[0].mxu0
  %v1114 = vadd.f32 %v170, %v1113
  %v1115 = vpop.f32.mrb[0].mxu0
  %1116 = vmatprep.mubr.bf16.mxu0 0
  %1117 = vmatmul.mubr.bf16.gmra.mrb[0].mxu0 %v488
  %v1118 = vpop.f32.mrb[0].mxu0
  %v1119 = vadd.f32 %v170, %v1118
  %v1120 = vpop.f32.mrb[0].mxu0
  %v1121 = vpop.f32.mrb[0].mxu0
  %v1122 = vadd.f32 %v170, %v1121
  %v1123 = vpop.f32.mrb[0].mxu0
  %1124 = vmatprep.mubr.bf16.mxu0 0
  %1125 = vmatmul.mubr.bf16.gmra.mrb[0].mxu0 %v489
  %v1126 = vpop.f32.mrb[0].mxu0
  %v1127 = vadd.f32 %v170, %v1126
  %v1128 = vpop.f32.mrb[0].mxu0
  %v1129 = vpop.f32.mrb[0].mxu0
  %v1130 = vadd.f32 %v170, %v1129
  %v1131 = vpop.f32.mrb[0].mxu0
  %1132 = vmatprep.mubr.bf16.mxu0 0
  %1133 = vmatmul.mubr.bf16.gmra.mrb[0].mxu0 %v490
  %v1134 = vpop.f32.mrb[0].mxu0
  %v1135 = vadd.f32 %v170, %v1134
  %v1136 = vpop.f32.mrb[0].mxu0
  %v1137 = vpop.f32.mrb[0].mxu0
  %v1138 = vadd.f32 %v170, %v1137
  %v1139 = vpop.f32.mrb[0].mxu0
  %1140 = vmatprep.mubr.bf16.mxu0 0
  %1141 = vmatmul.mubr.bf16.gmra.mrb[0].mxu0 %v491
  %v1142 = vpop.f32.mrb[0].mxu0
  %v1143 = vadd.f32 %v170, %v1142
  %v1144 = vpop.f32.mrb[0].mxu0
  %v1145 = vpop.f32.mrb[0].mxu0
  %v1146 = vadd.f32 %v170, %v1145
  %v1147 = vpop.f32.mrb[0].mxu0
  %1148 = vdwg.mxu0
  %v1149 = vmax.f32 %v639, 0.0
  %v1150 = vmax.f32 %v642, 0.0
  %v1151 = vmax.f32 %v647, 0.0
  %v1152 = vmax.f32 %v650, 0.0
  %v1153 = vmax.f32 %v655, 0.0
  %v1154 = vmax.f32 %v658, 0.0
  %v1155 = vmax.f32 %v663, 0.0
  %v1156 = vmax.f32 %v666, 0.0
  %v1157 = vmax.f32 %v671, 0.0
  %v1158 = vmax.f32 %v674, 0.0
  %v1159 = vmax.f32 %v679, 0.0
  %v1160 = vmax.f32 %v682, 0.0
  %v1161 = vmax.f32 %v687, 0.0
  %v1162 = vmax.f32 %v690, 0.0
  %v1163 = vmax.f32 %v695, 0.0
  %v1164 = vmax.f32 %v698, 0.0
  %v1165 = vmax.f32 %v703, 0.0
  %v1166 = vmax.f32 %v706, 0.0
  %v1167 = vmax.f32 %v711, 0.0
  %v1168 = vmax.f32 %v714, 0.0
  %v1169 = vmax.f32 %v719, 0.0
  %v1170 = vmax.f32 %v722, 0.0
  %v1171 = vmax.f32 %v727, 0.0
  %v1172 = vmax.f32 %v730, 0.0
  %v1173 = vmax.f32 %v735, 0.0
  %v1174 = vmax.f32 %v738, 0.0
  %v1175 = vmax.f32 %v743, 0.0
  %v1176 = vmax.f32 %v746, 0.0
  %v1177 = vmax.f32 %v751, 0.0
  %v1178 = vmax.f32 %v754, 0.0
  %v1179 = vmax.f32 %v759, 0.0
  %v1180 = vmax.f32 %v762, 0.0
  %v1181 = vmax.f32 %v767, 0.0
  %v1182 = vmax.f32 %v770, 0.0
  %v1183 = vmax.f32 %v775, 0.0
  %v1184 = vmax.f32 %v778, 0.0
  %v1185 = vmax.f32 %v783, 0.0
  %v1186 = vmax.f32 %v786, 0.0
  %v1187 = vmax.f32 %v791, 0.0
  %v1188 = vmax.f32 %v794, 0.0
  %v1189 = vmax.f32 %v799, 0.0
  %v1190 = vmax.f32 %v802, 0.0
  %v1191 = vmax.f32 %v807, 0.0
  %v1192 = vmax.f32 %v810, 0.0
  %v1193 = vmax.f32 %v815, 0.0
  %v1194 = vmax.f32 %v818, 0.0
  %v1195 = vmax.f32 %v823, 0.0
  %v1196 = vmax.f32 %v826, 0.0
  %v1197 = vmax.f32 %v831, 0.0
  %v1198 = vmax.f32 %v834, 0.0
  %v1199 = vmax.f32 %v839, 0.0
  %v1200 = vmax.f32 %v842, 0.0
  %v1201 = vmax.f32 %v847, 0.0
  %v1202 = vmax.f32 %v850, 0.0
  %v1203 = vmax.f32 %v855, 0.0
  %v1204 = vmax.f32 %v858, 0.0
  %v1205 = vmax.f32 %v863, 0.0
  %v1206 = vmax.f32 %v866, 0.0
  %v1207 = vmax.f32 %v871, 0.0
  %v1208 = vmax.f32 %v874, 0.0
  %v1209 = vmax.f32 %v879, 0.0
  %v1210 = vmax.f32 %v882, 0.0
  %v1211 = vmax.f32 %v887, 0.0
  %v1212 = vmax.f32 %v890, 0.0
  %v1213 = vmax.f32 %v895, 0.0
  %v1214 = vmax.f32 %v898, 0.0
  %v1215 = vmax.f32 %v903, 0.0
  %v1216 = vmax.f32 %v906, 0.0
  %v1217 = vmax.f32 %v911, 0.0
  %v1218 = vmax.f32 %v914, 0.0
  %v1219 = vmax.f32 %v919, 0.0
  %v1220 = vmax.f32 %v922, 0.0
  %v1221 = vmax.f32 %v927, 0.0
  %v1222 = vmax.f32 %v930, 0.0
  %v1223 = vmax.f32 %v935, 0.0
  %v1224 = vmax.f32 %v938, 0.0
  %v1225 = vmax.f32 %v943, 0.0
  %v1226 = vmax.f32 %v946, 0.0
  %v1227 = vmax.f32 %v951, 0.0
  %v1228 = vmax.f32 %v954, 0.0
  %v1229 = vmax.f32 %v959, 0.0
  %v1230 = vmax.f32 %v962, 0.0
  %v1231 = vmax.f32 %v967, 0.0
  %v1232 = vmax.f32 %v970, 0.0
  %v1233 = vmax.f32 %v975, 0.0
  %v1234 = vmax.f32 %v978, 0.0
  %v1235 = vmax.f32 %v983, 0.0
  %v1236 = vmax.f32 %v986, 0.0
  %v1237 = vmax.f32 %v991, 0.0
  %v1238 = vmax.f32 %v994, 0.0
  %v1239 = vmax.f32 %v999, 0.0
  %v1240 = vmax.f32 %v1002, 0.0
  %v1241 = vmax.f32 %v1007, 0.0
  %v1242 = vmax.f32 %v1010, 0.0
  %v1243 = vmax.f32 %v1015, 0.0
  %v1244 = vmax.f32 %v1018, 0.0
  %v1245 = vmax.f32 %v1023, 0.0
  %v1246 = vmax.f32 %v1026, 0.0
  %v1247 = vmax.f32 %v1031, 0.0
  %v1248 = vmax.f32 %v1034, 0.0
  %v1249 = vmax.f32 %v1039, 0.0
  %v1250 = vmax.f32 %v1042, 0.0
  %v1251 = vmax.f32 %v1047, 0.0
  %v1252 = vmax.f32 %v1050, 0.0
  %v1253 = vmax.f32 %v1055, 0.0
  %v1254 = vmax.f32 %v1058, 0.0
  %v1255 = vmax.f32 %v1063, 0.0
  %v1256 = vmax.f32 %v1066, 0.0
  %v1257 = vmax.f32 %v1071, 0.0
  %v1258 = vmax.f32 %v1074, 0.0
  %v1259 = vmax.f32 %v1079, 0.0
  %v1260 = vmax.f32 %v1082, 0.0
  %v1261 = vmax.f32 %v1087, 0.0
  %v1262 = vmax.f32 %v1090, 0.0
  %v1263 = vmax.f32 %v1095, 0.0
  %v1264 = vmax.f32 %v1098, 0.0
  %v1265 = vmax.f32 %v1103, 0.0
  %v1266 = vmax.f32 %v1106, 0.0
  %v1267 = vmax.f32 %v1111, 0.0
  %v1268 = vmax.f32 %v1114, 0.0
  %v1269 = vmax.f32 %v1119, 0.0
  %v1270 = vmax.f32 %v1122, 0.0
  %v1271 = vmax.f32 %v1127, 0.0
  %v1272 = vmax.f32 %v1130, 0.0
  %v1273 = vmax.f32 %v1135, 0.0
  %v1274 = vmax.f32 %v1138, 0.0
  %v1275 = vmax.f32 %v1143, 0.0
  %v1276 = vmax.f32 %v1146, 0.0
  %v1277 = vpack.c.bf16 %v1150, %v1149
  %v1278 = vpack.c.bf16 %v1152, %v1151
  %v1279 = vpack.c.bf16 %v1154, %v1153
  %v1280 = vpack.c.bf16 %v1156, %v1155
  %v1281 = vpack.c.bf16 %v1158, %v1157
  %v1282 = vpack.c.bf16 %v1160, %v1159
  %v1283 = vpack.c.bf16 %v1162, %v1161
  %v1284 = vpack.c.bf16 %v1164, %v1163
  %v1285 = vpack.c.bf16 %v1166, %v1165
  %v1286 = vpack.c.bf16 %v1168, %v1167
  %v1287 = vpack.c.bf16 %v1170, %v1169
  %v1288 = vpack.c.bf16 %v1172, %v1171
  %v1289 = vpack.c.bf16 %v1174, %v1173
  %v1290 = vpack.c.bf16 %v1176, %v1175
  %v1291 = vpack.c.bf16 %v1178, %v1177
  %v1292 = vpack.c.bf16 %v1180, %v1179
  %v1293 = vpack.c.bf16 %v1182, %v1181
  %v1294 = vpack.c.bf16 %v1184, %v1183
  %v1295 = vpack.c.bf16 %v1186, %v1185
  %v1296 = vpack.c.bf16 %v1188, %v1187
  %v1297 = vpack.c.bf16 %v1190, %v1189
  %v1298 = vpack.c.bf16 %v1192, %v1191
  %v1299 = vpack.c.bf16 %v1194, %v1193
  %v1300 = vpack.c.bf16 %v1196, %v1195
  %v1301 = vpack.c.bf16 %v1198, %v1197
  %v1302 = vpack.c.bf16 %v1200, %v1199
  %v1303 = vpack.c.bf16 %v1202, %v1201
  %v1304 = vpack.c.bf16 %v1204, %v1203
  %v1305 = vpack.c.bf16 %v1206, %v1205
  %v1306 = vpack.c.bf16 %v1208, %v1207
  %v1307 = vpack.c.bf16 %v1210, %v1209
  %v1308 = vpack.c.bf16 %v1212, %v1211
  %v1309 = vpack.c.bf16 %v1214, %v1213
  %v1310 = vpack.c.bf16 %v1216, %v1215
  %v1311 = vpack.c.bf16 %v1218, %v1217
  %v1312 = vpack.c.bf16 %v1220, %v1219
  %v1313 = vpack.c.bf16 %v1222, %v1221
  %v1314 = vpack.c.bf16 %v1224, %v1223
  %v1315 = vpack.c.bf16 %v1226, %v1225
  %v1316 = vpack.c.bf16 %v1228, %v1227
  %v1317 = vpack.c.bf16 %v1230, %v1229
  %v1318 = vpack.c.bf16 %v1232, %v1231
  %v1319 = vpack.c.bf16 %v1234, %v1233
  %v1320 = vpack.c.bf16 %v1236, %v1235
  %v1321 = vpack.c.bf16 %v1238, %v1237
  %v1322 = vpack.c.bf16 %v1240, %v1239
  %v1323 = vpack.c.bf16 %v1242, %v1241
  %v1324 = vpack.c.bf16 %v1244, %v1243
  %v1325 = vpack.c.bf16 %v1246, %v1245
  %v1326 = vpack.c.bf16 %v1248, %v1247
  %v1327 = vpack.c.bf16 %v1250, %v1249
  %v1328 = vpack.c.bf16 %v1252, %v1251
  %v1329 = vpack.c.bf16 %v1254, %v1253
  %v1330 = vpack.c.bf16 %v1256, %v1255
  %v1331 = vpack.c.bf16 %v1258, %v1257
  %v1332 = vpack.c.bf16 %v1260, %v1259
  %v1333 = vpack.c.bf16 %v1262, %v1261
  %v1334 = vpack.c.bf16 %v1264, %v1263
  %v1335 = vpack.c.bf16 %v1266, %v1265
  %v1336 = vpack.c.bf16 %v1268, %v1267
  %v1337 = vpack.c.bf16 %v1270, %v1269
  %v1338 = vpack.c.bf16 %v1272, %v1271
  %v1339 = vpack.c.bf16 %v1274, %v1273
  %v1340 = vpack.c.bf16 %v1276, %v1275
  %s1341 = scalar_lea.vmem %s1, 64
  %v1342 = vld [vmem:[%s1341] sm:$0xf]
  %v1343 = vld [vmem:[%s1341 + $0x4] sm:$0xf]
  %v1344 = vld [vmem:[%s1341 + $0x8] sm:$0xf]
  %v1345 = vld [vmem:[%s1341 + $0xc] sm:$0xf]
  %v1346 = vld [vmem:[%s1341 + $0x10] sm:$0xf]
  %v1347 = vld [vmem:[%s1341 + $0x14] sm:$0xf]
  %v1348 = vld [vmem:[%s1341 + $0x18] sm:$0xf]
  %v1349 = vld [vmem:[%s1341 + $0x1c] sm:$0xf]
  %v1350 = vld [vmem:[%s1341 + $0x20] sm:$0xf]
  %v1351 = vld [vmem:[%s1341 + $0x24] sm:$0xf]
  %v1352 = vld [vmem:[%s1341 + $0x28] sm:$0xf]
  %v1353 = vld [vmem:[%s1341 + $0x2c] sm:$0xf]
  %v1354 = vld [vmem:[%s1341 + $0x30] sm:$0xf]
  %v1355 = vld [vmem:[%s1341 + $0x34] sm:$0xf]
  %v1356 = vld [vmem:[%s1341 + $0x38] sm:$0xf]
  %v1357 = vld [vmem:[%s1341 + $0x3c] sm:$0xf]
  %s1358 = scalar_lea.vmem %s2, 1
  %v1359 = vld [vmem:[%s1358] sm:$0x1]
  %v1361 = vlaneseq
  %v1362 = vshrl.u32 %v1361, 7
  %v1363 = vsub.s32 0, %v1362
  %v1364 = vrot.slane %v1359, %v1363
  %v1382 = vunpack.c.l.b16 %v1342
  %v1383 = vunpack.c.l.b16 %v1343
  %v1384 = vunpack.c.l.b16 %v1344
  %v1385 = vunpack.c.l.b16 %v1345
  %v1386 = vunpack.c.l.b16 %v1346
  %v1387 = vunpack.c.l.b16 %v1347
  %v1388 = vunpack.c.l.b16 %v1348
  %v1389 = vunpack.c.l.b16 %v1349
  %v1390 = vunpack.c.l.b16 %v1350
  %v1391 = vunpack.c.l.b16 %v1351
  %v1392 = vunpack.c.l.b16 %v1352
  %v1393 = vunpack.c.l.b16 %v1353
  %v1394 = vunpack.c.l.b16 %v1354
  %v1395 = vunpack.c.l.b16 %v1355
  %v1396 = vunpack.c.l.b16 %v1356
  %v1397 = vunpack.c.l.b16 %v1357
  %v1398 = vpack.c.b16 %v1383, %v1382
  %v1399 = vpack.c.b16 %v1385, %v1384
  %v1400 = vpack.c.b16 %v1387, %v1386
  %v1401 = vpack.c.b16 %v1389, %v1388
  %v1402 = vpack.c.b16 %v1391, %v1390
  %v1403 = vpack.c.b16 %v1393, %v1392
  %v1404 = vpack.c.b16 %v1395, %v1394
  %v1405 = vpack.c.b16 %v1397, %v1396
  %1414 = vmatprep.subr.bf16.mxu0 0
  %1415 = vmatpush1.bf16.msra.mxu0 %v1398
  %1416 = vmatprep.subr.bf16.mxu0 0
  %1417 = vmatpush1.bf16.msra.mxu0 %v1399
  %1418 = vmatprep.subr.bf16.mxu0 0
  %1419 = vmatpush1.bf16.msra.mxu0 %v1400
  %1420 = vmatprep.subr.bf16.mxu0 0
  %1421 = vmatpush1.bf16.msra.mxu0 %v1401
  %1422 = vmatprep.subr.bf16.mxu0 0
  %1423 = vmatpush1.bf16.msra.mxu0 %v1402
  %1424 = vmatprep.subr.bf16.mxu0 0
  %1425 = vmatpush1.bf16.msra.mxu0 %v1403
  %1426 = vmatprep.subr.bf16.mxu0 0
  %1427 = vmatpush1.bf16.msra.mxu0 %v1404
  %1428 = vmatprep.subr.bf16.mxu0 0
  %1429 = vmatpush1.bf16.msra.mxu0 %v1405
  %1430 = vmatprep.subr.bf16.mxu0 0
  %1431 = vmatpush1.bf16.msra.mxu0 0
  %1432 = vmatprep.subr.bf16.mxu0 0
  %1433 = vmatpush1.bf16.msra.mxu0 0
  %1434 = vmatprep.subr.bf16.mxu0 0
  %1435 = vmatpush1.bf16.msra.mxu0 0
  %1436 = vmatprep.subr.bf16.mxu0 0
  %1437 = vmatpush1.bf16.msra.mxu0 0
  %1438 = vmatprep.subr.bf16.mxu0 0
  %1439 = vmatpush1.bf16.msra.mxu0 0
  %1440 = vmatprep.subr.bf16.mxu0 0
  %1441 = vmatpush1.bf16.msra.mxu0 0
  %1442 = vmatprep.subr.bf16.mxu0 0
  %1443 = vmatpush1.bf16.msra.mxu0 0
  %1444 = vmatprep.subr.bf16.mxu0 0
  %1445 = vmatpush1.bf16.msra.mxu0 0
  %1446 = vmatprep.mubr.bf16.mxu0 0
  %1447 = vmatmul.mubr.bf16.gmra.mrb[0].mxu0 %v1277
  %v1448 = vpop.f32.mrb[0].mxu0
  %v1449 = vadd.f32 %v1364, %v1448
  %v1450 = vpop.f32.mrb[0].mxu0
  %v1451 = vpop.f32.mrb[0].mxu0
  %v1452 = vadd.f32 %v1364, %v1451
  %v1453 = vpop.f32.mrb[0].mxu0
  %1454 = vmatprep.mubr.bf16.mxu0 0
  %1455 = vmatmul.mubr.bf16.gmra.mrb[0].mxu0 %v1278
  %v1456 = vpop.f32.mrb[0].mxu0
  %v1457 = vadd.f32 %v1364, %v1456
  %v1458 = vpop.f32.mrb[0].mxu0
  %v1459 = vpop.f32.mrb[0].mxu0
  %v1460 = vadd.f32 %v1364, %v1459
  %v1461 = vpop.f32.mrb[0].mxu0
  %1462 = vmatprep.mubr.bf16.mxu0 0
  %1463 = vmatmul.mubr.bf16.gmra.mrb[0].mxu0 %v1279
  %v1464 = vpop.f32.mrb[0].mxu0
  %v1465 = vadd.f32 %v1364, %v1464
  %v1466 = vpop.f32.mrb[0].mxu0
  %v1467 = vpop.f32.mrb[0].mxu0
  %v1468 = vadd.f32 %v1364, %v1467
  %v1469 = vpop.f32.mrb[0].mxu0
  %1470 = vmatprep.mubr.bf16.mxu0 0
  %1471 = vmatmul.mubr.bf16.gmra.mrb[0].mxu0 %v1280
  %v1472 = vpop.f32.mrb[0].mxu0
  %v1473 = vadd.f32 %v1364, %v1472
  %v1474 = vpop.f32.mrb[0].mxu0
  %v1475 = vpop.f32.mrb[0].mxu0
  %v1476 = vadd.f32 %v1364, %v1475
  %v1477 = vpop.f32.mrb[0].mxu0
  %1478 = vmatprep.mubr.bf16.mxu0 0
  %1479 = vmatmul.mubr.bf16.gmra.mrb[0].mxu0 %v1281
  %v1480 = vpop.f32.mrb[0].mxu0
  %v1481 = vadd.f32 %v1364, %v1480
  %v1482 = vpop.f32.mrb[0].mxu0
  %v1483 = vpop.f32.mrb[0].mxu0
  %v1484 = vadd.f32 %v1364, %v1483
  %v1485 = vpop.f32.mrb[0].mxu0
  %1486 = vmatprep.mubr.bf16.mxu0 0
  %1487 = vmatmul.mubr.bf16.gmra.mrb[0].mxu0 %v1282
  %v1488 = vpop.f32.mrb[0].mxu0
  %v1489 = vadd.f32 %v1364, %v1488
  %v1490 = vpop.f32.mrb[0].mxu0
  %v1491 = vpop.f32.mrb[0].mxu0
  %v1492 = vadd.f32 %v1364, %v1491
  %v1493 = vpop.f32.mrb[0].mxu0
  %1494 = vmatprep.mubr.bf16.mxu0 0
  %1495 = vmatmul.mubr.bf16.gmra.mrb[0].mxu0 %v1283
  %v1496 = vpop.f32.mrb[0].mxu0
  %v1497 = vadd.f32 %v1364, %v1496
  %v1498 = vpop.f32.mrb[0].mxu0
  %v1499 = vpop.f32.mrb[0].mxu0
  %v1500 = vadd.f32 %v1364, %v1499
  %v1501 = vpop.f32.mrb[0].mxu0
  %1502 = vmatprep.mubr.bf16.mxu0 0
  %1503 = vmatmul.mubr.bf16.gmra.mrb[0].mxu0 %v1284
  %v1504 = vpop.f32.mrb[0].mxu0
  %v1505 = vadd.f32 %v1364, %v1504
  %v1506 = vpop.f32.mrb[0].mxu0
  %v1507 = vpop.f32.mrb[0].mxu0
  %v1508 = vadd.f32 %v1364, %v1507
  %v1509 = vpop.f32.mrb[0].mxu0
  %1510 = vmatprep.mubr.bf16.mxu0 0
  %1511 = vmatmul.mubr.bf16.gmra.mrb[0].mxu0 %v1285
  %v1512 = vpop.f32.mrb[0].mxu0
  %v1513 = vadd.f32 %v1364, %v1512
  %v1514 = vpop.f32.mrb[0].mxu0
  %v1515 = vpop.f32.mrb[0].mxu0
  %v1516 = vadd.f32 %v1364, %v1515
  %v1517 = vpop.f32.mrb[0].mxu0
  %1518 = vmatprep.mubr.bf16.mxu0 0
  %1519 = vmatmul.mubr.bf16.gmra.mrb[0].mxu0 %v1286
  %v1520 = vpop.f32.mrb[0].mxu0
  %v1521 = vadd.f32 %v1364, %v1520
  %v1522 = vpop.f32.mrb[0].mxu0
  %v1523 = vpop.f32.mrb[0].mxu0
  %v1524 = vadd.f32 %v1364, %v1523
  %v1525 = vpop.f32.mrb[0].mxu0
  %1526 = vmatprep.mubr.bf16.mxu0 0
  %1527 = vmatmul.mubr.bf16.gmra.mrb[0].mxu0 %v1287
  %v1528 = vpop.f32.mrb[0].mxu0
  %v1529 = vadd.f32 %v1364, %v1528
  %v1530 = vpop.f32.mrb[0].mxu0
  %v1531 = vpop.f32.mrb[0].mxu0
  %v1532 = vadd.f32 %v1364, %v1531
  %v1533 = vpop.f32.mrb[0].mxu0
  %1534 = vmatprep.mubr.bf16.mxu0 0
  %1535 = vmatmul.mubr.bf16.gmra.mrb[0].mxu0 %v1288
  %v1536 = vpop.f32.mrb[0].mxu0
  %v1537 = vadd.f32 %v1364, %v1536
  %v1538 = vpop.f32.mrb[0].mxu0
  %v1539 = vpop.f32.mrb[0].mxu0
  %v1540 = vadd.f32 %v1364, %v1539
  %v1541 = vpop.f32.mrb[0].mxu0
  %1542 = vmatprep.mubr.bf16.mxu0 0
  %1543 = vmatmul.mubr.bf16.gmra.mrb[0].mxu0 %v1289
  %v1544 = vpop.f32.mrb[0].mxu0
  %v1545 = vadd.f32 %v1364, %v1544
  %v1546 = vpop.f32.mrb[0].mxu0
  %v1547 = vpop.f32.mrb[0].mxu0
  %v1548 = vadd.f32 %v1364, %v1547
  %v1549 = vpop.f32.mrb[0].mxu0
  %1550 = vmatprep.mubr.bf16.mxu0 0
  %1551 = vmatmul.mubr.bf16.gmra.mrb[0].mxu0 %v1290
  %v1552 = vpop.f32.mrb[0].mxu0
  %v1553 = vadd.f32 %v1364, %v1552
  %v1554 = vpop.f32.mrb[0].mxu0
  %v1555 = vpop.f32.mrb[0].mxu0
  %v1556 = vadd.f32 %v1364, %v1555
  %v1557 = vpop.f32.mrb[0].mxu0
  %1558 = vmatprep.mubr.bf16.mxu0 0
  %1559 = vmatmul.mubr.bf16.gmra.mrb[0].mxu0 %v1291
  %v1560 = vpop.f32.mrb[0].mxu0
  %v1561 = vadd.f32 %v1364, %v1560
  %v1562 = vpop.f32.mrb[0].mxu0
  %v1563 = vpop.f32.mrb[0].mxu0
  %v1564 = vadd.f32 %v1364, %v1563
  %v1565 = vpop.f32.mrb[0].mxu0
  %1566 = vmatprep.mubr.bf16.mxu0 0
  %1567 = vmatmul.mubr.bf16.gmra.mrb[0].mxu0 %v1292
  %v1568 = vpop.f32.mrb[0].mxu0
  %v1569 = vadd.f32 %v1364, %v1568
  %v1570 = vpop.f32.mrb[0].mxu0
  %v1571 = vpop.f32.mrb[0].mxu0
  %v1572 = vadd.f32 %v1364, %v1571
  %v1573 = vpop.f32.mrb[0].mxu0
  %1574 = vmatprep.mubr.bf16.mxu0 0
  %1575 = vmatmul.mubr.bf16.gmra.mrb[0].mxu0 %v1293
  %v1576 = vpop.f32.mrb[0].mxu0
  %v1577 = vadd.f32 %v1364, %v1576
  %v1578 = vpop.f32.mrb[0].mxu0
  %v1579 = vpop.f32.mrb[0].mxu0
  %v1580 = vadd.f32 %v1364, %v1579
  %v1581 = vpop.f32.mrb[0].mxu0
  %1582 = vmatprep.mubr.bf16.mxu0 0
  %1583 = vmatmul.mubr.bf16.gmra.mrb[0].mxu0 %v1294
  %v1584 = vpop.f32.mrb[0].mxu0
  %v1585 = vadd.f32 %v1364, %v1584
  %v1586 = vpop.f32.mrb[0].mxu0
  %v1587 = vpop.f32.mrb[0].mxu0
  %v1588 = vadd.f32 %v1364, %v1587
  %v1589 = vpop.f32.mrb[0].mxu0
  %1590 = vmatprep.mubr.bf16.mxu0 0
  %1591 = vmatmul.mubr.bf16.gmra.mrb[0].mxu0 %v1295
  %v1592 = vpop.f32.mrb[0].mxu0
  %v1593 = vadd.f32 %v1364, %v1592
  %v1594 = vpop.f32.mrb[0].mxu0
  %v1595 = vpop.f32.mrb[0].mxu0
  %v1596 = vadd.f32 %v1364, %v1595
  %v1597 = vpop.f32.mrb[0].mxu0
  %1598 = vmatprep.mubr.bf16.mxu0 0
  %1599 = vmatmul.mubr.bf16.gmra.mrb[0].mxu0 %v1296
  %v1600 = vpop.f32.mrb[0].mxu0
  %v1601 = vadd.f32 %v1364, %v1600
  %v1602 = vpop.f32.mrb[0].mxu0
  %v1603 = vpop.f32.mrb[0].mxu0
  %v1604 = vadd.f32 %v1364, %v1603
  %v1605 = vpop.f32.mrb[0].mxu0
  %1606 = vmatprep.mubr.bf16.mxu0 0
  %1607 = vmatmul.mubr.bf16.gmra.mrb[0].mxu0 %v1297
  %v1608 = vpop.f32.mrb[0].mxu0
  %v1609 = vadd.f32 %v1364, %v1608
  %v1610 = vpop.f32.mrb[0].mxu0
  %v1611 = vpop.f32.mrb[0].mxu0
  %v1612 = vadd.f32 %v1364, %v1611
  %v1613 = vpop.f32.mrb[0].mxu0
  %1614 = vmatprep.mubr.bf16.mxu0 0
  %1615 = vmatmul.mubr.bf16.gmra.mrb[0].mxu0 %v1298
  %v1616 = vpop.f32.mrb[0].mxu0
  %v1617 = vadd.f32 %v1364, %v1616
  %v1618 = vpop.f32.mrb[0].mxu0
  %v1619 = vpop.f32.mrb[0].mxu0
  %v1620 = vadd.f32 %v1364, %v1619
  %v1621 = vpop.f32.mrb[0].mxu0
  %1622 = vmatprep.mubr.bf16.mxu0 0
  %1623 = vmatmul.mubr.bf16.gmra.mrb[0].mxu0 %v1299
  %v1624 = vpop.f32.mrb[0].mxu0
  %v1625 = vadd.f32 %v1364, %v1624
  %v1626 = vpop.f32.mrb[0].mxu0
  %v1627 = vpop.f32.mrb[0].mxu0
  %v1628 = vadd.f32 %v1364, %v1627
  %v1629 = vpop.f32.mrb[0].mxu0
  %1630 = vmatprep.mubr.bf16.mxu0 0
  %1631 = vmatmul.mubr.bf16.gmra.mrb[0].mxu0 %v1300
  %v1632 = vpop.f32.mrb[0].mxu0
  %v1633 = vadd.f32 %v1364, %v1632
  %v1634 = vpop.f32.mrb[0].mxu0
  %v1635 = vpop.f32.mrb[0].mxu0
  %v1636 = vadd.f32 %v1364, %v1635
  %v1637 = vpop.f32.mrb[0].mxu0
  %1638 = vmatprep.mubr.bf16.mxu0 0
  %1639 = vmatmul.mubr.bf16.gmra.mrb[0].mxu0 %v1301
  %v1640 = vpop.f32.mrb[0].mxu0
  %v1641 = vadd.f32 %v1364, %v1640
  %v1642 = vpop.f32.mrb[0].mxu0
  %v1643 = vpop.f32.mrb[0].mxu0
  %v1644 = vadd.f32 %v1364, %v1643
  %v1645 = vpop.f32.mrb[0].mxu0
  %1646 = vmatprep.mubr.bf16.mxu0 0
  %1647 = vmatmul.mubr.bf16.gmra.mrb[0].mxu0 %v1302
  %v1648 = vpop.f32.mrb[0].mxu0
  %v1649 = vadd.f32 %v1364, %v1648
  %v1650 = vpop.f32.mrb[0].mxu0
  %v1651 = vpop.f32.mrb[0].mxu0
  %v1652 = vadd.f32 %v1364, %v1651
  %v1653 = vpop.f32.mrb[0].mxu0
  %1654 = vmatprep.mubr.bf16.mxu0 0
  %1655 = vmatmul.mubr.bf16.gmra.mrb[0].mxu0 %v1303
  %v1656 = vpop.f32.mrb[0].mxu0
  %v1657 = vadd.f32 %v1364, %v1656
  %v1658 = vpop.f32.mrb[0].mxu0
  %v1659 = vpop.f32.mrb[0].mxu0
  %v1660 = vadd.f32 %v1364, %v1659
  %v1661 = vpop.f32.mrb[0].mxu0
  %1662 = vmatprep.mubr.bf16.mxu0 0
  %1663 = vmatmul.mubr.bf16.gmra.mrb[0].mxu0 %v1304
  %v1664 = vpop.f32.mrb[0].mxu0
  %v1665 = vadd.f32 %v1364, %v1664
  %v1666 = vpop.f32.mrb[0].mxu0
  %v1667 = vpop.f32.mrb[0].mxu0
  %v1668 = vadd.f32 %v1364, %v1667
  %v1669 = vpop.f32.mrb[0].mxu0
  %1670 = vmatprep.mubr.bf16.mxu0 0
  %1671 = vmatmul.mubr.bf16.gmra.mrb[0].mxu0 %v1305
  %v1672 = vpop.f32.mrb[0].mxu0
  %v1673 = vadd.f32 %v1364, %v1672
  %v1674 = vpop.f32.mrb[0].mxu0
  %v1675 = vpop.f32.mrb[0].mxu0
  %v1676 = vadd.f32 %v1364, %v1675
  %v1677 = vpop.f32.mrb[0].mxu0
  %1678 = vmatprep.mubr.bf16.mxu0 0
  %1679 = vmatmul.mubr.bf16.gmra.mrb[0].mxu0 %v1306
  %v1680 = vpop.f32.mrb[0].mxu0
  %v1681 = vadd.f32 %v1364, %v1680
  %v1682 = vpop.f32.mrb[0].mxu0
  %v1683 = vpop.f32.mrb[0].mxu0
  %v1684 = vadd.f32 %v1364, %v1683
  %v1685 = vpop.f32.mrb[0].mxu0
  %1686 = vmatprep.mubr.bf16.mxu0 0
  %1687 = vmatmul.mubr.bf16.gmra.mrb[0].mxu0 %v1307
  %v1688 = vpop.f32.mrb[0].mxu0
  %v1689 = vadd.f32 %v1364, %v1688
  %v1690 = vpop.f32.mrb[0].mxu0
  %v1691 = vpop.f32.mrb[0].mxu0
  %v1692 = vadd.f32 %v1364, %v1691
  %v1693 = vpop.f32.mrb[0].mxu0
  %1694 = vmatprep.mubr.bf16.mxu0 0
  %1695 = vmatmul.mubr.bf16.gmra.mrb[0].mxu0 %v1308
  %v1696 = vpop.f32.mrb[0].mxu0
  %v1697 = vadd.f32 %v1364, %v1696
  %v1698 = vpop.f32.mrb[0].mxu0
  %v1699 = vpop.f32.mrb[0].mxu0
  %v1700 = vadd.f32 %v1364, %v1699
  %v1701 = vpop.f32.mrb[0].mxu0
  %1702 = vmatprep.mubr.bf16.mxu0 0
  %1703 = vmatmul.mubr.bf16.gmra.mrb[0].mxu0 %v1309
  %v1704 = vpop.f32.mrb[0].mxu0
  %v1705 = vadd.f32 %v1364, %v1704
  %v1706 = vpop.f32.mrb[0].mxu0
  %v1707 = vpop.f32.mrb[0].mxu0
  %v1708 = vadd.f32 %v1364, %v1707
  %v1709 = vpop.f32.mrb[0].mxu0
  %1710 = vmatprep.mubr.bf16.mxu0 0
  %1711 = vmatmul.mubr.bf16.gmra.mrb[0].mxu0 %v1310
  %v1712 = vpop.f32.mrb[0].mxu0
  %v1713 = vadd.f32 %v1364, %v1712
  %v1714 = vpop.f32.mrb[0].mxu0
  %v1715 = vpop.f32.mrb[0].mxu0
  %v1716 = vadd.f32 %v1364, %v1715
  %v1717 = vpop.f32.mrb[0].mxu0
  %1718 = vmatprep.mubr.bf16.mxu0 0
  %1719 = vmatmul.mubr.bf16.gmra.mrb[0].mxu0 %v1311
  %v1720 = vpop.f32.mrb[0].mxu0
  %v1721 = vadd.f32 %v1364, %v1720
  %v1722 = vpop.f32.mrb[0].mxu0
  %v1723 = vpop.f32.mrb[0].mxu0
  %v1724 = vadd.f32 %v1364, %v1723
  %v1725 = vpop.f32.mrb[0].mxu0
  %1726 = vmatprep.mubr.bf16.mxu0 0
  %1727 = vmatmul.mubr.bf16.gmra.mrb[0].mxu0 %v1312
  %v1728 = vpop.f32.mrb[0].mxu0
  %v1729 = vadd.f32 %v1364, %v1728
  %v1730 = vpop.f32.mrb[0].mxu0
  %v1731 = vpop.f32.mrb[0].mxu0
  %v1732 = vadd.f32 %v1364, %v1731
  %v1733 = vpop.f32.mrb[0].mxu0
  %1734 = vmatprep.mubr.bf16.mxu0 0
  %1735 = vmatmul.mubr.bf16.gmra.mrb[0].mxu0 %v1313
  %v1736 = vpop.f32.mrb[0].mxu0
  %v1737 = vadd.f32 %v1364, %v1736
  %v1738 = vpop.f32.mrb[0].mxu0
  %v1739 = vpop.f32.mrb[0].mxu0
  %v1740 = vadd.f32 %v1364, %v1739
  %v1741 = vpop.f32.mrb[0].mxu0
  %1742 = vmatprep.mubr.bf16.mxu0 0
  %1743 = vmatmul.mubr.bf16.gmra.mrb[0].mxu0 %v1314
  %v1744 = vpop.f32.mrb[0].mxu0
  %v1745 = vadd.f32 %v1364, %v1744
  %v1746 = vpop.f32.mrb[0].mxu0
  %v1747 = vpop.f32.mrb[0].mxu0
  %v1748 = vadd.f32 %v1364, %v1747
  %v1749 = vpop.f32.mrb[0].mxu0
  %1750 = vmatprep.mubr.bf16.mxu0 0
  %1751 = vmatmul.mubr.bf16.gmra.mrb[0].mxu0 %v1315
  %v1752 = vpop.f32.mrb[0].mxu0
  %v1753 = vadd.f32 %v1364, %v1752
  %v1754 = vpop.f32.mrb[0].mxu0
  %v1755 = vpop.f32.mrb[0].mxu0
  %v1756 = vadd.f32 %v1364, %v1755
  %v1757 = vpop.f32.mrb[0].mxu0
  %1758 = vmatprep.mubr.bf16.mxu0 0
  %1759 = vmatmul.mubr.bf16.gmra.mrb[0].mxu0 %v1316
  %v1760 = vpop.f32.mrb[0].mxu0
  %v1761 = vadd.f32 %v1364, %v1760
  %v1762 = vpop.f32.mrb[0].mxu0
  %v1763 = vpop.f32.mrb[0].mxu0
  %v1764 = vadd.f32 %v1364, %v1763
  %v1765 = vpop.f32.mrb[0].mxu0
  %1766 = vmatprep.mubr.bf16.mxu0 0
  %1767 = vmatmul.mubr.bf16.gmra.mrb[0].mxu0 %v1317
  %v1768 = vpop.f32.mrb[0].mxu0
  %v1769 = vadd.f32 %v1364, %v1768
  %v1770 = vpop.f32.mrb[0].mxu0
  %v1771 = vpop.f32.mrb[0].mxu0
  %v1772 = vadd.f32 %v1364, %v1771
  %v1773 = vpop.f32.mrb[0].mxu0
  %1774 = vmatprep.mubr.bf16.mxu0 0
  %1775 = vmatmul.mubr.bf16.gmra.mrb[0].mxu0 %v1318
  %v1776 = vpop.f32.mrb[0].mxu0
  %v1777 = vadd.f32 %v1364, %v1776
  %v1778 = vpop.f32.mrb[0].mxu0
  %v1779 = vpop.f32.mrb[0].mxu0
  %v1780 = vadd.f32 %v1364, %v1779
  %v1781 = vpop.f32.mrb[0].mxu0
  %1782 = vmatprep.mubr.bf16.mxu0 0
  %1783 = vmatmul.mubr.bf16.gmra.mrb[0].mxu0 %v1319
  %v1784 = vpop.f32.mrb[0].mxu0
  %v1785 = vadd.f32 %v1364, %v1784
  %v1786 = vpop.f32.mrb[0].mxu0
  %v1787 = vpop.f32.mrb[0].mxu0
  %v1788 = vadd.f32 %v1364, %v1787
  %v1789 = vpop.f32.mrb[0].mxu0
  %1790 = vmatprep.mubr.bf16.mxu0 0
  %1791 = vmatmul.mubr.bf16.gmra.mrb[0].mxu0 %v1320
  %v1792 = vpop.f32.mrb[0].mxu0
  %v1793 = vadd.f32 %v1364, %v1792
  %v1794 = vpop.f32.mrb[0].mxu0
  %v1795 = vpop.f32.mrb[0].mxu0
  %v1796 = vadd.f32 %v1364, %v1795
  %v1797 = vpop.f32.mrb[0].mxu0
  %1798 = vmatprep.mubr.bf16.mxu0 0
  %1799 = vmatmul.mubr.bf16.gmra.mrb[0].mxu0 %v1321
  %v1800 = vpop.f32.mrb[0].mxu0
  %v1801 = vadd.f32 %v1364, %v1800
  %v1802 = vpop.f32.mrb[0].mxu0
  %v1803 = vpop.f32.mrb[0].mxu0
  %v1804 = vadd.f32 %v1364, %v1803
  %v1805 = vpop.f32.mrb[0].mxu0
  %1806 = vmatprep.mubr.bf16.mxu0 0
  %1807 = vmatmul.mubr.bf16.gmra.mrb[0].mxu0 %v1322
  %v1808 = vpop.f32.mrb[0].mxu0
  %v1809 = vadd.f32 %v1364, %v1808
  %v1810 = vpop.f32.mrb[0].mxu0
  %v1811 = vpop.f32.mrb[0].mxu0
  %v1812 = vadd.f32 %v1364, %v1811
  %v1813 = vpop.f32.mrb[0].mxu0
  %1814 = vmatprep.mubr.bf16.mxu0 0
  %1815 = vmatmul.mubr.bf16.gmra.mrb[0].mxu0 %v1323
  %v1816 = vpop.f32.mrb[0].mxu0
  %v1817 = vadd.f32 %v1364, %v1816
  %v1818 = vpop.f32.mrb[0].mxu0
  %v1819 = vpop.f32.mrb[0].mxu0
  %v1820 = vadd.f32 %v1364, %v1819
  %v1821 = vpop.f32.mrb[0].mxu0
  %1822 = vmatprep.mubr.bf16.mxu0 0
  %1823 = vmatmul.mubr.bf16.gmra.mrb[0].mxu0 %v1324
  %v1824 = vpop.f32.mrb[0].mxu0
  %v1825 = vadd.f32 %v1364, %v1824
  %v1826 = vpop.f32.mrb[0].mxu0
  %v1827 = vpop.f32.mrb[0].mxu0
  %v1828 = vadd.f32 %v1364, %v1827
  %v1829 = vpop.f32.mrb[0].mxu0
  %1830 = vmatprep.mubr.bf16.mxu0 0
  %1831 = vmatmul.mubr.bf16.gmra.mrb[0].mxu0 %v1325
  %v1832 = vpop.f32.mrb[0].mxu0
  %v1833 = vadd.f32 %v1364, %v1832
  %v1834 = vpop.f32.mrb[0].mxu0
  %v1835 = vpop.f32.mrb[0].mxu0
  %v1836 = vadd.f32 %v1364, %v1835
  %v1837 = vpop.f32.mrb[0].mxu0
  %1838 = vmatprep.mubr.bf16.mxu0 0
  %1839 = vmatmul.mubr.bf16.gmra.mrb[0].mxu0 %v1326
  %v1840 = vpop.f32.mrb[0].mxu0
  %v1841 = vadd.f32 %v1364, %v1840
  %v1842 = vpop.f32.mrb[0].mxu0
  %v1843 = vpop.f32.mrb[0].mxu0
  %v1844 = vadd.f32 %v1364, %v1843
  %v1845 = vpop.f32.mrb[0].mxu0
  %1846 = vmatprep.mubr.bf16.mxu0 0
  %1847 = vmatmul.mubr.bf16.gmra.mrb[0].mxu0 %v1327
  %v1848 = vpop.f32.mrb[0].mxu0
  %v1849 = vadd.f32 %v1364, %v1848
  %v1850 = vpop.f32.mrb[0].mxu0
  %v1851 = vpop.f32.mrb[0].mxu0
  %v1852 = vadd.f32 %v1364, %v1851
  %v1853 = vpop.f32.mrb[0].mxu0
  %1854 = vmatprep.mubr.bf16.mxu0 0
  %1855 = vmatmul.mubr.bf16.gmra.mrb[0].mxu0 %v1328
  %v1856 = vpop.f32.mrb[0].mxu0
  %v1857 = vadd.f32 %v1364, %v1856
  %v1858 = vpop.f32.mrb[0].mxu0
  %v1859 = vpop.f32.mrb[0].mxu0
  %v1860 = vadd.f32 %v1364, %v1859
  %v1861 = vpop.f32.mrb[0].mxu0
  %1862 = vmatprep.mubr.bf16.mxu0 0
  %1863 = vmatmul.mubr.bf16.gmra.mrb[0].mxu0 %v1329
  %v1864 = vpop.f32.mrb[0].mxu0
  %v1865 = vadd.f32 %v1364, %v1864
  %v1866 = vpop.f32.mrb[0].mxu0
  %v1867 = vpop.f32.mrb[0].mxu0
  %v1868 = vadd.f32 %v1364, %v1867
  %v1869 = vpop.f32.mrb[0].mxu0
  %1870 = vmatprep.mubr.bf16.mxu0 0
  %1871 = vmatmul.mubr.bf16.gmra.mrb[0].mxu0 %v1330
  %v1872 = vpop.f32.mrb[0].mxu0
  %v1873 = vadd.f32 %v1364, %v1872
  %v1874 = vpop.f32.mrb[0].mxu0
  %v1875 = vpop.f32.mrb[0].mxu0
  %v1876 = vadd.f32 %v1364, %v1875
  %v1877 = vpop.f32.mrb[0].mxu0
  %1878 = vmatprep.mubr.bf16.mxu0 0
  %1879 = vmatmul.mubr.bf16.gmra.mrb[0].mxu0 %v1331
  %v1880 = vpop.f32.mrb[0].mxu0
  %v1881 = vadd.f32 %v1364, %v1880
  %v1882 = vpop.f32.mrb[0].mxu0
  %v1883 = vpop.f32.mrb[0].mxu0
  %v1884 = vadd.f32 %v1364, %v1883
  %v1885 = vpop.f32.mrb[0].mxu0
  %1886 = vmatprep.mubr.bf16.mxu0 0
  %1887 = vmatmul.mubr.bf16.gmra.mrb[0].mxu0 %v1332
  %v1888 = vpop.f32.mrb[0].mxu0
  %v1889 = vadd.f32 %v1364, %v1888
  %v1890 = vpop.f32.mrb[0].mxu0
  %v1891 = vpop.f32.mrb[0].mxu0
  %v1892 = vadd.f32 %v1364, %v1891
  %v1893 = vpop.f32.mrb[0].mxu0
  %1894 = vmatprep.mubr.bf16.mxu0 0
  %1895 = vmatmul.mubr.bf16.gmra.mrb[0].mxu0 %v1333
  %v1896 = vpop.f32.mrb[0].mxu0
  %v1897 = vadd.f32 %v1364, %v1896
  %v1898 = vpop.f32.mrb[0].mxu0
  %v1899 = vpop.f32.mrb[0].mxu0
  %v1900 = vadd.f32 %v1364, %v1899
  %v1901 = vpop.f32.mrb[0].mxu0
  %1902 = vmatprep.mubr.bf16.mxu0 0
  %1903 = vmatmul.mubr.bf16.gmra.mrb[0].mxu0 %v1334
  %v1904 = vpop.f32.mrb[0].mxu0
  %v1905 = vadd.f32 %v1364, %v1904
  %v1906 = vpop.f32.mrb[0].mxu0
  %v1907 = vpop.f32.mrb[0].mxu0
  %v1908 = vadd.f32 %v1364, %v1907
  %v1909 = vpop.f32.mrb[0].mxu0
  %1910 = vmatprep.mubr.bf16.mxu0 0
  %1911 = vmatmul.mubr.bf16.gmra.mrb[0].mxu0 %v1335
  %v1912 = vpop.f32.mrb[0].mxu0
  %v1913 = vadd.f32 %v1364, %v1912
  %v1914 = vpop.f32.mrb[0].mxu0
  %v1915 = vpop.f32.mrb[0].mxu0
  %v1916 = vadd.f32 %v1364, %v1915
  %v1917 = vpop.f32.mrb[0].mxu0
  %1918 = vmatprep.mubr.bf16.mxu0 0
  %1919 = vmatmul.mubr.bf16.gmra.mrb[0].mxu0 %v1336
  %v1920 = vpop.f32.mrb[0].mxu0
  %v1921 = vadd.f32 %v1364, %v1920
  %v1922 = vpop.f32.mrb[0].mxu0
  %v1923 = vpop.f32.mrb[0].mxu0
  %v1924 = vadd.f32 %v1364, %v1923
  %v1925 = vpop.f32.mrb[0].mxu0
  %1926 = vmatprep.mubr.bf16.mxu0 0
  %1927 = vmatmul.mubr.bf16.gmra.mrb[0].mxu0 %v1337
  %v1928 = vpop.f32.mrb[0].mxu0
  %v1929 = vadd.f32 %v1364, %v1928
  %v1930 = vpop.f32.mrb[0].mxu0
  %v1931 = vpop.f32.mrb[0].mxu0
  %v1932 = vadd.f32 %v1364, %v1931
  %v1933 = vpop.f32.mrb[0].mxu0
  %1934 = vmatprep.mubr.bf16.mxu0 0
  %1935 = vmatmul.mubr.bf16.gmra.mrb[0].mxu0 %v1338
  %v1936 = vpop.f32.mrb[0].mxu0
  %v1937 = vadd.f32 %v1364, %v1936
  %v1938 = vpop.f32.mrb[0].mxu0
  %v1939 = vpop.f32.mrb[0].mxu0
  %v1940 = vadd.f32 %v1364, %v1939
  %v1941 = vpop.f32.mrb[0].mxu0
  %1942 = vmatprep.mubr.bf16.mxu0 0
  %1943 = vmatmul.mubr.bf16.gmra.mrb[0].mxu0 %v1339
  %v1944 = vpop.f32.mrb[0].mxu0
  %v1945 = vadd.f32 %v1364, %v1944
  %v1946 = vpop.f32.mrb[0].mxu0
  %v1947 = vpop.f32.mrb[0].mxu0
  %v1948 = vadd.f32 %v1364, %v1947
  %v1949 = vpop.f32.mrb[0].mxu0
  %1950 = vmatprep.mubr.bf16.mxu0 0
  %1951 = vmatmul.mubr.bf16.gmra.mrb[0].mxu0 %v1340
  %v1952 = vpop.f32.mrb[0].mxu0
  %v1953 = vadd.f32 %v1364, %v1952
  %v1954 = vpop.f32.mrb[0].mxu0
  %v1955 = vpop.f32.mrb[0].mxu0
  %v1956 = vadd.f32 %v1364, %v1955
  %v1957 = vpop.f32.mrb[0].mxu0
  %1958 = vdwg.mxu0
  %v1959 = vmax.f32 %v1449, 0.0
  %v1960 = vmax.f32 %v1452, 0.0
  %v1961 = vmax.f32 %v1457, 0.0
  %v1962 = vmax.f32 %v1460, 0.0
  %v1963 = vmax.f32 %v1465, 0.0
  %v1964 = vmax.f32 %v1468, 0.0
  %v1965 = vmax.f32 %v1473, 0.0
  %v1966 = vmax.f32 %v1476, 0.0
  %v1967 = vmax.f32 %v1481, 0.0
  %v1968 = vmax.f32 %v1484, 0.0
  %v1969 = vmax.f32 %v1489, 0.0
  %v1970 = vmax.f32 %v1492, 0.0
  %v1971 = vmax.f32 %v1497, 0.0
  %v1972 = vmax.f32 %v1500, 0.0
  %v1973 = vmax.f32 %v1505, 0.0
  %v1974 = vmax.f32 %v1508, 0.0
  %v1975 = vmax.f32 %v1513, 0.0
  %v1976 = vmax.f32 %v1516, 0.0
  %v1977 = vmax.f32 %v1521, 0.0
  %v1978 = vmax.f32 %v1524, 0.0
  %v1979 = vmax.f32 %v1529, 0.0
  %v1980 = vmax.f32 %v1532, 0.0
  %v1981 = vmax.f32 %v1537, 0.0
  %v1982 = vmax.f32 %v1540, 0.0
  %v1983 = vmax.f32 %v1545, 0.0
  %v1984 = vmax.f32 %v1548, 0.0
  %v1985 = vmax.f32 %v1553, 0.0
  %v1986 = vmax.f32 %v1556, 0.0
  %v1987 = vmax.f32 %v1561, 0.0
  %v1988 = vmax.f32 %v1564, 0.0
  %v1989 = vmax.f32 %v1569, 0.0
  %v1990 = vmax.f32 %v1572, 0.0
  %v1991 = vmax.f32 %v1577, 0.0
  %v1992 = vmax.f32 %v1580, 0.0
  %v1993 = vmax.f32 %v1585, 0.0
  %v1994 = vmax.f32 %v1588, 0.0
  %v1995 = vmax.f32 %v1593, 0.0
  %v1996 = vmax.f32 %v1596, 0.0
  %v1997 = vmax.f32 %v1601, 0.0
  %v1998 = vmax.f32 %v1604, 0.0
  %v1999 = vmax.f32 %v1609, 0.0
  %v2000 = vmax.f32 %v1612, 0.0
  %v2001 = vmax.f32 %v1617, 0.0
  %v2002 = vmax.f32 %v1620, 0.0
  %v2003 = vmax.f32 %v1625, 0.0
  %v2004 = vmax.f32 %v1628, 0.0
  %v2005 = vmax.f32 %v1633, 0.0
  %v2006 = vmax.f32 %v1636, 0.0
  %v2007 = vmax.f32 %v1641, 0.0
  %v2008 = vmax.f32 %v1644, 0.0
  %v2009 = vmax.f32 %v1649, 0.0
  %v2010 = vmax.f32 %v1652, 0.0
  %v2011 = vmax.f32 %v1657, 0.0
  %v2012 = vmax.f32 %v1660, 0.0
  %v2013 = vmax.f32 %v1665, 0.0
  %v2014 = vmax.f32 %v1668, 0.0
  %v2015 = vmax.f32 %v1673, 0.0
  %v2016 = vmax.f32 %v1676, 0.0
  %v2017 = vmax.f32 %v1681, 0.0
  %v2018 = vmax.f32 %v1684, 0.0
  %v2019 = vmax.f32 %v1689, 0.0
  %v2020 = vmax.f32 %v1692, 0.0
  %v2021 = vmax.f32 %v1697, 0.0
  %v2022 = vmax.f32 %v1700, 0.0
  %v2023 = vmax.f32 %v1705, 0.0
  %v2024 = vmax.f32 %v1708, 0.0
  %v2025 = vmax.f32 %v1713, 0.0
  %v2026 = vmax.f32 %v1716, 0.0
  %v2027 = vmax.f32 %v1721, 0.0
  %v2028 = vmax.f32 %v1724, 0.0
  %v2029 = vmax.f32 %v1729, 0.0
  %v2030 = vmax.f32 %v1732, 0.0
  %v2031 = vmax.f32 %v1737, 0.0
  %v2032 = vmax.f32 %v1740, 0.0
  %v2033 = vmax.f32 %v1745, 0.0
  %v2034 = vmax.f32 %v1748, 0.0
  %v2035 = vmax.f32 %v1753, 0.0
  %v2036 = vmax.f32 %v1756, 0.0
  %v2037 = vmax.f32 %v1761, 0.0
  %v2038 = vmax.f32 %v1764, 0.0
  %v2039 = vmax.f32 %v1769, 0.0
  %v2040 = vmax.f32 %v1772, 0.0
  %v2041 = vmax.f32 %v1777, 0.0
  %v2042 = vmax.f32 %v1780, 0.0
  %v2043 = vmax.f32 %v1785, 0.0
  %v2044 = vmax.f32 %v1788, 0.0
  %v2045 = vmax.f32 %v1793, 0.0
  %v2046 = vmax.f32 %v1796, 0.0
  %v2047 = vmax.f32 %v1801, 0.0
  %v2048 = vmax.f32 %v1804, 0.0
  %v2049 = vmax.f32 %v1809, 0.0
  %v2050 = vmax.f32 %v1812, 0.0
  %v2051 = vmax.f32 %v1817, 0.0
  %v2052 = vmax.f32 %v1820, 0.0
  %v2053 = vmax.f32 %v1825, 0.0
  %v2054 = vmax.f32 %v1828, 0.0
  %v2055 = vmax.f32 %v1833, 0.0
  %v2056 = vmax.f32 %v1836, 0.0
  %v2057 = vmax.f32 %v1841, 0.0
  %v2058 = vmax.f32 %v1844, 0.0
  %v2059 = vmax.f32 %v1849, 0.0
  %v2060 = vmax.f32 %v1852, 0.0
  %v2061 = vmax.f32 %v1857, 0.0
  %v2062 = vmax.f32 %v1860, 0.0
  %v2063 = vmax.f32 %v1865, 0.0
  %v2064 = vmax.f32 %v1868, 0.0
  %v2065 = vmax.f32 %v1873, 0.0
  %v2066 = vmax.f32 %v1876, 0.0
  %v2067 = vmax.f32 %v1881, 0.0
  %v2068 = vmax.f32 %v1884, 0.0
  %v2069 = vmax.f32 %v1889, 0.0
  %v2070 = vmax.f32 %v1892, 0.0
  %v2071 = vmax.f32 %v1897, 0.0
  %v2072 = vmax.f32 %v1900, 0.0
  %v2073 = vmax.f32 %v1905, 0.0
  %v2074 = vmax.f32 %v1908, 0.0
  %v2075 = vmax.f32 %v1913, 0.0
  %v2076 = vmax.f32 %v1916, 0.0
  %v2077 = vmax.f32 %v1921, 0.0
  %v2078 = vmax.f32 %v1924, 0.0
  %v2079 = vmax.f32 %v1929, 0.0
  %v2080 = vmax.f32 %v1932, 0.0
  %v2081 = vmax.f32 %v1937, 0.0
  %v2082 = vmax.f32 %v1940, 0.0
  %v2083 = vmax.f32 %v1945, 0.0
  %v2084 = vmax.f32 %v1948, 0.0
  %v2085 = vmax.f32 %v1953, 0.0
  %v2086 = vmax.f32 %v1956, 0.0
  %v2087 = vpack.c.bf16 %v1960, %v1959
  %v2088 = vpack.c.bf16 %v1962, %v1961
  %v2089 = vpack.c.bf16 %v1964, %v1963
  %v2090 = vpack.c.bf16 %v1966, %v1965
  %v2091 = vpack.c.bf16 %v1968, %v1967
  %v2092 = vpack.c.bf16 %v1970, %v1969
  %v2093 = vpack.c.bf16 %v1972, %v1971
  %v2094 = vpack.c.bf16 %v1974, %v1973
  %v2095 = vpack.c.bf16 %v1976, %v1975
  %v2096 = vpack.c.bf16 %v1978, %v1977
  %v2097 = vpack.c.bf16 %v1980, %v1979
  %v2098 = vpack.c.bf16 %v1982, %v1981
  %v2099 = vpack.c.bf16 %v1984, %v1983
  %v2100 = vpack.c.bf16 %v1986, %v1985
  %v2101 = vpack.c.bf16 %v1988, %v1987
  %v2102 = vpack.c.bf16 %v1990, %v1989
  %v2103 = vpack.c.bf16 %v1992, %v1991
  %v2104 = vpack.c.bf16 %v1994, %v1993
  %v2105 = vpack.c.bf16 %v1996, %v1995
  %v2106 = vpack.c.bf16 %v1998, %v1997
  %v2107 = vpack.c.bf16 %v2000, %v1999
  %v2108 = vpack.c.bf16 %v2002, %v2001
  %v2109 = vpack.c.bf16 %v2004, %v2003
  %v2110 = vpack.c.bf16 %v2006, %v2005
  %v2111 = vpack.c.bf16 %v2008, %v2007
  %v2112 = vpack.c.bf16 %v2010, %v2009
  %v2113 = vpack.c.bf16 %v2012, %v2011
  %v2114 = vpack.c.bf16 %v2014, %v2013
  %v2115 = vpack.c.bf16 %v2016, %v2015
  %v2116 = vpack.c.bf16 %v2018, %v2017
  %v2117 = vpack.c.bf16 %v2020, %v2019
  %v2118 = vpack.c.bf16 %v2022, %v2021
  %v2119 = vpack.c.bf16 %v2024, %v2023
  %v2120 = vpack.c.bf16 %v2026, %v2025
  %v2121 = vpack.c.bf16 %v2028, %v2027
  %v2122 = vpack.c.bf16 %v2030, %v2029
  %v2123 = vpack.c.bf16 %v2032, %v2031
  %v2124 = vpack.c.bf16 %v2034, %v2033
  %v2125 = vpack.c.bf16 %v2036, %v2035
  %v2126 = vpack.c.bf16 %v2038, %v2037
  %v2127 = vpack.c.bf16 %v2040, %v2039
  %v2128 = vpack.c.bf16 %v2042, %v2041
  %v2129 = vpack.c.bf16 %v2044, %v2043
  %v2130 = vpack.c.bf16 %v2046, %v2045
  %v2131 = vpack.c.bf16 %v2048, %v2047
  %v2132 = vpack.c.bf16 %v2050, %v2049
  %v2133 = vpack.c.bf16 %v2052, %v2051
  %v2134 = vpack.c.bf16 %v2054, %v2053
  %v2135 = vpack.c.bf16 %v2056, %v2055
  %v2136 = vpack.c.bf16 %v2058, %v2057
  %v2137 = vpack.c.bf16 %v2060, %v2059
  %v2138 = vpack.c.bf16 %v2062, %v2061
  %v2139 = vpack.c.bf16 %v2064, %v2063
  %v2140 = vpack.c.bf16 %v2066, %v2065
  %v2141 = vpack.c.bf16 %v2068, %v2067
  %v2142 = vpack.c.bf16 %v2070, %v2069
  %v2143 = vpack.c.bf16 %v2072, %v2071
  %v2144 = vpack.c.bf16 %v2074, %v2073
  %v2145 = vpack.c.bf16 %v2076, %v2075
  %v2146 = vpack.c.bf16 %v2078, %v2077
  %v2147 = vpack.c.bf16 %v2080, %v2079
  %v2148 = vpack.c.bf16 %v2082, %v2081
  %v2149 = vpack.c.bf16 %v2084, %v2083
  %v2150 = vpack.c.bf16 %v2086, %v2085
  %s2151 = scalar_lea.vmem %s1, 128
  %v2152 = vld [vmem:[%s2151] sm:$0xf]
  %v2153 = vld [vmem:[%s2151 + $0x4] sm:$0xf]
  %v2154 = vld [vmem:[%s2151 + $0x8] sm:$0xf]
  %v2155 = vld [vmem:[%s2151 + $0xc] sm:$0xf]
  %v2156 = vld [vmem:[%s2151 + $0x10] sm:$0xf]
  %v2157 = vld [vmem:[%s2151 + $0x14] sm:$0xf]
  %v2158 = vld [vmem:[%s2151 + $0x18] sm:$0xf]
  %v2159 = vld [vmem:[%s2151 + $0x1c] sm:$0xf]
  %v2160 = vld [vmem:[%s2151 + $0x20] sm:$0xf]
  %v2161 = vld [vmem:[%s2151 + $0x24] sm:$0xf]
  %v2162 = vld [vmem:[%s2151 + $0x28] sm:$0xf]
  %v2163 = vld [vmem:[%s2151 + $0x2c] sm:$0xf]
  %v2164 = vld [vmem:[%s2151 + $0x30] sm:$0xf]
  %v2165 = vld [vmem:[%s2151 + $0x34] sm:$0xf]
  %v2166 = vld [vmem:[%s2151 + $0x38] sm:$0xf]
  %v2167 = vld [vmem:[%s2151 + $0x3c] sm:$0xf]
  %s2168 = scalar_lea.vmem %s2, 2
  %v2169 = vld [vmem:[%s2168] sm:$0x1]
  %v2171 = vlaneseq
  %v2172 = vshrl.u32 %v2171, 7
  %v2173 = vsub.s32 0, %v2172
  %v2174 = vrot.slane %v2169, %v2173
  %v2192 = vunpack.c.l.b16 %v2152
  %v2193 = vunpack.c.l.b16 %v2153
  %v2194 = vunpack.c.l.b16 %v2154
  %v2195 = vunpack.c.l.b16 %v2155
  %v2196 = vunpack.c.l.b16 %v2156
  %v2197 = vunpack.c.l.b16 %v2157
  %v2198 = vunpack.c.l.b16 %v2158
  %v2199 = vunpack.c.l.b16 %v2159
  %v2200 = vunpack.c.l.b16 %v2160
  %v2201 = vunpack.c.l.b16 %v2161
  %v2202 = vunpack.c.l.b16 %v2162
  %v2203 = vunpack.c.l.b16 %v2163
  %v2204 = vunpack.c.l.b16 %v2164
  %v2205 = vunpack.c.l.b16 %v2165
  %v2206 = vunpack.c.l.b16 %v2166
  %v2207 = vunpack.c.l.b16 %v2167
  %v2208 = vpack.c.b16 %v2193, %v2192
  %v2209 = vpack.c.b16 %v2195, %v2194
  %v2210 = vpack.c.b16 %v2197, %v2196
  %v2211 = vpack.c.b16 %v2199, %v2198
  %v2212 = vpack.c.b16 %v2201, %v2200
  %v2213 = vpack.c.b16 %v2203, %v2202
  %v2214 = vpack.c.b16 %v2205, %v2204
  %v2215 = vpack.c.b16 %v2207, %v2206
  %2224 = vmatprep.subr.bf16.mxu0 0
  %2225 = vmatpush1.bf16.msra.mxu0 %v2208
  %2226 = vmatprep.subr.bf16.mxu0 0
  %2227 = vmatpush1.bf16.msra.mxu0 %v2209
  %2228 = vmatprep.subr.bf16.mxu0 0
  %2229 = vmatpush1.bf16.msra.mxu0 %v2210
  %2230 = vmatprep.subr.bf16.mxu0 0
  %2231 = vmatpush1.bf16.msra.mxu0 %v2211
  %2232 = vmatprep.subr.bf16.mxu0 0
  %2233 = vmatpush1.bf16.msra.mxu0 %v2212
  %2234 = vmatprep.subr.bf16.mxu0 0
  %2235 = vmatpush1.bf16.msra.mxu0 %v2213
  %2236 = vmatprep.subr.bf16.mxu0 0
  %2237 = vmatpush1.bf16.msra.mxu0 %v2214
  %2238 = vmatprep.subr.bf16.mxu0 0
  %2239 = vmatpush1.bf16.msra.mxu0 %v2215
  %2240 = vmatprep.subr.bf16.mxu0 0
  %2241 = vmatpush1.bf16.msra.mxu0 0
  %2242 = vmatprep.subr.bf16.mxu0 0
  %2243 = vmatpush1.bf16.msra.mxu0 0
  %2244 = vmatprep.subr.bf16.mxu0 0
  %2245 = vmatpush1.bf16.msra.mxu0 0
  %2246 = vmatprep.subr.bf16.mxu0 0
  %2247 = vmatpush1.bf16.msra.mxu0 0
  %2248 = vmatprep.subr.bf16.mxu0 0
  %2249 = vmatpush1.bf16.msra.mxu0 0
  %2250 = vmatprep.subr.bf16.mxu0 0
  %2251 = vmatpush1.bf16.msra.mxu0 0
  %2252 = vmatprep.subr.bf16.mxu0 0
  %2253 = vmatpush1.bf16.msra.mxu0 0
  %2254 = vmatprep.subr.bf16.mxu0 0
  %2255 = vmatpush1.bf16.msra.mxu0 0
  %2256 = vmatprep.mubr.bf16.mxu0 0
  %2257 = vmatmul.mubr.bf16.gmra.mrb[0].mxu0 %v2087
  %v2258 = vpop.f32.mrb[0].mxu0
  %v2259 = vadd.f32 %v2174, %v2258
  %v2260 = vpop.f32.mrb[0].mxu0
  %v2261 = vpop.f32.mrb[0].mxu0
  %v2262 = vadd.f32 %v2174, %v2261
  %v2263 = vpop.f32.mrb[0].mxu0
  %2264 = vmatprep.mubr.bf16.mxu0 0
  %2265 = vmatmul.mubr.bf16.gmra.mrb[0].mxu0 %v2088
  %v2266 = vpop.f32.mrb[0].mxu0
  %v2267 = vadd.f32 %v2174, %v2266
  %v2268 = vpop.f32.mrb[0].mxu0
  %v2269 = vpop.f32.mrb[0].mxu0
  %v2270 = vadd.f32 %v2174, %v2269
  %v2271 = vpop.f32.mrb[0].mxu0
  %2272 = vmatprep.mubr.bf16.mxu0 0
  %2273 = vmatmul.mubr.bf16.gmra.mrb[0].mxu0 %v2089
  %v2274 = vpop.f32.mrb[0].mxu0
  %v2275 = vadd.f32 %v2174, %v2274
  %v2276 = vpop.f32.mrb[0].mxu0
  %v2277 = vpop.f32.mrb[0].mxu0
  %v2278 = vadd.f32 %v2174, %v2277
  %v2279 = vpop.f32.mrb[0].mxu0
  %2280 = vmatprep.mubr.bf16.mxu0 0
  %2281 = vmatmul.mubr.bf16.gmra.mrb[0].mxu0 %v2090
  %v2282 = vpop.f32.mrb[0].mxu0
  %v2283 = vadd.f32 %v2174, %v2282
  %v2284 = vpop.f32.mrb[0].mxu0
  %v2285 = vpop.f32.mrb[0].mxu0
  %v2286 = vadd.f32 %v2174, %v2285
  %v2287 = vpop.f32.mrb[0].mxu0
  %2288 = vmatprep.mubr.bf16.mxu0 0
  %2289 = vmatmul.mubr.bf16.gmra.mrb[0].mxu0 %v2091
  %v2290 = vpop.f32.mrb[0].mxu0
  %v2291 = vadd.f32 %v2174, %v2290
  %v2292 = vpop.f32.mrb[0].mxu0
  %v2293 = vpop.f32.mrb[0].mxu0
  %v2294 = vadd.f32 %v2174, %v2293
  %v2295 = vpop.f32.mrb[0].mxu0
  %2296 = vmatprep.mubr.bf16.mxu0 0
  %2297 = vmatmul.mubr.bf16.gmra.mrb[0].mxu0 %v2092
  %v2298 = vpop.f32.mrb[0].mxu0
  %v2299 = vadd.f32 %v2174, %v2298
  %v2300 = vpop.f32.mrb[0].mxu0
  %v2301 = vpop.f32.mrb[0].mxu0
  %v2302 = vadd.f32 %v2174, %v2301
  %v2303 = vpop.f32.mrb[0].mxu0
  %2304 = vmatprep.mubr.bf16.mxu0 0
  %2305 = vmatmul.mubr.bf16.gmra.mrb[0].mxu0 %v2093
  %v2306 = vpop.f32.mrb[0].mxu0
  %v2307 = vadd.f32 %v2174, %v2306
  %v2308 = vpop.f32.mrb[0].mxu0
  %v2309 = vpop.f32.mrb[0].mxu0
  %v2310 = vadd.f32 %v2174, %v2309
  %v2311 = vpop.f32.mrb[0].mxu0
  %2312 = vmatprep.mubr.bf16.mxu0 0
  %2313 = vmatmul.mubr.bf16.gmra.mrb[0].mxu0 %v2094
  %v2314 = vpop.f32.mrb[0].mxu0
  %v2315 = vadd.f32 %v2174, %v2314
  %v2316 = vpop.f32.mrb[0].mxu0
  %v2317 = vpop.f32.mrb[0].mxu0
  %v2318 = vadd.f32 %v2174, %v2317
  %v2319 = vpop.f32.mrb[0].mxu0
  %2320 = vmatprep.mubr.bf16.mxu0 0
  %2321 = vmatmul.mubr.bf16.gmra.mrb[0].mxu0 %v2095
  %v2322 = vpop.f32.mrb[0].mxu0
  %v2323 = vadd.f32 %v2174, %v2322
  %v2324 = vpop.f32.mrb[0].mxu0
  %v2325 = vpop.f32.mrb[0].mxu0
  %v2326 = vadd.f32 %v2174, %v2325
  %v2327 = vpop.f32.mrb[0].mxu0
  %2328 = vmatprep.mubr.bf16.mxu0 0
  %2329 = vmatmul.mubr.bf16.gmra.mrb[0].mxu0 %v2096
  %v2330 = vpop.f32.mrb[0].mxu0
  %v2331 = vadd.f32 %v2174, %v2330
  %v2332 = vpop.f32.mrb[0].mxu0
  %v2333 = vpop.f32.mrb[0].mxu0
  %v2334 = vadd.f32 %v2174, %v2333
  %v2335 = vpop.f32.mrb[0].mxu0
  %2336 = vmatprep.mubr.bf16.mxu0 0
  %2337 = vmatmul.mubr.bf16.gmra.mrb[0].mxu0 %v2097
  %v2338 = vpop.f32.mrb[0].mxu0
  %v2339 = vadd.f32 %v2174, %v2338
  %v2340 = vpop.f32.mrb[0].mxu0
  %v2341 = vpop.f32.mrb[0].mxu0
  %v2342 = vadd.f32 %v2174, %v2341
  %v2343 = vpop.f32.mrb[0].mxu0
  %2344 = vmatprep.mubr.bf16.mxu0 0
  %2345 = vmatmul.mubr.bf16.gmra.mrb[0].mxu0 %v2098
  %v2346 = vpop.f32.mrb[0].mxu0
  %v2347 = vadd.f32 %v2174, %v2346
  %v2348 = vpop.f32.mrb[0].mxu0
  %v2349 = vpop.f32.mrb[0].mxu0
  %v2350 = vadd.f32 %v2174, %v2349
  %v2351 = vpop.f32.mrb[0].mxu0
  %2352 = vmatprep.mubr.bf16.mxu0 0
  %2353 = vmatmul.mubr.bf16.gmra.mrb[0].mxu0 %v2099
  %v2354 = vpop.f32.mrb[0].mxu0
  %v2355 = vadd.f32 %v2174, %v2354
  %v2356 = vpop.f32.mrb[0].mxu0
  %v2357 = vpop.f32.mrb[0].mxu0
  %v2358 = vadd.f32 %v2174, %v2357
  %v2359 = vpop.f32.mrb[0].mxu0
  %2360 = vmatprep.mubr.bf16.mxu0 0
  %2361 = vmatmul.mubr.bf16.gmra.mrb[0].mxu0 %v2100
  %v2362 = vpop.f32.mrb[0].mxu0
  %v2363 = vadd.f32 %v2174, %v2362
  %v2364 = vpop.f32.mrb[0].mxu0
  %v2365 = vpop.f32.mrb[0].mxu0
  %v2366 = vadd.f32 %v2174, %v2365
  %v2367 = vpop.f32.mrb[0].mxu0
  %2368 = vmatprep.mubr.bf16.mxu0 0
  %2369 = vmatmul.mubr.bf16.gmra.mrb[0].mxu0 %v2101
  %v2370 = vpop.f32.mrb[0].mxu0
  %v2371 = vadd.f32 %v2174, %v2370
  %v2372 = vpop.f32.mrb[0].mxu0
  %v2373 = vpop.f32.mrb[0].mxu0
  %v2374 = vadd.f32 %v2174, %v2373
  %v2375 = vpop.f32.mrb[0].mxu0
  %2376 = vmatprep.mubr.bf16.mxu0 0
  %2377 = vmatmul.mubr.bf16.gmra.mrb[0].mxu0 %v2102
  %v2378 = vpop.f32.mrb[0].mxu0
  %v2379 = vadd.f32 %v2174, %v2378
  %v2380 = vpop.f32.mrb[0].mxu0
  %v2381 = vpop.f32.mrb[0].mxu0
  %v2382 = vadd.f32 %v2174, %v2381
  %v2383 = vpop.f32.mrb[0].mxu0
  %2384 = vmatprep.mubr.bf16.mxu0 0
  %2385 = vmatmul.mubr.bf16.gmra.mrb[0].mxu0 %v2103
  %v2386 = vpop.f32.mrb[0].mxu0
  %v2387 = vadd.f32 %v2174, %v2386
  %v2388 = vpop.f32.mrb[0].mxu0
  %v2389 = vpop.f32.mrb[0].mxu0
  %v2390 = vadd.f32 %v2174, %v2389
  %v2391 = vpop.f32.mrb[0].mxu0
  %2392 = vmatprep.mubr.bf16.mxu0 0
  %2393 = vmatmul.mubr.bf16.gmra.mrb[0].mxu0 %v2104
  %v2394 = vpop.f32.mrb[0].mxu0
  %v2395 = vadd.f32 %v2174, %v2394
  %v2396 = vpop.f32.mrb[0].mxu0
  %v2397 = vpop.f32.mrb[0].mxu0
  %v2398 = vadd.f32 %v2174, %v2397
  %v2399 = vpop.f32.mrb[0].mxu0
  %2400 = vmatprep.mubr.bf16.mxu0 0
  %2401 = vmatmul.mubr.bf16.gmra.mrb[0].mxu0 %v2105
  %v2402 = vpop.f32.mrb[0].mxu0
  %v2403 = vadd.f32 %v2174, %v2402
  %v2404 = vpop.f32.mrb[0].mxu0
  %v2405 = vpop.f32.mrb[0].mxu0
  %v2406 = vadd.f32 %v2174, %v2405
  %v2407 = vpop.f32.mrb[0].mxu0
  %2408 = vmatprep.mubr.bf16.mxu0 0
  %2409 = vmatmul.mubr.bf16.gmra.mrb[0].mxu0 %v2106
  %v2410 = vpop.f32.mrb[0].mxu0
  %v2411 = vadd.f32 %v2174, %v2410
  %v2412 = vpop.f32.mrb[0].mxu0
  %v2413 = vpop.f32.mrb[0].mxu0
  %v2414 = vadd.f32 %v2174, %v2413
  %v2415 = vpop.f32.mrb[0].mxu0
  %2416 = vmatprep.mubr.bf16.mxu0 0
  %2417 = vmatmul.mubr.bf16.gmra.mrb[0].mxu0 %v2107
  %v2418 = vpop.f32.mrb[0].mxu0
  %v2419 = vadd.f32 %v2174, %v2418
  %v2420 = vpop.f32.mrb[0].mxu0
  %v2421 = vpop.f32.mrb[0].mxu0
  %v2422 = vadd.f32 %v2174, %v2421
  %v2423 = vpop.f32.mrb[0].mxu0
  %2424 = vmatprep.mubr.bf16.mxu0 0
  %2425 = vmatmul.mubr.bf16.gmra.mrb[0].mxu0 %v2108
  %v2426 = vpop.f32.mrb[0].mxu0
  %v2427 = vadd.f32 %v2174, %v2426
  %v2428 = vpop.f32.mrb[0].mxu0
  %v2429 = vpop.f32.mrb[0].mxu0
  %v2430 = vadd.f32 %v2174, %v2429
  %v2431 = vpop.f32.mrb[0].mxu0
  %2432 = vmatprep.mubr.bf16.mxu0 0
  %2433 = vmatmul.mubr.bf16.gmra.mrb[0].mxu0 %v2109
  %v2434 = vpop.f32.mrb[0].mxu0
  %v2435 = vadd.f32 %v2174, %v2434
  %v2436 = vpop.f32.mrb[0].mxu0
  %v2437 = vpop.f32.mrb[0].mxu0
  %v2438 = vadd.f32 %v2174, %v2437
  %v2439 = vpop.f32.mrb[0].mxu0
  %2440 = vmatprep.mubr.bf16.mxu0 0
  %2441 = vmatmul.mubr.bf16.gmra.mrb[0].mxu0 %v2110
  %v2442 = vpop.f32.mrb[0].mxu0
  %v2443 = vadd.f32 %v2174, %v2442
  %v2444 = vpop.f32.mrb[0].mxu0
  %v2445 = vpop.f32.mrb[0].mxu0
  %v2446 = vadd.f32 %v2174, %v2445
  %v2447 = vpop.f32.mrb[0].mxu0
  %2448 = vmatprep.mubr.bf16.mxu0 0
  %2449 = vmatmul.mubr.bf16.gmra.mrb[0].mxu0 %v2111
  %v2450 = vpop.f32.mrb[0].mxu0
  %v2451 = vadd.f32 %v2174, %v2450
  %v2452 = vpop.f32.mrb[0].mxu0
  %v2453 = vpop.f32.mrb[0].mxu0
  %v2454 = vadd.f32 %v2174, %v2453
  %v2455 = vpop.f32.mrb[0].mxu0
  %2456 = vmatprep.mubr.bf16.mxu0 0
  %2457 = vmatmul.mubr.bf16.gmra.mrb[0].mxu0 %v2112
  %v2458 = vpop.f32.mrb[0].mxu0
  %v2459 = vadd.f32 %v2174, %v2458
  %v2460 = vpop.f32.mrb[0].mxu0
  %v2461 = vpop.f32.mrb[0].mxu0
  %v2462 = vadd.f32 %v2174, %v2461
  %v2463 = vpop.f32.mrb[0].mxu0
  %2464 = vmatprep.mubr.bf16.mxu0 0
  %2465 = vmatmul.mubr.bf16.gmra.mrb[0].mxu0 %v2113
  %v2466 = vpop.f32.mrb[0].mxu0
  %v2467 = vadd.f32 %v2174, %v2466
  %v2468 = vpop.f32.mrb[0].mxu0
  %v2469 = vpop.f32.mrb[0].mxu0
  %v2470 = vadd.f32 %v2174, %v2469
  %v2471 = vpop.f32.mrb[0].mxu0
  %2472 = vmatprep.mubr.bf16.mxu0 0
  %2473 = vmatmul.mubr.bf16.gmra.mrb[0].mxu0 %v2114
  %v2474 = vpop.f32.mrb[0].mxu0
  %v2475 = vadd.f32 %v2174, %v2474
  %v2476 = vpop.f32.mrb[0].mxu0
  %v2477 = vpop.f32.mrb[0].mxu0
  %v2478 = vadd.f32 %v2174, %v2477
  %v2479 = vpop.f32.mrb[0].mxu0
  %2480 = vmatprep.mubr.bf16.mxu0 0
  %2481 = vmatmul.mubr.bf16.gmra.mrb[0].mxu0 %v2115
  %v2482 = vpop.f32.mrb[0].mxu0
  %v2483 = vadd.f32 %v2174, %v2482
  %v2484 = vpop.f32.mrb[0].mxu0
  %v2485 = vpop.f32.mrb[0].mxu0
  %v2486 = vadd.f32 %v2174, %v2485
  %v2487 = vpop.f32.mrb[0].mxu0
  %2488 = vmatprep.mubr.bf16.mxu0 0
  %2489 = vmatmul.mubr.bf16.gmra.mrb[0].mxu0 %v2116
  %v2490 = vpop.f32.mrb[0].mxu0
  %v2491 = vadd.f32 %v2174, %v2490
  %v2492 = vpop.f32.mrb[0].mxu0
  %v2493 = vpop.f32.mrb[0].mxu0
  %v2494 = vadd.f32 %v2174, %v2493
  %v2495 = vpop.f32.mrb[0].mxu0
  %2496 = vmatprep.mubr.bf16.mxu0 0
  %2497 = vmatmul.mubr.bf16.gmra.mrb[0].mxu0 %v2117
  %v2498 = vpop.f32.mrb[0].mxu0
  %v2499 = vadd.f32 %v2174, %v2498
  %v2500 = vpop.f32.mrb[0].mxu0
  %v2501 = vpop.f32.mrb[0].mxu0
  %v2502 = vadd.f32 %v2174, %v2501
  %v2503 = vpop.f32.mrb[0].mxu0
  %2504 = vmatprep.mubr.bf16.mxu0 0
  %2505 = vmatmul.mubr.bf16.gmra.mrb[0].mxu0 %v2118
  %v2506 = vpop.f32.mrb[0].mxu0
  %v2507 = vadd.f32 %v2174, %v2506
  %v2508 = vpop.f32.mrb[0].mxu0
  %v2509 = vpop.f32.mrb[0].mxu0
  %v2510 = vadd.f32 %v2174, %v2509
  %v2511 = vpop.f32.mrb[0].mxu0
  %2512 = vmatprep.mubr.bf16.mxu0 0
  %2513 = vmatmul.mubr.bf16.gmra.mrb[0].mxu0 %v2119
  %v2514 = vpop.f32.mrb[0].mxu0
  %v2515 = vadd.f32 %v2174, %v2514
  %v2516 = vpop.f32.mrb[0].mxu0
  %v2517 = vpop.f32.mrb[0].mxu0
  %v2518 = vadd.f32 %v2174, %v2517
  %v2519 = vpop.f32.mrb[0].mxu0
  %2520 = vmatprep.mubr.bf16.mxu0 0
  %2521 = vmatmul.mubr.bf16.gmra.mrb[0].mxu0 %v2120
  %v2522 = vpop.f32.mrb[0].mxu0
  %v2523 = vadd.f32 %v2174, %v2522
  %v2524 = vpop.f32.mrb[0].mxu0
  %v2525 = vpop.f32.mrb[0].mxu0
  %v2526 = vadd.f32 %v2174, %v2525
  %v2527 = vpop.f32.mrb[0].mxu0
  %2528 = vmatprep.mubr.bf16.mxu0 0
  %2529 = vmatmul.mubr.bf16.gmra.mrb[0].mxu0 %v2121
  %v2530 = vpop.f32.mrb[0].mxu0
  %v2531 = vadd.f32 %v2174, %v2530
  %v2532 = vpop.f32.mrb[0].mxu0
  %v2533 = vpop.f32.mrb[0].mxu0
  %v2534 = vadd.f32 %v2174, %v2533
  %v2535 = vpop.f32.mrb[0].mxu0
  %2536 = vmatprep.mubr.bf16.mxu0 0
  %2537 = vmatmul.mubr.bf16.gmra.mrb[0].mxu0 %v2122
  %v2538 = vpop.f32.mrb[0].mxu0
  %v2539 = vadd.f32 %v2174, %v2538
  %v2540 = vpop.f32.mrb[0].mxu0
  %v2541 = vpop.f32.mrb[0].mxu0
  %v2542 = vadd.f32 %v2174, %v2541
  %v2543 = vpop.f32.mrb[0].mxu0
  %2544 = vmatprep.mubr.bf16.mxu0 0
  %2545 = vmatmul.mubr.bf16.gmra.mrb[0].mxu0 %v2123
  %v2546 = vpop.f32.mrb[0].mxu0
  %v2547 = vadd.f32 %v2174, %v2546
  %v2548 = vpop.f32.mrb[0].mxu0
  %v2549 = vpop.f32.mrb[0].mxu0
  %v2550 = vadd.f32 %v2174, %v2549
  %v2551 = vpop.f32.mrb[0].mxu0
  %2552 = vmatprep.mubr.bf16.mxu0 0
  %2553 = vmatmul.mubr.bf16.gmra.mrb[0].mxu0 %v2124
  %v2554 = vpop.f32.mrb[0].mxu0
  %v2555 = vadd.f32 %v2174, %v2554
  %v2556 = vpop.f32.mrb[0].mxu0
  %v2557 = vpop.f32.mrb[0].mxu0
  %v2558 = vadd.f32 %v2174, %v2557
  %v2559 = vpop.f32.mrb[0].mxu0
  %2560 = vmatprep.mubr.bf16.mxu0 0
  %2561 = vmatmul.mubr.bf16.gmra.mrb[0].mxu0 %v2125
  %v2562 = vpop.f32.mrb[0].mxu0
  %v2563 = vadd.f32 %v2174, %v2562
  %v2564 = vpop.f32.mrb[0].mxu0
  %v2565 = vpop.f32.mrb[0].mxu0
  %v2566 = vadd.f32 %v2174, %v2565
  %v2567 = vpop.f32.mrb[0].mxu0
  %2568 = vmatprep.mubr.bf16.mxu0 0
  %2569 = vmatmul.mubr.bf16.gmra.mrb[0].mxu0 %v2126
  %v2570 = vpop.f32.mrb[0].mxu0
  %v2571 = vadd.f32 %v2174, %v2570
  %v2572 = vpop.f32.mrb[0].mxu0
  %v2573 = vpop.f32.mrb[0].mxu0
  %v2574 = vadd.f32 %v2174, %v2573
  %v2575 = vpop.f32.mrb[0].mxu0
  %2576 = vmatprep.mubr.bf16.mxu0 0
  %2577 = vmatmul.mubr.bf16.gmra.mrb[0].mxu0 %v2127
  %v2578 = vpop.f32.mrb[0].mxu0
  %v2579 = vadd.f32 %v2174, %v2578
  %v2580 = vpop.f32.mrb[0].mxu0
  %v2581 = vpop.f32.mrb[0].mxu0
  %v2582 = vadd.f32 %v2174, %v2581
  %v2583 = vpop.f32.mrb[0].mxu0
  %2584 = vmatprep.mubr.bf16.mxu0 0
  %2585 = vmatmul.mubr.bf16.gmra.mrb[0].mxu0 %v2128
  %v2586 = vpop.f32.mrb[0].mxu0
  %v2587 = vadd.f32 %v2174, %v2586
  %v2588 = vpop.f32.mrb[0].mxu0
  %v2589 = vpop.f32.mrb[0].mxu0
  %v2590 = vadd.f32 %v2174, %v2589
  %v2591 = vpop.f32.mrb[0].mxu0
  %2592 = vmatprep.mubr.bf16.mxu0 0
  %2593 = vmatmul.mubr.bf16.gmra.mrb[0].mxu0 %v2129
  %v2594 = vpop.f32.mrb[0].mxu0
  %v2595 = vadd.f32 %v2174, %v2594
  %v2596 = vpop.f32.mrb[0].mxu0
  %v2597 = vpop.f32.mrb[0].mxu0
  %v2598 = vadd.f32 %v2174, %v2597
  %v2599 = vpop.f32.mrb[0].mxu0
  %2600 = vmatprep.mubr.bf16.mxu0 0
  %2601 = vmatmul.mubr.bf16.gmra.mrb[0].mxu0 %v2130
  %v2602 = vpop.f32.mrb[0].mxu0
  %v2603 = vadd.f32 %v2174, %v2602
  %v2604 = vpop.f32.mrb[0].mxu0
  %v2605 = vpop.f32.mrb[0].mxu0
  %v2606 = vadd.f32 %v2174, %v2605
  %v2607 = vpop.f32.mrb[0].mxu0
  %2608 = vmatprep.mubr.bf16.mxu0 0
  %2609 = vmatmul.mubr.bf16.gmra.mrb[0].mxu0 %v2131
  %v2610 = vpop.f32.mrb[0].mxu0
  %v2611 = vadd.f32 %v2174, %v2610
  %v2612 = vpop.f32.mrb[0].mxu0
  %v2613 = vpop.f32.mrb[0].mxu0
  %v2614 = vadd.f32 %v2174, %v2613
  %v2615 = vpop.f32.mrb[0].mxu0
  %2616 = vmatprep.mubr.bf16.mxu0 0
  %2617 = vmatmul.mubr.bf16.gmra.mrb[0].mxu0 %v2132
  %v2618 = vpop.f32.mrb[0].mxu0
  %v2619 = vadd.f32 %v2174, %v2618
  %v2620 = vpop.f32.mrb[0].mxu0
  %v2621 = vpop.f32.mrb[0].mxu0
  %v2622 = vadd.f32 %v2174, %v2621
  %v2623 = vpop.f32.mrb[0].mxu0
  %2624 = vmatprep.mubr.bf16.mxu0 0
  %2625 = vmatmul.mubr.bf16.gmra.mrb[0].mxu0 %v2133
  %v2626 = vpop.f32.mrb[0].mxu0
  %v2627 = vadd.f32 %v2174, %v2626
  %v2628 = vpop.f32.mrb[0].mxu0
  %v2629 = vpop.f32.mrb[0].mxu0
  %v2630 = vadd.f32 %v2174, %v2629
  %v2631 = vpop.f32.mrb[0].mxu0
  %2632 = vmatprep.mubr.bf16.mxu0 0
  %2633 = vmatmul.mubr.bf16.gmra.mrb[0].mxu0 %v2134
  %v2634 = vpop.f32.mrb[0].mxu0
  %v2635 = vadd.f32 %v2174, %v2634
  %v2636 = vpop.f32.mrb[0].mxu0
  %v2637 = vpop.f32.mrb[0].mxu0
  %v2638 = vadd.f32 %v2174, %v2637
  %v2639 = vpop.f32.mrb[0].mxu0
  %2640 = vmatprep.mubr.bf16.mxu0 0
  %2641 = vmatmul.mubr.bf16.gmra.mrb[0].mxu0 %v2135
  %v2642 = vpop.f32.mrb[0].mxu0
  %v2643 = vadd.f32 %v2174, %v2642
  %v2644 = vpop.f32.mrb[0].mxu0
  %v2645 = vpop.f32.mrb[0].mxu0
  %v2646 = vadd.f32 %v2174, %v2645
  %v2647 = vpop.f32.mrb[0].mxu0
  %2648 = vmatprep.mubr.bf16.mxu0 0
  %2649 = vmatmul.mubr.bf16.gmra.mrb[0].mxu0 %v2136
  %v2650 = vpop.f32.mrb[0].mxu0
  %v2651 = vadd.f32 %v2174, %v2650
  %v2652 = vpop.f32.mrb[0].mxu0
  %v2653 = vpop.f32.mrb[0].mxu0
  %v2654 = vadd.f32 %v2174, %v2653
  %v2655 = vpop.f32.mrb[0].mxu0
  %2656 = vmatprep.mubr.bf16.mxu0 0
  %2657 = vmatmul.mubr.bf16.gmra.mrb[0].mxu0 %v2137
  %v2658 = vpop.f32.mrb[0].mxu0
  %v2659 = vadd.f32 %v2174, %v2658
  %v2660 = vpop.f32.mrb[0].mxu0
  %v2661 = vpop.f32.mrb[0].mxu0
  %v2662 = vadd.f32 %v2174, %v2661
  %v2663 = vpop.f32.mrb[0].mxu0
  %2664 = vmatprep.mubr.bf16.mxu0 0
  %2665 = vmatmul.mubr.bf16.gmra.mrb[0].mxu0 %v2138
  %v2666 = vpop.f32.mrb[0].mxu0
  %v2667 = vadd.f32 %v2174, %v2666
  %v2668 = vpop.f32.mrb[0].mxu0
  %v2669 = vpop.f32.mrb[0].mxu0
  %v2670 = vadd.f32 %v2174, %v2669
  %v2671 = vpop.f32.mrb[0].mxu0
  %2672 = vmatprep.mubr.bf16.mxu0 0
  %2673 = vmatmul.mubr.bf16.gmra.mrb[0].mxu0 %v2139
  %v2674 = vpop.f32.mrb[0].mxu0
  %v2675 = vadd.f32 %v2174, %v2674
  %v2676 = vpop.f32.mrb[0].mxu0
  %v2677 = vpop.f32.mrb[0].mxu0
  %v2678 = vadd.f32 %v2174, %v2677
  %v2679 = vpop.f32.mrb[0].mxu0
  %2680 = vmatprep.mubr.bf16.mxu0 0
  %2681 = vmatmul.mubr.bf16.gmra.mrb[0].mxu0 %v2140
  %v2682 = vpop.f32.mrb[0].mxu0
  %v2683 = vadd.f32 %v2174, %v2682
  %v2684 = vpop.f32.mrb[0].mxu0
  %v2685 = vpop.f32.mrb[0].mxu0
  %v2686 = vadd.f32 %v2174, %v2685
  %v2687 = vpop.f32.mrb[0].mxu0
  %2688 = vmatprep.mubr.bf16.mxu0 0
  %2689 = vmatmul.mubr.bf16.gmra.mrb[0].mxu0 %v2141
  %v2690 = vpop.f32.mrb[0].mxu0
  %v2691 = vadd.f32 %v2174, %v2690
  %v2692 = vpop.f32.mrb[0].mxu0
  %v2693 = vpop.f32.mrb[0].mxu0
  %v2694 = vadd.f32 %v2174, %v2693
  %v2695 = vpop.f32.mrb[0].mxu0
  %2696 = vmatprep.mubr.bf16.mxu0 0
  %2697 = vmatmul.mubr.bf16.gmra.mrb[0].mxu0 %v2142
  %v2698 = vpop.f32.mrb[0].mxu0
  %v2699 = vadd.f32 %v2174, %v2698
  %v2700 = vpop.f32.mrb[0].mxu0
  %v2701 = vpop.f32.mrb[0].mxu0
  %v2702 = vadd.f32 %v2174, %v2701
  %v2703 = vpop.f32.mrb[0].mxu0
  %2704 = vmatprep.mubr.bf16.mxu0 0
  %2705 = vmatmul.mubr.bf16.gmra.mrb[0].mxu0 %v2143
  %v2706 = vpop.f32.mrb[0].mxu0
  %v2707 = vadd.f32 %v2174, %v2706
  %v2708 = vpop.f32.mrb[0].mxu0
  %v2709 = vpop.f32.mrb[0].mxu0
  %v2710 = vadd.f32 %v2174, %v2709
  %v2711 = vpop.f32.mrb[0].mxu0
  %2712 = vmatprep.mubr.bf16.mxu0 0
  %2713 = vmatmul.mubr.bf16.gmra.mrb[0].mxu0 %v2144
  %v2714 = vpop.f32.mrb[0].mxu0
  %v2715 = vadd.f32 %v2174, %v2714
  %v2716 = vpop.f32.mrb[0].mxu0
  %v2717 = vpop.f32.mrb[0].mxu0
  %v2718 = vadd.f32 %v2174, %v2717
  %v2719 = vpop.f32.mrb[0].mxu0
  %2720 = vmatprep.mubr.bf16.mxu0 0
  %2721 = vmatmul.mubr.bf16.gmra.mrb[0].mxu0 %v2145
  %v2722 = vpop.f32.mrb[0].mxu0
  %v2723 = vadd.f32 %v2174, %v2722
  %v2724 = vpop.f32.mrb[0].mxu0
  %v2725 = vpop.f32.mrb[0].mxu0
  %v2726 = vadd.f32 %v2174, %v2725
  %v2727 = vpop.f32.mrb[0].mxu0
  %2728 = vmatprep.mubr.bf16.mxu0 0
  %2729 = vmatmul.mubr.bf16.gmra.mrb[0].mxu0 %v2146
  %v2730 = vpop.f32.mrb[0].mxu0
  %v2731 = vadd.f32 %v2174, %v2730
  %v2732 = vpop.f32.mrb[0].mxu0
  %v2733 = vpop.f32.mrb[0].mxu0
  %v2734 = vadd.f32 %v2174, %v2733
  %v2735 = vpop.f32.mrb[0].mxu0
  %2736 = vmatprep.mubr.bf16.mxu0 0
  %2737 = vmatmul.mubr.bf16.gmra.mrb[0].mxu0 %v2147
  %v2738 = vpop.f32.mrb[0].mxu0
  %v2739 = vadd.f32 %v2174, %v2738
  %v2740 = vpop.f32.mrb[0].mxu0
  %v2741 = vpop.f32.mrb[0].mxu0
  %v2742 = vadd.f32 %v2174, %v2741
  %v2743 = vpop.f32.mrb[0].mxu0
  %2744 = vmatprep.mubr.bf16.mxu0 0
  %2745 = vmatmul.mubr.bf16.gmra.mrb[0].mxu0 %v2148
  %v2746 = vpop.f32.mrb[0].mxu0
  %v2747 = vadd.f32 %v2174, %v2746
  %v2748 = vpop.f32.mrb[0].mxu0
  %v2749 = vpop.f32.mrb[0].mxu0
  %v2750 = vadd.f32 %v2174, %v2749
  %v2751 = vpop.f32.mrb[0].mxu0
  %2752 = vmatprep.mubr.bf16.mxu0 0
  %2753 = vmatmul.mubr.bf16.gmra.mrb[0].mxu0 %v2149
  %v2754 = vpop.f32.mrb[0].mxu0
  %v2755 = vadd.f32 %v2174, %v2754
  %v2756 = vpop.f32.mrb[0].mxu0
  %v2757 = vpop.f32.mrb[0].mxu0
  %v2758 = vadd.f32 %v2174, %v2757
  %v2759 = vpop.f32.mrb[0].mxu0
  %2760 = vmatprep.mubr.bf16.mxu0 0
  %2761 = vmatmul.mubr.bf16.gmra.mrb[0].mxu0 %v2150
  %v2762 = vpop.f32.mrb[0].mxu0
  %v2763 = vadd.f32 %v2174, %v2762
  %v2764 = vpop.f32.mrb[0].mxu0
  %v2765 = vpop.f32.mrb[0].mxu0
  %v2766 = vadd.f32 %v2174, %v2765
  %v2767 = vpop.f32.mrb[0].mxu0
  %2768 = vdwg.mxu0
  %v2769 = vmax.f32 %v2259, 0.0
  %v2770 = vmax.f32 %v2262, 0.0
  %v2771 = vmax.f32 %v2267, 0.0
  %v2772 = vmax.f32 %v2270, 0.0
  %v2773 = vmax.f32 %v2275, 0.0
  %v2774 = vmax.f32 %v2278, 0.0
  %v2775 = vmax.f32 %v2283, 0.0
  %v2776 = vmax.f32 %v2286, 0.0
  %v2777 = vmax.f32 %v2291, 0.0
  %v2778 = vmax.f32 %v2294, 0.0
  %v2779 = vmax.f32 %v2299, 0.0
  %v2780 = vmax.f32 %v2302, 0.0
  %v2781 = vmax.f32 %v2307, 0.0
  %v2782 = vmax.f32 %v2310, 0.0
  %v2783 = vmax.f32 %v2315, 0.0
  %v2784 = vmax.f32 %v2318, 0.0
  %v2785 = vmax.f32 %v2323, 0.0
  %v2786 = vmax.f32 %v2326, 0.0
  %v2787 = vmax.f32 %v2331, 0.0
  %v2788 = vmax.f32 %v2334, 0.0
  %v2789 = vmax.f32 %v2339, 0.0
  %v2790 = vmax.f32 %v2342, 0.0
  %v2791 = vmax.f32 %v2347, 0.0
  %v2792 = vmax.f32 %v2350, 0.0
  %v2793 = vmax.f32 %v2355, 0.0
  %v2794 = vmax.f32 %v2358, 0.0
  %v2795 = vmax.f32 %v2363, 0.0
  %v2796 = vmax.f32 %v2366, 0.0
  %v2797 = vmax.f32 %v2371, 0.0
  %v2798 = vmax.f32 %v2374, 0.0
  %v2799 = vmax.f32 %v2379, 0.0
  %v2800 = vmax.f32 %v2382, 0.0
  %v2801 = vmax.f32 %v2387, 0.0
  %v2802 = vmax.f32 %v2390, 0.0
  %v2803 = vmax.f32 %v2395, 0.0
  %v2804 = vmax.f32 %v2398, 0.0
  %v2805 = vmax.f32 %v2403, 0.0
  %v2806 = vmax.f32 %v2406, 0.0
  %v2807 = vmax.f32 %v2411, 0.0
  %v2808 = vmax.f32 %v2414, 0.0
  %v2809 = vmax.f32 %v2419, 0.0
  %v2810 = vmax.f32 %v2422, 0.0
  %v2811 = vmax.f32 %v2427, 0.0
  %v2812 = vmax.f32 %v2430, 0.0
  %v2813 = vmax.f32 %v2435, 0.0
  %v2814 = vmax.f32 %v2438, 0.0
  %v2815 = vmax.f32 %v2443, 0.0
  %v2816 = vmax.f32 %v2446, 0.0
  %v2817 = vmax.f32 %v2451, 0.0
  %v2818 = vmax.f32 %v2454, 0.0
  %v2819 = vmax.f32 %v2459, 0.0
  %v2820 = vmax.f32 %v2462, 0.0
  %v2821 = vmax.f32 %v2467, 0.0
  %v2822 = vmax.f32 %v2470, 0.0
  %v2823 = vmax.f32 %v2475, 0.0
  %v2824 = vmax.f32 %v2478, 0.0
  %v2825 = vmax.f32 %v2483, 0.0
  %v2826 = vmax.f32 %v2486, 0.0
  %v2827 = vmax.f32 %v2491, 0.0
  %v2828 = vmax.f32 %v2494, 0.0
  %v2829 = vmax.f32 %v2499, 0.0
  %v2830 = vmax.f32 %v2502, 0.0
  %v2831 = vmax.f32 %v2507, 0.0
  %v2832 = vmax.f32 %v2510, 0.0
  %v2833 = vmax.f32 %v2515, 0.0
  %v2834 = vmax.f32 %v2518, 0.0
  %v2835 = vmax.f32 %v2523, 0.0
  %v2836 = vmax.f32 %v2526, 0.0
  %v2837 = vmax.f32 %v2531, 0.0
  %v2838 = vmax.f32 %v2534, 0.0
  %v2839 = vmax.f32 %v2539, 0.0
  %v2840 = vmax.f32 %v2542, 0.0
  %v2841 = vmax.f32 %v2547, 0.0
  %v2842 = vmax.f32 %v2550, 0.0
  %v2843 = vmax.f32 %v2555, 0.0
  %v2844 = vmax.f32 %v2558, 0.0
  %v2845 = vmax.f32 %v2563, 0.0
  %v2846 = vmax.f32 %v2566, 0.0
  %v2847 = vmax.f32 %v2571, 0.0
  %v2848 = vmax.f32 %v2574, 0.0
  %v2849 = vmax.f32 %v2579, 0.0
  %v2850 = vmax.f32 %v2582, 0.0
  %v2851 = vmax.f32 %v2587, 0.0
  %v2852 = vmax.f32 %v2590, 0.0
  %v2853 = vmax.f32 %v2595, 0.0
  %v2854 = vmax.f32 %v2598, 0.0
  %v2855 = vmax.f32 %v2603, 0.0
  %v2856 = vmax.f32 %v2606, 0.0
  %v2857 = vmax.f32 %v2611, 0.0
  %v2858 = vmax.f32 %v2614, 0.0
  %v2859 = vmax.f32 %v2619, 0.0
  %v2860 = vmax.f32 %v2622, 0.0
  %v2861 = vmax.f32 %v2627, 0.0
  %v2862 = vmax.f32 %v2630, 0.0
  %v2863 = vmax.f32 %v2635, 0.0
  %v2864 = vmax.f32 %v2638, 0.0
  %v2865 = vmax.f32 %v2643, 0.0
  %v2866 = vmax.f32 %v2646, 0.0
  %v2867 = vmax.f32 %v2651, 0.0
  %v2868 = vmax.f32 %v2654, 0.0
  %v2869 = vmax.f32 %v2659, 0.0
  %v2870 = vmax.f32 %v2662, 0.0
  %v2871 = vmax.f32 %v2667, 0.0
  %v2872 = vmax.f32 %v2670, 0.0
  %v2873 = vmax.f32 %v2675, 0.0
  %v2874 = vmax.f32 %v2678, 0.0
  %v2875 = vmax.f32 %v2683, 0.0
  %v2876 = vmax.f32 %v2686, 0.0
  %v2877 = vmax.f32 %v2691, 0.0
  %v2878 = vmax.f32 %v2694, 0.0
  %v2879 = vmax.f32 %v2699, 0.0
  %v2880 = vmax.f32 %v2702, 0.0
  %v2881 = vmax.f32 %v2707, 0.0
  %v2882 = vmax.f32 %v2710, 0.0
  %v2883 = vmax.f32 %v2715, 0.0
  %v2884 = vmax.f32 %v2718, 0.0
  %v2885 = vmax.f32 %v2723, 0.0
  %v2886 = vmax.f32 %v2726, 0.0
  %v2887 = vmax.f32 %v2731, 0.0
  %v2888 = vmax.f32 %v2734, 0.0
  %v2889 = vmax.f32 %v2739, 0.0
  %v2890 = vmax.f32 %v2742, 0.0
  %v2891 = vmax.f32 %v2747, 0.0
  %v2892 = vmax.f32 %v2750, 0.0
  %v2893 = vmax.f32 %v2755, 0.0
  %v2894 = vmax.f32 %v2758, 0.0
  %v2895 = vmax.f32 %v2763, 0.0
  %v2896 = vmax.f32 %v2766, 0.0
  %v2897 = vpack.c.bf16 %v2770, %v2769
  %v2898 = vpack.c.bf16 %v2772, %v2771
  %v2899 = vpack.c.bf16 %v2774, %v2773
  %v2900 = vpack.c.bf16 %v2776, %v2775
  %v2901 = vpack.c.bf16 %v2778, %v2777
  %v2902 = vpack.c.bf16 %v2780, %v2779
  %v2903 = vpack.c.bf16 %v2782, %v2781
  %v2904 = vpack.c.bf16 %v2784, %v2783
  %v2905 = vpack.c.bf16 %v2786, %v2785
  %v2906 = vpack.c.bf16 %v2788, %v2787
  %v2907 = vpack.c.bf16 %v2790, %v2789
  %v2908 = vpack.c.bf16 %v2792, %v2791
  %v2909 = vpack.c.bf16 %v2794, %v2793
  %v2910 = vpack.c.bf16 %v2796, %v2795
  %v2911 = vpack.c.bf16 %v2798, %v2797
  %v2912 = vpack.c.bf16 %v2800, %v2799
  %v2913 = vpack.c.bf16 %v2802, %v2801
  %v2914 = vpack.c.bf16 %v2804, %v2803
  %v2915 = vpack.c.bf16 %v2806, %v2805
  %v2916 = vpack.c.bf16 %v2808, %v2807
  %v2917 = vpack.c.bf16 %v2810, %v2809
  %v2918 = vpack.c.bf16 %v2812, %v2811
  %v2919 = vpack.c.bf16 %v2814, %v2813
  %v2920 = vpack.c.bf16 %v2816, %v2815
  %v2921 = vpack.c.bf16 %v2818, %v2817
  %v2922 = vpack.c.bf16 %v2820, %v2819
  %v2923 = vpack.c.bf16 %v2822, %v2821
  %v2924 = vpack.c.bf16 %v2824, %v2823
  %v2925 = vpack.c.bf16 %v2826, %v2825
  %v2926 = vpack.c.bf16 %v2828, %v2827
  %v2927 = vpack.c.bf16 %v2830, %v2829
  %v2928 = vpack.c.bf16 %v2832, %v2831
  %v2929 = vpack.c.bf16 %v2834, %v2833
  %v2930 = vpack.c.bf16 %v2836, %v2835
  %v2931 = vpack.c.bf16 %v2838, %v2837
  %v2932 = vpack.c.bf16 %v2840, %v2839
  %v2933 = vpack.c.bf16 %v2842, %v2841
  %v2934 = vpack.c.bf16 %v2844, %v2843
  %v2935 = vpack.c.bf16 %v2846, %v2845
  %v2936 = vpack.c.bf16 %v2848, %v2847
  %v2937 = vpack.c.bf16 %v2850, %v2849
  %v2938 = vpack.c.bf16 %v2852, %v2851
  %v2939 = vpack.c.bf16 %v2854, %v2853
  %v2940 = vpack.c.bf16 %v2856, %v2855
  %v2941 = vpack.c.bf16 %v2858, %v2857
  %v2942 = vpack.c.bf16 %v2860, %v2859
  %v2943 = vpack.c.bf16 %v2862, %v2861
  %v2944 = vpack.c.bf16 %v2864, %v2863
  %v2945 = vpack.c.bf16 %v2866, %v2865
  %v2946 = vpack.c.bf16 %v2868, %v2867
  %v2947 = vpack.c.bf16 %v2870, %v2869
  %v2948 = vpack.c.bf16 %v2872, %v2871
  %v2949 = vpack.c.bf16 %v2874, %v2873
  %v2950 = vpack.c.bf16 %v2876, %v2875
  %v2951 = vpack.c.bf16 %v2878, %v2877
  %v2952 = vpack.c.bf16 %v2880, %v2879
  %v2953 = vpack.c.bf16 %v2882, %v2881
  %v2954 = vpack.c.bf16 %v2884, %v2883
  %v2955 = vpack.c.bf16 %v2886, %v2885
  %v2956 = vpack.c.bf16 %v2888, %v2887
  %v2957 = vpack.c.bf16 %v2890, %v2889
  %v2958 = vpack.c.bf16 %v2892, %v2891
  %v2959 = vpack.c.bf16 %v2894, %v2893
  %v2960 = vpack.c.bf16 %v2896, %v2895
  %s2961 = scalar_lea.vmem %s1, 192
  %v2962 = vld [vmem:[%s2961] sm:$0xf]
  %v2963 = vld [vmem:[%s2961 + $0x4] sm:$0xf]
  %v2964 = vld [vmem:[%s2961 + $0x8] sm:$0xf]
  %v2965 = vld [vmem:[%s2961 + $0xc] sm:$0xf]
  %v2966 = vld [vmem:[%s2961 + $0x10] sm:$0xf]
  %v2967 = vld [vmem:[%s2961 + $0x14] sm:$0xf]
  %v2968 = vld [vmem:[%s2961 + $0x18] sm:$0xf]
  %v2969 = vld [vmem:[%s2961 + $0x1c] sm:$0xf]
  %v2970 = vld [vmem:[%s2961 + $0x20] sm:$0xf]
  %v2971 = vld [vmem:[%s2961 + $0x24] sm:$0xf]
  %v2972 = vld [vmem:[%s2961 + $0x28] sm:$0xf]
  %v2973 = vld [vmem:[%s2961 + $0x2c] sm:$0xf]
  %v2974 = vld [vmem:[%s2961 + $0x30] sm:$0xf]
  %v2975 = vld [vmem:[%s2961 + $0x34] sm:$0xf]
  %v2976 = vld [vmem:[%s2961 + $0x38] sm:$0xf]
  %v2977 = vld [vmem:[%s2961 + $0x3c] sm:$0xf]
  %s2978 = scalar_lea.vmem %s1, 256
  %v2979 = vld [vmem:[%s2978] sm:$0xf]
  %v2980 = vld [vmem:[%s2978 + $0x4] sm:$0xf]
  %v2981 = vld [vmem:[%s2978 + $0x8] sm:$0xf]
  %v2982 = vld [vmem:[%s2978 + $0xc] sm:$0xf]
  %v2983 = vld [vmem:[%s2978 + $0x10] sm:$0xf]
  %v2984 = vld [vmem:[%s2978 + $0x14] sm:$0xf]
  %v2985 = vld [vmem:[%s2978 + $0x18] sm:$0xf]
  %v2986 = vld [vmem:[%s2978 + $0x1c] sm:$0xf]
  %v2987 = vld [vmem:[%s2978 + $0x20] sm:$0xf]
  %v2988 = vld [vmem:[%s2978 + $0x24] sm:$0xf]
  %v2989 = vld [vmem:[%s2978 + $0x28] sm:$0xf]
  %v2990 = vld [vmem:[%s2978 + $0x2c] sm:$0xf]
  %v2991 = vld [vmem:[%s2978 + $0x30] sm:$0xf]
  %v2992 = vld [vmem:[%s2978 + $0x34] sm:$0xf]
  %v2993 = vld [vmem:[%s2978 + $0x38] sm:$0xf]
  %v2994 = vld [vmem:[%s2978 + $0x3c] sm:$0xf]
  %v3011 = vunpack.c.l.b16 %v2979
  %v3012 = vunpack.c.l.b16 %v2980
  %v3013 = vunpack.c.l.b16 %v2981
  %v3014 = vunpack.c.l.b16 %v2982
  %v3015 = vunpack.c.l.b16 %v2983
  %v3016 = vunpack.c.l.b16 %v2984
  %v3017 = vunpack.c.l.b16 %v2985
  %v3018 = vunpack.c.l.b16 %v2986
  %v3019 = vunpack.c.l.b16 %v2987
  %v3020 = vunpack.c.l.b16 %v2988
  %v3021 = vunpack.c.l.b16 %v2989
  %v3022 = vunpack.c.l.b16 %v2990
  %v3023 = vunpack.c.l.b16 %v2991
  %v3024 = vunpack.c.l.b16 %v2992
  %v3025 = vunpack.c.l.b16 %v2993
  %v3026 = vunpack.c.l.b16 %v2994
  %v3027 = vpack.c.b16 %v3012, %v3011
  %v3028 = vpack.c.b16 %v3014, %v3013
  %v3029 = vpack.c.b16 %v3016, %v3015
  %v3030 = vpack.c.b16 %v3018, %v3017
  %v3031 = vpack.c.b16 %v3020, %v3019
  %v3032 = vpack.c.b16 %v3022, %v3021
  %v3033 = vpack.c.b16 %v3024, %v3023
  %v3034 = vpack.c.b16 %v3026, %v3025
  %3043 = vmatprep.subr.bf16.mxu0 0
  %3044 = vmatpush1.bf16.msra.mxu0 %v3027
  %3045 = vmatprep.subr.bf16.mxu0 0
  %3046 = vmatpush1.bf16.msra.mxu0 %v3028
  %3047 = vmatprep.subr.bf16.mxu0 0
  %3048 = vmatpush1.bf16.msra.mxu0 %v3029
  %3049 = vmatprep.subr.bf16.mxu0 0
  %3050 = vmatpush1.bf16.msra.mxu0 %v3030
  %3051 = vmatprep.subr.bf16.mxu0 0
  %3052 = vmatpush1.bf16.msra.mxu0 %v3031
  %3053 = vmatprep.subr.bf16.mxu0 0
  %3054 = vmatpush1.bf16.msra.mxu0 %v3032
  %3055 = vmatprep.subr.bf16.mxu0 0
  %3056 = vmatpush1.bf16.msra.mxu0 %v3033
  %3057 = vmatprep.subr.bf16.mxu0 0
  %3058 = vmatpush1.bf16.msra.mxu0 %v3034
  %3059 = vmatprep.subr.bf16.mxu0 0
  %3060 = vmatpush1.bf16.msra.mxu0 0
  %3061 = vmatprep.subr.bf16.mxu0 0
  %3062 = vmatpush1.bf16.msra.mxu0 0
  %3063 = vmatprep.subr.bf16.mxu0 0
  %3064 = vmatpush1.bf16.msra.mxu0 0
  %3065 = vmatprep.subr.bf16.mxu0 0
  %3066 = vmatpush1.bf16.msra.mxu0 0
  %3067 = vmatprep.subr.bf16.mxu0 0
  %3068 = vmatpush1.bf16.msra.mxu0 0
  %3069 = vmatprep.subr.bf16.mxu0 0
  %3070 = vmatpush1.bf16.msra.mxu0 0
  %3071 = vmatprep.subr.bf16.mxu0 0
  %3072 = vmatpush1.bf16.msra.mxu0 0
  %3073 = vmatprep.subr.bf16.mxu0 0
  %3074 = vmatpush1.bf16.msra.mxu0 0
  %3075 = vmatprep.mubr.bf16.mxu0 0
  %3076 = vmatmul.mubr.bf16.gmra.mrb[0].mxu0 %v2897
  %v3077 = vpop.f32.mrb[0].mxu0
  %v3078 = vadd.f32 0.0, %v3077
  %v3079 = vpop.f32.mrb[0].mxu0
  %v3080 = vpop.f32.mrb[0].mxu0
  %v3081 = vadd.f32 0.0, %v3080
  %v3082 = vpop.f32.mrb[0].mxu0
  %3083 = vmatprep.mubr.bf16.mxu0 0
  %3084 = vmatmul.mubr.bf16.gmra.mrb[0].mxu0 %v2898
  %v3085 = vpop.f32.mrb[0].mxu0
  %v3086 = vadd.f32 0.0, %v3085
  %v3087 = vpop.f32.mrb[0].mxu0
  %v3088 = vpop.f32.mrb[0].mxu0
  %v3089 = vadd.f32 0.0, %v3088
  %v3090 = vpop.f32.mrb[0].mxu0
  %3091 = vmatprep.mubr.bf16.mxu0 0
  %3092 = vmatmul.mubr.bf16.gmra.mrb[0].mxu0 %v2899
  %v3093 = vpop.f32.mrb[0].mxu0
  %v3094 = vadd.f32 0.0, %v3093
  %v3095 = vpop.f32.mrb[0].mxu0
  %v3096 = vpop.f32.mrb[0].mxu0
  %v3097 = vadd.f32 0.0, %v3096
  %v3098 = vpop.f32.mrb[0].mxu0
  %3099 = vmatprep.mubr.bf16.mxu0 0
  %3100 = vmatmul.mubr.bf16.gmra.mrb[0].mxu0 %v2900
  %v3101 = vpop.f32.mrb[0].mxu0
  %v3102 = vadd.f32 0.0, %v3101
  %v3103 = vpop.f32.mrb[0].mxu0
  %v3104 = vpop.f32.mrb[0].mxu0
  %v3105 = vadd.f32 0.0, %v3104
  %v3106 = vpop.f32.mrb[0].mxu0
  %3107 = vmatprep.mubr.bf16.mxu0 0
  %3108 = vmatmul.mubr.bf16.gmra.mrb[0].mxu0 %v2901
  %v3109 = vpop.f32.mrb[0].mxu0
  %v3110 = vadd.f32 0.0, %v3109
  %v3111 = vpop.f32.mrb[0].mxu0
  %v3112 = vpop.f32.mrb[0].mxu0
  %v3113 = vadd.f32 0.0, %v3112
  %v3114 = vpop.f32.mrb[0].mxu0
  %3115 = vmatprep.mubr.bf16.mxu0 0
  %3116 = vmatmul.mubr.bf16.gmra.mrb[0].mxu0 %v2902
  %v3117 = vpop.f32.mrb[0].mxu0
  %v3118 = vadd.f32 0.0, %v3117
  %v3119 = vpop.f32.mrb[0].mxu0
  %v3120 = vpop.f32.mrb[0].mxu0
  %v3121 = vadd.f32 0.0, %v3120
  %v3122 = vpop.f32.mrb[0].mxu0
  %3123 = vmatprep.mubr.bf16.mxu0 0
  %3124 = vmatmul.mubr.bf16.gmra.mrb[0].mxu0 %v2903
  %v3125 = vpop.f32.mrb[0].mxu0
  %v3126 = vadd.f32 0.0, %v3125
  %v3127 = vpop.f32.mrb[0].mxu0
  %v3128 = vpop.f32.mrb[0].mxu0
  %v3129 = vadd.f32 0.0, %v3128
  %v3130 = vpop.f32.mrb[0].mxu0
  %3131 = vmatprep.mubr.bf16.mxu0 0
  %3132 = vmatmul.mubr.bf16.gmra.mrb[0].mxu0 %v2904
  %v3133 = vpop.f32.mrb[0].mxu0
  %v3134 = vadd.f32 0.0, %v3133
  %v3135 = vpop.f32.mrb[0].mxu0
  %v3136 = vpop.f32.mrb[0].mxu0
  %v3137 = vadd.f32 0.0, %v3136
  %v3138 = vpop.f32.mrb[0].mxu0
  %3139 = vmatprep.mubr.bf16.mxu0 0
  %3140 = vmatmul.mubr.bf16.gmra.mrb[0].mxu0 %v2905
  %v3141 = vpop.f32.mrb[0].mxu0
  %v3142 = vadd.f32 0.0, %v3141
  %v3143 = vpop.f32.mrb[0].mxu0
  %v3144 = vpop.f32.mrb[0].mxu0
  %v3145 = vadd.f32 0.0, %v3144
  %v3146 = vpop.f32.mrb[0].mxu0
  %3147 = vmatprep.mubr.bf16.mxu0 0
  %3148 = vmatmul.mubr.bf16.gmra.mrb[0].mxu0 %v2906
  %v3149 = vpop.f32.mrb[0].mxu0
  %v3150 = vadd.f32 0.0, %v3149
  %v3151 = vpop.f32.mrb[0].mxu0
  %v3152 = vpop.f32.mrb[0].mxu0
  %v3153 = vadd.f32 0.0, %v3152
  %v3154 = vpop.f32.mrb[0].mxu0
  %3155 = vmatprep.mubr.bf16.mxu0 0
  %3156 = vmatmul.mubr.bf16.gmra.mrb[0].mxu0 %v2907
  %v3157 = vpop.f32.mrb[0].mxu0
  %v3158 = vadd.f32 0.0, %v3157
  %v3159 = vpop.f32.mrb[0].mxu0
  %v3160 = vpop.f32.mrb[0].mxu0
  %v3161 = vadd.f32 0.0, %v3160
  %v3162 = vpop.f32.mrb[0].mxu0
  %3163 = vmatprep.mubr.bf16.mxu0 0
  %3164 = vmatmul.mubr.bf16.gmra.mrb[0].mxu0 %v2908
  %v3165 = vpop.f32.mrb[0].mxu0
  %v3166 = vadd.f32 0.0, %v3165
  %v3167 = vpop.f32.mrb[0].mxu0
  %v3168 = vpop.f32.mrb[0].mxu0
  %v3169 = vadd.f32 0.0, %v3168
  %v3170 = vpop.f32.mrb[0].mxu0
  %3171 = vmatprep.mubr.bf16.mxu0 0
  %3172 = vmatmul.mubr.bf16.gmra.mrb[0].mxu0 %v2909
  %v3173 = vpop.f32.mrb[0].mxu0
  %v3174 = vadd.f32 0.0, %v3173
  %v3175 = vpop.f32.mrb[0].mxu0
  %v3176 = vpop.f32.mrb[0].mxu0
  %v3177 = vadd.f32 0.0, %v3176
  %v3178 = vpop.f32.mrb[0].mxu0
  %3179 = vmatprep.mubr.bf16.mxu0 0
  %3180 = vmatmul.mubr.bf16.gmra.mrb[0].mxu0 %v2910
  %v3181 = vpop.f32.mrb[0].mxu0
  %v3182 = vadd.f32 0.0, %v3181
  %v3183 = vpop.f32.mrb[0].mxu0
  %v3184 = vpop.f32.mrb[0].mxu0
  %v3185 = vadd.f32 0.0, %v3184
  %v3186 = vpop.f32.mrb[0].mxu0
  %3187 = vmatprep.mubr.bf16.mxu0 0
  %3188 = vmatmul.mubr.bf16.gmra.mrb[0].mxu0 %v2911
  %v3189 = vpop.f32.mrb[0].mxu0
  %v3190 = vadd.f32 0.0, %v3189
  %v3191 = vpop.f32.mrb[0].mxu0
  %v3192 = vpop.f32.mrb[0].mxu0
  %v3193 = vadd.f32 0.0, %v3192
  %v3194 = vpop.f32.mrb[0].mxu0
  %3195 = vmatprep.mubr.bf16.mxu0 0
  %3196 = vmatmul.mubr.bf16.gmra.mrb[0].mxu0 %v2912
  %v3197 = vpop.f32.mrb[0].mxu0
  %v3198 = vadd.f32 0.0, %v3197
  %v3199 = vpop.f32.mrb[0].mxu0
  %v3200 = vpop.f32.mrb[0].mxu0
  %v3201 = vadd.f32 0.0, %v3200
  %v3202 = vpop.f32.mrb[0].mxu0
  %3203 = vmatprep.mubr.bf16.mxu0 0
  %3204 = vmatmul.mubr.bf16.gmra.mrb[0].mxu0 %v2913
  %v3205 = vpop.f32.mrb[0].mxu0
  %v3206 = vadd.f32 0.0, %v3205
  %v3207 = vpop.f32.mrb[0].mxu0
  %v3208 = vpop.f32.mrb[0].mxu0
  %v3209 = vadd.f32 0.0, %v3208
  %v3210 = vpop.f32.mrb[0].mxu0
  %3211 = vmatprep.mubr.bf16.mxu0 0
  %3212 = vmatmul.mubr.bf16.gmra.mrb[0].mxu0 %v2914
  %v3213 = vpop.f32.mrb[0].mxu0
  %v3214 = vadd.f32 0.0, %v3213
  %v3215 = vpop.f32.mrb[0].mxu0
  %v3216 = vpop.f32.mrb[0].mxu0
  %v3217 = vadd.f32 0.0, %v3216
  %v3218 = vpop.f32.mrb[0].mxu0
  %3219 = vmatprep.mubr.bf16.mxu0 0
  %3220 = vmatmul.mubr.bf16.gmra.mrb[0].mxu0 %v2915
  %v3221 = vpop.f32.mrb[0].mxu0
  %v3222 = vadd.f32 0.0, %v3221
  %v3223 = vpop.f32.mrb[0].mxu0
  %v3224 = vpop.f32.mrb[0].mxu0
  %v3225 = vadd.f32 0.0, %v3224
  %v3226 = vpop.f32.mrb[0].mxu0
  %3227 = vmatprep.mubr.bf16.mxu0 0
  %3228 = vmatmul.mubr.bf16.gmra.mrb[0].mxu0 %v2916
  %v3229 = vpop.f32.mrb[0].mxu0
  %v3230 = vadd.f32 0.0, %v3229
  %v3231 = vpop.f32.mrb[0].mxu0
  %v3232 = vpop.f32.mrb[0].mxu0
  %v3233 = vadd.f32 0.0, %v3232
  %v3234 = vpop.f32.mrb[0].mxu0
  %3235 = vmatprep.mubr.bf16.mxu0 0
  %3236 = vmatmul.mubr.bf16.gmra.mrb[0].mxu0 %v2917
  %v3237 = vpop.f32.mrb[0].mxu0
  %v3238 = vadd.f32 0.0, %v3237
  %v3239 = vpop.f32.mrb[0].mxu0
  %v3240 = vpop.f32.mrb[0].mxu0
  %v3241 = vadd.f32 0.0, %v3240
  %v3242 = vpop.f32.mrb[0].mxu0
  %3243 = vmatprep.mubr.bf16.mxu0 0
  %3244 = vmatmul.mubr.bf16.gmra.mrb[0].mxu0 %v2918
  %v3245 = vpop.f32.mrb[0].mxu0
  %v3246 = vadd.f32 0.0, %v3245
  %v3247 = vpop.f32.mrb[0].mxu0
  %v3248 = vpop.f32.mrb[0].mxu0
  %v3249 = vadd.f32 0.0, %v3248
  %v3250 = vpop.f32.mrb[0].mxu0
  %3251 = vmatprep.mubr.bf16.mxu0 0
  %3252 = vmatmul.mubr.bf16.gmra.mrb[0].mxu0 %v2919
  %v3253 = vpop.f32.mrb[0].mxu0
  %v3254 = vadd.f32 0.0, %v3253
  %v3255 = vpop.f32.mrb[0].mxu0
  %v3256 = vpop.f32.mrb[0].mxu0
  %v3257 = vadd.f32 0.0, %v3256
  %v3258 = vpop.f32.mrb[0].mxu0
  %3259 = vmatprep.mubr.bf16.mxu0 0
  %3260 = vmatmul.mubr.bf16.gmra.mrb[0].mxu0 %v2920
  %v3261 = vpop.f32.mrb[0].mxu0
  %v3262 = vadd.f32 0.0, %v3261
  %v3263 = vpop.f32.mrb[0].mxu0
  %v3264 = vpop.f32.mrb[0].mxu0
  %v3265 = vadd.f32 0.0, %v3264
  %v3266 = vpop.f32.mrb[0].mxu0
  %3267 = vmatprep.mubr.bf16.mxu0 0
  %3268 = vmatmul.mubr.bf16.gmra.mrb[0].mxu0 %v2921
  %v3269 = vpop.f32.mrb[0].mxu0
  %v3270 = vadd.f32 0.0, %v3269
  %v3271 = vpop.f32.mrb[0].mxu0
  %v3272 = vpop.f32.mrb[0].mxu0
  %v3273 = vadd.f32 0.0, %v3272
  %v3274 = vpop.f32.mrb[0].mxu0
  %3275 = vmatprep.mubr.bf16.mxu0 0
  %3276 = vmatmul.mubr.bf16.gmra.mrb[0].mxu0 %v2922
  %v3277 = vpop.f32.mrb[0].mxu0
  %v3278 = vadd.f32 0.0, %v3277
  %v3279 = vpop.f32.mrb[0].mxu0
  %v3280 = vpop.f32.mrb[0].mxu0
  %v3281 = vadd.f32 0.0, %v3280
  %v3282 = vpop.f32.mrb[0].mxu0
  %3283 = vmatprep.mubr.bf16.mxu0 0
  %3284 = vmatmul.mubr.bf16.gmra.mrb[0].mxu0 %v2923
  %v3285 = vpop.f32.mrb[0].mxu0
  %v3286 = vadd.f32 0.0, %v3285
  %v3287 = vpop.f32.mrb[0].mxu0
  %v3288 = vpop.f32.mrb[0].mxu0
  %v3289 = vadd.f32 0.0, %v3288
  %v3290 = vpop.f32.mrb[0].mxu0
  %3291 = vmatprep.mubr.bf16.mxu0 0
  %3292 = vmatmul.mubr.bf16.gmra.mrb[0].mxu0 %v2924
  %v3293 = vpop.f32.mrb[0].mxu0
  %v3294 = vadd.f32 0.0, %v3293
  %v3295 = vpop.f32.mrb[0].mxu0
  %v3296 = vpop.f32.mrb[0].mxu0
  %v3297 = vadd.f32 0.0, %v3296
  %v3298 = vpop.f32.mrb[0].mxu0
  %3299 = vmatprep.mubr.bf16.mxu0 0
  %3300 = vmatmul.mubr.bf16.gmra.mrb[0].mxu0 %v2925
  %v3301 = vpop.f32.mrb[0].mxu0
  %v3302 = vadd.f32 0.0, %v3301
  %v3303 = vpop.f32.mrb[0].mxu0
  %v3304 = vpop.f32.mrb[0].mxu0
  %v3305 = vadd.f32 0.0, %v3304
  %v3306 = vpop.f32.mrb[0].mxu0
  %3307 = vmatprep.mubr.bf16.mxu0 0
  %3308 = vmatmul.mubr.bf16.gmra.mrb[0].mxu0 %v2926
  %v3309 = vpop.f32.mrb[0].mxu0
  %v3310 = vadd.f32 0.0, %v3309
  %v3311 = vpop.f32.mrb[0].mxu0
  %v3312 = vpop.f32.mrb[0].mxu0
  %v3313 = vadd.f32 0.0, %v3312
  %v3314 = vpop.f32.mrb[0].mxu0
  %3315 = vmatprep.mubr.bf16.mxu0 0
  %3316 = vmatmul.mubr.bf16.gmra.mrb[0].mxu0 %v2927
  %v3317 = vpop.f32.mrb[0].mxu0
  %v3318 = vadd.f32 0.0, %v3317
  %v3319 = vpop.f32.mrb[0].mxu0
  %v3320 = vpop.f32.mrb[0].mxu0
  %v3321 = vadd.f32 0.0, %v3320
  %v3322 = vpop.f32.mrb[0].mxu0
  %3323 = vmatprep.mubr.bf16.mxu0 0
  %3324 = vmatmul.mubr.bf16.gmra.mrb[0].mxu0 %v2928
  %v3325 = vpop.f32.mrb[0].mxu0
  %v3326 = vadd.f32 0.0, %v3325
  %v3327 = vpop.f32.mrb[0].mxu0
  %v3328 = vpop.f32.mrb[0].mxu0
  %v3329 = vadd.f32 0.0, %v3328
  %v3330 = vpop.f32.mrb[0].mxu0
  %3331 = vmatprep.mubr.bf16.mxu0 0
  %3332 = vmatmul.mubr.bf16.gmra.mrb[0].mxu0 %v2929
  %v3333 = vpop.f32.mrb[0].mxu0
  %v3334 = vadd.f32 0.0, %v3333
  %v3335 = vpop.f32.mrb[0].mxu0
  %v3336 = vpop.f32.mrb[0].mxu0
  %v3337 = vadd.f32 0.0, %v3336
  %v3338 = vpop.f32.mrb[0].mxu0
  %3339 = vmatprep.mubr.bf16.mxu0 0
  %3340 = vmatmul.mubr.bf16.gmra.mrb[0].mxu0 %v2930
  %v3341 = vpop.f32.mrb[0].mxu0
  %v3342 = vadd.f32 0.0, %v3341
  %v3343 = vpop.f32.mrb[0].mxu0
  %v3344 = vpop.f32.mrb[0].mxu0
  %v3345 = vadd.f32 0.0, %v3344
  %v3346 = vpop.f32.mrb[0].mxu0
  %3347 = vmatprep.mubr.bf16.mxu0 0
  %3348 = vmatmul.mubr.bf16.gmra.mrb[0].mxu0 %v2931
  %v3349 = vpop.f32.mrb[0].mxu0
  %v3350 = vadd.f32 0.0, %v3349
  %v3351 = vpop.f32.mrb[0].mxu0
  %v3352 = vpop.f32.mrb[0].mxu0
  %v3353 = vadd.f32 0.0, %v3352
  %v3354 = vpop.f32.mrb[0].mxu0
  %3355 = vmatprep.mubr.bf16.mxu0 0
  %3356 = vmatmul.mubr.bf16.gmra.mrb[0].mxu0 %v2932
  %v3357 = vpop.f32.mrb[0].mxu0
  %v3358 = vadd.f32 0.0, %v3357
  %v3359 = vpop.f32.mrb[0].mxu0
  %v3360 = vpop.f32.mrb[0].mxu0
  %v3361 = vadd.f32 0.0, %v3360
  %v3362 = vpop.f32.mrb[0].mxu0
  %3363 = vmatprep.mubr.bf16.mxu0 0
  %3364 = vmatmul.mubr.bf16.gmra.mrb[0].mxu0 %v2933
  %v3365 = vpop.f32.mrb[0].mxu0
  %v3366 = vadd.f32 0.0, %v3365
  %v3367 = vpop.f32.mrb[0].mxu0
  %v3368 = vpop.f32.mrb[0].mxu0
  %v3369 = vadd.f32 0.0, %v3368
  %v3370 = vpop.f32.mrb[0].mxu0
  %3371 = vmatprep.mubr.bf16.mxu0 0
  %3372 = vmatmul.mubr.bf16.gmra.mrb[0].mxu0 %v2934
  %v3373 = vpop.f32.mrb[0].mxu0
  %v3374 = vadd.f32 0.0, %v3373
  %v3375 = vpop.f32.mrb[0].mxu0
  %v3376 = vpop.f32.mrb[0].mxu0
  %v3377 = vadd.f32 0.0, %v3376
  %v3378 = vpop.f32.mrb[0].mxu0
  %3379 = vmatprep.mubr.bf16.mxu0 0
  %3380 = vmatmul.mubr.bf16.gmra.mrb[0].mxu0 %v2935
  %v3381 = vpop.f32.mrb[0].mxu0
  %v3382 = vadd.f32 0.0, %v3381
  %v3383 = vpop.f32.mrb[0].mxu0
  %v3384 = vpop.f32.mrb[0].mxu0
  %v3385 = vadd.f32 0.0, %v3384
  %v3386 = vpop.f32.mrb[0].mxu0
  %3387 = vmatprep.mubr.bf16.mxu0 0
  %3388 = vmatmul.mubr.bf16.gmra.mrb[0].mxu0 %v2936
  %v3389 = vpop.f32.mrb[0].mxu0
  %v3390 = vadd.f32 0.0, %v3389
  %v3391 = vpop.f32.mrb[0].mxu0
  %v3392 = vpop.f32.mrb[0].mxu0
  %v3393 = vadd.f32 0.0, %v3392
  %v3394 = vpop.f32.mrb[0].mxu0
  %3395 = vmatprep.mubr.bf16.mxu0 0
  %3396 = vmatmul.mubr.bf16.gmra.mrb[0].mxu0 %v2937
  %v3397 = vpop.f32.mrb[0].mxu0
  %v3398 = vadd.f32 0.0, %v3397
  %v3399 = vpop.f32.mrb[0].mxu0
  %v3400 = vpop.f32.mrb[0].mxu0
  %v3401 = vadd.f32 0.0, %v3400
  %v3402 = vpop.f32.mrb[0].mxu0
  %3403 = vmatprep.mubr.bf16.mxu0 0
  %3404 = vmatmul.mubr.bf16.gmra.mrb[0].mxu0 %v2938
  %v3405 = vpop.f32.mrb[0].mxu0
  %v3406 = vadd.f32 0.0, %v3405
  %v3407 = vpop.f32.mrb[0].mxu0
  %v3408 = vpop.f32.mrb[0].mxu0
  %v3409 = vadd.f32 0.0, %v3408
  %v3410 = vpop.f32.mrb[0].mxu0
  %3411 = vmatprep.mubr.bf16.mxu0 0
  %3412 = vmatmul.mubr.bf16.gmra.mrb[0].mxu0 %v2939
  %v3413 = vpop.f32.mrb[0].mxu0
  %v3414 = vadd.f32 0.0, %v3413
  %v3415 = vpop.f32.mrb[0].mxu0
  %v3416 = vpop.f32.mrb[0].mxu0
  %v3417 = vadd.f32 0.0, %v3416
  %v3418 = vpop.f32.mrb[0].mxu0
  %3419 = vmatprep.mubr.bf16.mxu0 0
  %3420 = vmatmul.mubr.bf16.gmra.mrb[0].mxu0 %v2940
  %v3421 = vpop.f32.mrb[0].mxu0
  %v3422 = vadd.f32 0.0, %v3421
  %v3423 = vpop.f32.mrb[0].mxu0
  %v3424 = vpop.f32.mrb[0].mxu0
  %v3425 = vadd.f32 0.0, %v3424
  %v3426 = vpop.f32.mrb[0].mxu0
  %3427 = vmatprep.mubr.bf16.mxu0 0
  %3428 = vmatmul.mubr.bf16.gmra.mrb[0].mxu0 %v2941
  %v3429 = vpop.f32.mrb[0].mxu0
  %v3430 = vadd.f32 0.0, %v3429
  %v3431 = vpop.f32.mrb[0].mxu0
  %v3432 = vpop.f32.mrb[0].mxu0
  %v3433 = vadd.f32 0.0, %v3432
  %v3434 = vpop.f32.mrb[0].mxu0
  %3435 = vmatprep.mubr.bf16.mxu0 0
  %3436 = vmatmul.mubr.bf16.gmra.mrb[0].mxu0 %v2942
  %v3437 = vpop.f32.mrb[0].mxu0
  %v3438 = vadd.f32 0.0, %v3437
  %v3439 = vpop.f32.mrb[0].mxu0
  %v3440 = vpop.f32.mrb[0].mxu0
  %v3441 = vadd.f32 0.0, %v3440
  %v3442 = vpop.f32.mrb[0].mxu0
  %3443 = vmatprep.mubr.bf16.mxu0 0
  %3444 = vmatmul.mubr.bf16.gmra.mrb[0].mxu0 %v2943
  %v3445 = vpop.f32.mrb[0].mxu0
  %v3446 = vadd.f32 0.0, %v3445
  %v3447 = vpop.f32.mrb[0].mxu0
  %v3448 = vpop.f32.mrb[0].mxu0
  %v3449 = vadd.f32 0.0, %v3448
  %v3450 = vpop.f32.mrb[0].mxu0
  %3451 = vmatprep.mubr.bf16.mxu0 0
  %3452 = vmatmul.mubr.bf16.gmra.mrb[0].mxu0 %v2944
  %v3453 = vpop.f32.mrb[0].mxu0
  %v3454 = vadd.f32 0.0, %v3453
  %v3455 = vpop.f32.mrb[0].mxu0
  %v3456 = vpop.f32.mrb[0].mxu0
  %v3457 = vadd.f32 0.0, %v3456
  %v3458 = vpop.f32.mrb[0].mxu0
  %3459 = vmatprep.mubr.bf16.mxu0 0
  %3460 = vmatmul.mubr.bf16.gmra.mrb[0].mxu0 %v2945
  %v3461 = vpop.f32.mrb[0].mxu0
  %v3462 = vadd.f32 0.0, %v3461
  %v3463 = vpop.f32.mrb[0].mxu0
  %v3464 = vpop.f32.mrb[0].mxu0
  %v3465 = vadd.f32 0.0, %v3464
  %v3466 = vpop.f32.mrb[0].mxu0
  %3467 = vmatprep.mubr.bf16.mxu0 0
  %3468 = vmatmul.mubr.bf16.gmra.mrb[0].mxu0 %v2946
  %v3469 = vpop.f32.mrb[0].mxu0
  %v3470 = vadd.f32 0.0, %v3469
  %v3471 = vpop.f32.mrb[0].mxu0
  %v3472 = vpop.f32.mrb[0].mxu0
  %v3473 = vadd.f32 0.0, %v3472
  %v3474 = vpop.f32.mrb[0].mxu0
  %3475 = vmatprep.mubr.bf16.mxu0 0
  %3476 = vmatmul.mubr.bf16.gmra.mrb[0].mxu0 %v2947
  %v3477 = vpop.f32.mrb[0].mxu0
  %v3478 = vadd.f32 0.0, %v3477
  %v3479 = vpop.f32.mrb[0].mxu0
  %v3480 = vpop.f32.mrb[0].mxu0
  %v3481 = vadd.f32 0.0, %v3480
  %v3482 = vpop.f32.mrb[0].mxu0
  %3483 = vmatprep.mubr.bf16.mxu0 0
  %3484 = vmatmul.mubr.bf16.gmra.mrb[0].mxu0 %v2948
  %v3485 = vpop.f32.mrb[0].mxu0
  %v3486 = vadd.f32 0.0, %v3485
  %v3487 = vpop.f32.mrb[0].mxu0
  %v3488 = vpop.f32.mrb[0].mxu0
  %v3489 = vadd.f32 0.0, %v3488
  %v3490 = vpop.f32.mrb[0].mxu0
  %3491 = vmatprep.mubr.bf16.mxu0 0
  %3492 = vmatmul.mubr.bf16.gmra.mrb[0].mxu0 %v2949
  %v3493 = vpop.f32.mrb[0].mxu0
  %v3494 = vadd.f32 0.0, %v3493
  %v3495 = vpop.f32.mrb[0].mxu0
  %v3496 = vpop.f32.mrb[0].mxu0
  %v3497 = vadd.f32 0.0, %v3496
  %v3498 = vpop.f32.mrb[0].mxu0
  %3499 = vmatprep.mubr.bf16.mxu0 0
  %3500 = vmatmul.mubr.bf16.gmra.mrb[0].mxu0 %v2950
  %v3501 = vpop.f32.mrb[0].mxu0
  %v3502 = vadd.f32 0.0, %v3501
  %v3503 = vpop.f32.mrb[0].mxu0
  %v3504 = vpop.f32.mrb[0].mxu0
  %v3505 = vadd.f32 0.0, %v3504
  %v3506 = vpop.f32.mrb[0].mxu0
  %3507 = vmatprep.mubr.bf16.mxu0 0
  %3508 = vmatmul.mubr.bf16.gmra.mrb[0].mxu0 %v2951
  %v3509 = vpop.f32.mrb[0].mxu0
  %v3510 = vadd.f32 0.0, %v3509
  %v3511 = vpop.f32.mrb[0].mxu0
  %v3512 = vpop.f32.mrb[0].mxu0
  %v3513 = vadd.f32 0.0, %v3512
  %v3514 = vpop.f32.mrb[0].mxu0
  %3515 = vmatprep.mubr.bf16.mxu0 0
  %3516 = vmatmul.mubr.bf16.gmra.mrb[0].mxu0 %v2952
  %v3517 = vpop.f32.mrb[0].mxu0
  %v3518 = vadd.f32 0.0, %v3517
  %v3519 = vpop.f32.mrb[0].mxu0
  %v3520 = vpop.f32.mrb[0].mxu0
  %v3521 = vadd.f32 0.0, %v3520
  %v3522 = vpop.f32.mrb[0].mxu0
  %3523 = vmatprep.mubr.bf16.mxu0 0
  %3524 = vmatmul.mubr.bf16.gmra.mrb[0].mxu0 %v2953
  %v3525 = vpop.f32.mrb[0].mxu0
  %v3526 = vadd.f32 0.0, %v3525
  %v3527 = vpop.f32.mrb[0].mxu0
  %v3528 = vpop.f32.mrb[0].mxu0
  %v3529 = vadd.f32 0.0, %v3528
  %v3530 = vpop.f32.mrb[0].mxu0
  %3531 = vmatprep.mubr.bf16.mxu0 0
  %3532 = vmatmul.mubr.bf16.gmra.mrb[0].mxu0 %v2954
  %v3533 = vpop.f32.mrb[0].mxu0
  %v3534 = vadd.f32 0.0, %v3533
  %v3535 = vpop.f32.mrb[0].mxu0
  %v3536 = vpop.f32.mrb[0].mxu0
  %v3537 = vadd.f32 0.0, %v3536
  %v3538 = vpop.f32.mrb[0].mxu0
  %3539 = vmatprep.mubr.bf16.mxu0 0
  %3540 = vmatmul.mubr.bf16.gmra.mrb[0].mxu0 %v2955
  %v3541 = vpop.f32.mrb[0].mxu0
  %v3542 = vadd.f32 0.0, %v3541
  %v3543 = vpop.f32.mrb[0].mxu0
  %v3544 = vpop.f32.mrb[0].mxu0
  %v3545 = vadd.f32 0.0, %v3544
  %v3546 = vpop.f32.mrb[0].mxu0
  %3547 = vmatprep.mubr.bf16.mxu0 0
  %3548 = vmatmul.mubr.bf16.gmra.mrb[0].mxu0 %v2956
  %v3549 = vpop.f32.mrb[0].mxu0
  %v3550 = vadd.f32 0.0, %v3549
  %v3551 = vpop.f32.mrb[0].mxu0
  %v3552 = vpop.f32.mrb[0].mxu0
  %v3553 = vadd.f32 0.0, %v3552
  %v3554 = vpop.f32.mrb[0].mxu0
  %3555 = vmatprep.mubr.bf16.mxu0 0
  %3556 = vmatmul.mubr.bf16.gmra.mrb[0].mxu0 %v2957
  %v3557 = vpop.f32.mrb[0].mxu0
  %v3558 = vadd.f32 0.0, %v3557
  %v3559 = vpop.f32.mrb[0].mxu0
  %v3560 = vpop.f32.mrb[0].mxu0
  %v3561 = vadd.f32 0.0, %v3560
  %v3562 = vpop.f32.mrb[0].mxu0
  %3563 = vmatprep.mubr.bf16.mxu0 0
  %3564 = vmatmul.mubr.bf16.gmra.mrb[0].mxu0 %v2958
  %v3565 = vpop.f32.mrb[0].mxu0
  %v3566 = vadd.f32 0.0, %v3565
  %v3567 = vpop.f32.mrb[0].mxu0
  %v3568 = vpop.f32.mrb[0].mxu0
  %v3569 = vadd.f32 0.0, %v3568
  %v3570 = vpop.f32.mrb[0].mxu0
  %3571 = vmatprep.mubr.bf16.mxu0 0
  %3572 = vmatmul.mubr.bf16.gmra.mrb[0].mxu0 %v2959
  %v3573 = vpop.f32.mrb[0].mxu0
  %v3574 = vadd.f32 0.0, %v3573
  %v3575 = vpop.f32.mrb[0].mxu0
  %v3576 = vpop.f32.mrb[0].mxu0
  %v3577 = vadd.f32 0.0, %v3576
  %v3578 = vpop.f32.mrb[0].mxu0
  %3579 = vmatprep.mubr.bf16.mxu0 0
  %3580 = vmatmul.mubr.bf16.gmra.mrb[0].mxu0 %v2960
  %v3581 = vpop.f32.mrb[0].mxu0
  %v3582 = vadd.f32 0.0, %v3581
  %v3583 = vpop.f32.mrb[0].mxu0
  %v3584 = vpop.f32.mrb[0].mxu0
  %v3585 = vadd.f32 0.0, %v3584
  %v3586 = vpop.f32.mrb[0].mxu0
  %3587 = vdwg.mxu0
  %v3604 = vunpack.c.l.b16 %v2962
  %v3605 = vunpack.c.l.b16 %v2963
  %v3606 = vunpack.c.l.b16 %v2964
  %v3607 = vunpack.c.l.b16 %v2965
  %v3608 = vunpack.c.l.b16 %v2966
  %v3609 = vunpack.c.l.b16 %v2967
  %v3610 = vunpack.c.l.b16 %v2968
  %v3611 = vunpack.c.l.b16 %v2969
  %v3612 = vunpack.c.l.b16 %v2970
  %v3613 = vunpack.c.l.b16 %v2971
  %v3614 = vunpack.c.l.b16 %v2972
  %v3615 = vunpack.c.l.b16 %v2973
  %v3616 = vunpack.c.l.b16 %v2974
  %v3617 = vunpack.c.l.b16 %v2975
  %v3618 = vunpack.c.l.b16 %v2976
  %v3619 = vunpack.c.l.b16 %v2977
  %v3620 = vpack.c.b16 %v3605, %v3604
  %v3621 = vpack.c.b16 %v3607, %v3606
  %v3622 = vpack.c.b16 %v3609, %v3608
  %v3623 = vpack.c.b16 %v3611, %v3610
  %v3624 = vpack.c.b16 %v3613, %v3612
  %v3625 = vpack.c.b16 %v3615, %v3614
  %v3626 = vpack.c.b16 %v3617, %v3616
  %v3627 = vpack.c.b16 %v3619, %v3618
  %3636 = vmatprep.subr.bf16.mxu0 0
  %3637 = vmatpush1.bf16.msra.mxu0 %v3620
  %3638 = vmatprep.subr.bf16.mxu0 0
  %3639 = vmatpush1.bf16.msra.mxu0 %v3621
  %3640 = vmatprep.subr.bf16.mxu0 0
  %3641 = vmatpush1.bf16.msra.mxu0 %v3622
  %3642 = vmatprep.subr.bf16.mxu0 0
  %3643 = vmatpush1.bf16.msra.mxu0 %v3623
  %3644 = vmatprep.subr.bf16.mxu0 0
  %3645 = vmatpush1.bf16.msra.mxu0 %v3624
  %3646 = vmatprep.subr.bf16.mxu0 0
  %3647 = vmatpush1.bf16.msra.mxu0 %v3625
  %3648 = vmatprep.subr.bf16.mxu0 0
  %3649 = vmatpush1.bf16.msra.mxu0 %v3626
  %3650 = vmatprep.subr.bf16.mxu0 0
  %3651 = vmatpush1.bf16.msra.mxu0 %v3627
  %3652 = vmatprep.subr.bf16.mxu0 0
  %3653 = vmatpush1.bf16.msra.mxu0 0
  %3654 = vmatprep.subr.bf16.mxu0 0
  %3655 = vmatpush1.bf16.msra.mxu0 0
  %3656 = vmatprep.subr.bf16.mxu0 0
  %3657 = vmatpush1.bf16.msra.mxu0 0
  %3658 = vmatprep.subr.bf16.mxu0 0
  %3659 = vmatpush1.bf16.msra.mxu0 0
  %3660 = vmatprep.subr.bf16.mxu0 0
  %3661 = vmatpush1.bf16.msra.mxu0 0
  %3662 = vmatprep.subr.bf16.mxu0 0
  %3663 = vmatpush1.bf16.msra.mxu0 0
  %3664 = vmatprep.subr.bf16.mxu0 0
  %3665 = vmatpush1.bf16.msra.mxu0 0
  %3666 = vmatprep.subr.bf16.mxu0 0
  %3667 = vmatpush1.bf16.msra.mxu0 0
  %3668 = vmatprep.mubr.bf16.mxu0 0
  %3669 = vmatmul.mubr.bf16.gmra.mrb[0].mxu0 %v428
  %v3670 = vpop.f32.mrb[0].mxu0
  %v3671 = vadd.f32 %v3078, %v3670
  %v3672 = vpop.f32.mrb[0].mxu0
  %v3673 = vpop.f32.mrb[0].mxu0
  %v3674 = vadd.f32 %v3081, %v3673
  %v3675 = vpop.f32.mrb[0].mxu0
  %3676 = vmatprep.mubr.bf16.mxu0 0
  %3677 = vmatmul.mubr.bf16.gmra.mrb[0].mxu0 %v429
  %v3678 = vpop.f32.mrb[0].mxu0
  %v3679 = vadd.f32 %v3086, %v3678
  %v3680 = vpop.f32.mrb[0].mxu0
  %v3681 = vpop.f32.mrb[0].mxu0
  %v3682 = vadd.f32 %v3089, %v3681
  %v3683 = vpop.f32.mrb[0].mxu0
  %3684 = vmatprep.mubr.bf16.mxu0 0
  %3685 = vmatmul.mubr.bf16.gmra.mrb[0].mxu0 %v430
  %v3686 = vpop.f32.mrb[0].mxu0
  %v3687 = vadd.f32 %v3094, %v3686
  %v3688 = vpop.f32.mrb[0].mxu0
  %v3689 = vpop.f32.mrb[0].mxu0
  %v3690 = vadd.f32 %v3097, %v3689
  %v3691 = vpop.f32.mrb[0].mxu0
  %3692 = vmatprep.mubr.bf16.mxu0 0
  %3693 = vmatmul.mubr.bf16.gmra.mrb[0].mxu0 %v431
  %v3694 = vpop.f32.mrb[0].mxu0
  %v3695 = vadd.f32 %v3102, %v3694
  %v3696 = vpop.f32.mrb[0].mxu0
  %v3697 = vpop.f32.mrb[0].mxu0
  %v3698 = vadd.f32 %v3105, %v3697
  %v3699 = vpop.f32.mrb[0].mxu0
  %3700 = vmatprep.mubr.bf16.mxu0 0
  %3701 = vmatmul.mubr.bf16.gmra.mrb[0].mxu0 %v432
  %v3702 = vpop.f32.mrb[0].mxu0
  %v3703 = vadd.f32 %v3110, %v3702
  %v3704 = vpop.f32.mrb[0].mxu0
  %v3705 = vpop.f32.mrb[0].mxu0
  %v3706 = vadd.f32 %v3113, %v3705
  %v3707 = vpop.f32.mrb[0].mxu0
  %3708 = vmatprep.mubr.bf16.mxu0 0
  %3709 = vmatmul.mubr.bf16.gmra.mrb[0].mxu0 %v433
  %v3710 = vpop.f32.mrb[0].mxu0
  %v3711 = vadd.f32 %v3118, %v3710
  %v3712 = vpop.f32.mrb[0].mxu0
  %v3713 = vpop.f32.mrb[0].mxu0
  %v3714 = vadd.f32 %v3121, %v3713
  %v3715 = vpop.f32.mrb[0].mxu0
  %3716 = vmatprep.mubr.bf16.mxu0 0
  %3717 = vmatmul.mubr.bf16.gmra.mrb[0].mxu0 %v434
  %v3718 = vpop.f32.mrb[0].mxu0
  %v3719 = vadd.f32 %v3126, %v3718
  %v3720 = vpop.f32.mrb[0].mxu0
  %v3721 = vpop.f32.mrb[0].mxu0
  %v3722 = vadd.f32 %v3129, %v3721
  %v3723 = vpop.f32.mrb[0].mxu0
  %3724 = vmatprep.mubr.bf16.mxu0 0
  %3725 = vmatmul.mubr.bf16.gmra.mrb[0].mxu0 %v435
  %v3726 = vpop.f32.mrb[0].mxu0
  %v3727 = vadd.f32 %v3134, %v3726
  %v3728 = vpop.f32.mrb[0].mxu0
  %v3729 = vpop.f32.mrb[0].mxu0
  %v3730 = vadd.f32 %v3137, %v3729
  %v3731 = vpop.f32.mrb[0].mxu0
  %3732 = vmatprep.mubr.bf16.mxu0 0
  %3733 = vmatmul.mubr.bf16.gmra.mrb[0].mxu0 %v436
  %v3734 = vpop.f32.mrb[0].mxu0
  %v3735 = vadd.f32 %v3142, %v3734
  %v3736 = vpop.f32.mrb[0].mxu0
  %v3737 = vpop.f32.mrb[0].mxu0
  %v3738 = vadd.f32 %v3145, %v3737
  %v3739 = vpop.f32.mrb[0].mxu0
  %3740 = vmatprep.mubr.bf16.mxu0 0
  %3741 = vmatmul.mubr.bf16.gmra.mrb[0].mxu0 %v437
  %v3742 = vpop.f32.mrb[0].mxu0
  %v3743 = vadd.f32 %v3150, %v3742
  %v3744 = vpop.f32.mrb[0].mxu0
  %v3745 = vpop.f32.mrb[0].mxu0
  %v3746 = vadd.f32 %v3153, %v3745
  %v3747 = vpop.f32.mrb[0].mxu0
  %3748 = vmatprep.mubr.bf16.mxu0 0
  %3749 = vmatmul.mubr.bf16.gmra.mrb[0].mxu0 %v438
  %v3750 = vpop.f32.mrb[0].mxu0
  %v3751 = vadd.f32 %v3158, %v3750
  %v3752 = vpop.f32.mrb[0].mxu0
  %v3753 = vpop.f32.mrb[0].mxu0
  %v3754 = vadd.f32 %v3161, %v3753
  %v3755 = vpop.f32.mrb[0].mxu0
  %3756 = vmatprep.mubr.bf16.mxu0 0
  %3757 = vmatmul.mubr.bf16.gmra.mrb[0].mxu0 %v439
  %v3758 = vpop.f32.mrb[0].mxu0
  %v3759 = vadd.f32 %v3166, %v3758
  %v3760 = vpop.f32.mrb[0].mxu0
  %v3761 = vpop.f32.mrb[0].mxu0
  %v3762 = vadd.f32 %v3169, %v3761
  %v3763 = vpop.f32.mrb[0].mxu0
  %3764 = vmatprep.mubr.bf16.mxu0 0
  %3765 = vmatmul.mubr.bf16.gmra.mrb[0].mxu0 %v440
  %v3766 = vpop.f32.mrb[0].mxu0
  %v3767 = vadd.f32 %v3174, %v3766
  %v3768 = vpop.f32.mrb[0].mxu0
  %v3769 = vpop.f32.mrb[0].mxu0
  %v3770 = vadd.f32 %v3177, %v3769
  %v3771 = vpop.f32.mrb[0].mxu0
  %3772 = vmatprep.mubr.bf16.mxu0 0
  %3773 = vmatmul.mubr.bf16.gmra.mrb[0].mxu0 %v441
  %v3774 = vpop.f32.mrb[0].mxu0
  %v3775 = vadd.f32 %v3182, %v3774
  %v3776 = vpop.f32.mrb[0].mxu0
  %v3777 = vpop.f32.mrb[0].mxu0
  %v3778 = vadd.f32 %v3185, %v3777
  %v3779 = vpop.f32.mrb[0].mxu0
  %3780 = vmatprep.mubr.bf16.mxu0 0
  %3781 = vmatmul.mubr.bf16.gmra.mrb[0].mxu0 %v442
  %v3782 = vpop.f32.mrb[0].mxu0
  %v3783 = vadd.f32 %v3190, %v3782
  %v3784 = vpop.f32.mrb[0].mxu0
  %v3785 = vpop.f32.mrb[0].mxu0
  %v3786 = vadd.f32 %v3193, %v3785
  %v3787 = vpop.f32.mrb[0].mxu0
  %3788 = vmatprep.mubr.bf16.mxu0 0
  %3789 = vmatmul.mubr.bf16.gmra.mrb[0].mxu0 %v443
  %v3790 = vpop.f32.mrb[0].mxu0
  %v3791 = vadd.f32 %v3198, %v3790
  %v3792 = vpop.f32.mrb[0].mxu0
  %v3793 = vpop.f32.mrb[0].mxu0
  %v3794 = vadd.f32 %v3201, %v3793
  %v3795 = vpop.f32.mrb[0].mxu0
  %3796 = vmatprep.mubr.bf16.mxu0 0
  %3797 = vmatmul.mubr.bf16.gmra.mrb[0].mxu0 %v444
  %v3798 = vpop.f32.mrb[0].mxu0
  %v3799 = vadd.f32 %v3206, %v3798
  %v3800 = vpop.f32.mrb[0].mxu0
  %v3801 = vpop.f32.mrb[0].mxu0
  %v3802 = vadd.f32 %v3209, %v3801
  %v3803 = vpop.f32.mrb[0].mxu0
  %3804 = vmatprep.mubr.bf16.mxu0 0
  %3805 = vmatmul.mubr.bf16.gmra.mrb[0].mxu0 %v445
  %v3806 = vpop.f32.mrb[0].mxu0
  %v3807 = vadd.f32 %v3214, %v3806
  %v3808 = vpop.f32.mrb[0].mxu0
  %v3809 = vpop.f32.mrb[0].mxu0
  %v3810 = vadd.f32 %v3217, %v3809
  %v3811 = vpop.f32.mrb[0].mxu0
  %3812 = vmatprep.mubr.bf16.mxu0 0
  %3813 = vmatmul.mubr.bf16.gmra.mrb[0].mxu0 %v446
  %v3814 = vpop.f32.mrb[0].mxu0
  %v3815 = vadd.f32 %v3222, %v3814
  %v3816 = vpop.f32.mrb[0].mxu0
  %v3817 = vpop.f32.mrb[0].mxu0
  %v3818 = vadd.f32 %v3225, %v3817
  %v3819 = vpop.f32.mrb[0].mxu0
  %3820 = vmatprep.mubr.bf16.mxu0 0
  %3821 = vmatmul.mubr.bf16.gmra.mrb[0].mxu0 %v447
  %v3822 = vpop.f32.mrb[0].mxu0
  %v3823 = vadd.f32 %v3230, %v3822
  %v3824 = vpop.f32.mrb[0].mxu0
  %v3825 = vpop.f32.mrb[0].mxu0
  %v3826 = vadd.f32 %v3233, %v3825
  %v3827 = vpop.f32.mrb[0].mxu0
  %3828 = vmatprep.mubr.bf16.mxu0 0
  %3829 = vmatmul.mubr.bf16.gmra.mrb[0].mxu0 %v448
  %v3830 = vpop.f32.mrb[0].mxu0
  %v3831 = vadd.f32 %v3238, %v3830
  %v3832 = vpop.f32.mrb[0].mxu0
  %v3833 = vpop.f32.mrb[0].mxu0
  %v3834 = vadd.f32 %v3241, %v3833
  %v3835 = vpop.f32.mrb[0].mxu0
  %3836 = vmatprep.mubr.bf16.mxu0 0
  %3837 = vmatmul.mubr.bf16.gmra.mrb[0].mxu0 %v449
  %v3838 = vpop.f32.mrb[0].mxu0
  %v3839 = vadd.f32 %v3246, %v3838
  %v3840 = vpop.f32.mrb[0].mxu0
  %v3841 = vpop.f32.mrb[0].mxu0
  %v3842 = vadd.f32 %v3249, %v3841
  %v3843 = vpop.f32.mrb[0].mxu0
  %3844 = vmatprep.mubr.bf16.mxu0 0
  %3845 = vmatmul.mubr.bf16.gmra.mrb[0].mxu0 %v450
  %v3846 = vpop.f32.mrb[0].mxu0
  %v3847 = vadd.f32 %v3254, %v3846
  %v3848 = vpop.f32.mrb[0].mxu0
  %v3849 = vpop.f32.mrb[0].mxu0
  %v3850 = vadd.f32 %v3257, %v3849
  %v3851 = vpop.f32.mrb[0].mxu0
  %3852 = vmatprep.mubr.bf16.mxu0 0
  %3853 = vmatmul.mubr.bf16.gmra.mrb[0].mxu0 %v451
  %v3854 = vpop.f32.mrb[0].mxu0
  %v3855 = vadd.f32 %v3262, %v3854
  %v3856 = vpop.f32.mrb[0].mxu0
  %v3857 = vpop.f32.mrb[0].mxu0
  %v3858 = vadd.f32 %v3265, %v3857
  %v3859 = vpop.f32.mrb[0].mxu0
  %3860 = vmatprep.mubr.bf16.mxu0 0
  %3861 = vmatmul.mubr.bf16.gmra.mrb[0].mxu0 %v452
  %v3862 = vpop.f32.mrb[0].mxu0
  %v3863 = vadd.f32 %v3270, %v3862
  %v3864 = vpop.f32.mrb[0].mxu0
  %v3865 = vpop.f32.mrb[0].mxu0
  %v3866 = vadd.f32 %v3273, %v3865
  %v3867 = vpop.f32.mrb[0].mxu0
  %3868 = vmatprep.mubr.bf16.mxu0 0
  %3869 = vmatmul.mubr.bf16.gmra.mrb[0].mxu0 %v453
  %v3870 = vpop.f32.mrb[0].mxu0
  %v3871 = vadd.f32 %v3278, %v3870
  %v3872 = vpop.f32.mrb[0].mxu0
  %v3873 = vpop.f32.mrb[0].mxu0
  %v3874 = vadd.f32 %v3281, %v3873
  %v3875 = vpop.f32.mrb[0].mxu0
  %3876 = vmatprep.mubr.bf16.mxu0 0
  %3877 = vmatmul.mubr.bf16.gmra.mrb[0].mxu0 %v454
  %v3878 = vpop.f32.mrb[0].mxu0
  %v3879 = vadd.f32 %v3286, %v3878
  %v3880 = vpop.f32.mrb[0].mxu0
  %v3881 = vpop.f32.mrb[0].mxu0
  %v3882 = vadd.f32 %v3289, %v3881
  %v3883 = vpop.f32.mrb[0].mxu0
  %3884 = vmatprep.mubr.bf16.mxu0 0
  %3885 = vmatmul.mubr.bf16.gmra.mrb[0].mxu0 %v455
  %v3886 = vpop.f32.mrb[0].mxu0
  %v3887 = vadd.f32 %v3294, %v3886
  %v3888 = vpop.f32.mrb[0].mxu0
  %v3889 = vpop.f32.mrb[0].mxu0
  %v3890 = vadd.f32 %v3297, %v3889
  %v3891 = vpop.f32.mrb[0].mxu0
  %3892 = vmatprep.mubr.bf16.mxu0 0
  %3893 = vmatmul.mubr.bf16.gmra.mrb[0].mxu0 %v456
  %v3894 = vpop.f32.mrb[0].mxu0
  %v3895 = vadd.f32 %v3302, %v3894
  %v3896 = vpop.f32.mrb[0].mxu0
  %v3897 = vpop.f32.mrb[0].mxu0
  %v3898 = vadd.f32 %v3305, %v3897
  %v3899 = vpop.f32.mrb[0].mxu0
  %3900 = vmatprep.mubr.bf16.mxu0 0
  %3901 = vmatmul.mubr.bf16.gmra.mrb[0].mxu0 %v457
  %v3902 = vpop.f32.mrb[0].mxu0
  %v3903 = vadd.f32 %v3310, %v3902
  %v3904 = vpop.f32.mrb[0].mxu0
  %v3905 = vpop.f32.mrb[0].mxu0
  %v3906 = vadd.f32 %v3313, %v3905
  %v3907 = vpop.f32.mrb[0].mxu0
  %3908 = vmatprep.mubr.bf16.mxu0 0
  %3909 = vmatmul.mubr.bf16.gmra.mrb[0].mxu0 %v458
  %v3910 = vpop.f32.mrb[0].mxu0
  %v3911 = vadd.f32 %v3318, %v3910
  %v3912 = vpop.f32.mrb[0].mxu0
  %v3913 = vpop.f32.mrb[0].mxu0
  %v3914 = vadd.f32 %v3321, %v3913
  %v3915 = vpop.f32.mrb[0].mxu0
  %3916 = vmatprep.mubr.bf16.mxu0 0
  %3917 = vmatmul.mubr.bf16.gmra.mrb[0].mxu0 %v459
  %v3918 = vpop.f32.mrb[0].mxu0
  %v3919 = vadd.f32 %v3326, %v3918
  %v3920 = vpop.f32.mrb[0].mxu0
  %v3921 = vpop.f32.mrb[0].mxu0
  %v3922 = vadd.f32 %v3329, %v3921
  %v3923 = vpop.f32.mrb[0].mxu0
  %3924 = vmatprep.mubr.bf16.mxu0 0
  %3925 = vmatmul.mubr.bf16.gmra.mrb[0].mxu0 %v460
  %v3926 = vpop.f32.mrb[0].mxu0
  %v3927 = vadd.f32 %v3334, %v3926
  %v3928 = vpop.f32.mrb[0].mxu0
  %v3929 = vpop.f32.mrb[0].mxu0
  %v3930 = vadd.f32 %v3337, %v3929
  %v3931 = vpop.f32.mrb[0].mxu0
  %3932 = vmatprep.mubr.bf16.mxu0 0
  %3933 = vmatmul.mubr.bf16.gmra.mrb[0].mxu0 %v461
  %v3934 = vpop.f32.mrb[0].mxu0
  %v3935 = vadd.f32 %v3342, %v3934
  %v3936 = vpop.f32.mrb[0].mxu0
  %v3937 = vpop.f32.mrb[0].mxu0
  %v3938 = vadd.f32 %v3345, %v3937
  %v3939 = vpop.f32.mrb[0].mxu0
  %3940 = vmatprep.mubr.bf16.mxu0 0
  %3941 = vmatmul.mubr.bf16.gmra.mrb[0].mxu0 %v462
  %v3942 = vpop.f32.mrb[0].mxu0
  %v3943 = vadd.f32 %v3350, %v3942
  %v3944 = vpop.f32.mrb[0].mxu0
  %v3945 = vpop.f32.mrb[0].mxu0
  %v3946 = vadd.f32 %v3353, %v3945
  %v3947 = vpop.f32.mrb[0].mxu0
  %3948 = vmatprep.mubr.bf16.mxu0 0
  %3949 = vmatmul.mubr.bf16.gmra.mrb[0].mxu0 %v463
  %v3950 = vpop.f32.mrb[0].mxu0
  %v3951 = vadd.f32 %v3358, %v3950
  %v3952 = vpop.f32.mrb[0].mxu0
  %v3953 = vpop.f32.mrb[0].mxu0
  %v3954 = vadd.f32 %v3361, %v3953
  %v3955 = vpop.f32.mrb[0].mxu0
  %3956 = vmatprep.mubr.bf16.mxu0 0
  %3957 = vmatmul.mubr.bf16.gmra.mrb[0].mxu0 %v464
  %v3958 = vpop.f32.mrb[0].mxu0
  %v3959 = vadd.f32 %v3366, %v3958
  %v3960 = vpop.f32.mrb[0].mxu0
  %v3961 = vpop.f32.mrb[0].mxu0
  %v3962 = vadd.f32 %v3369, %v3961
  %v3963 = vpop.f32.mrb[0].mxu0
  %3964 = vmatprep.mubr.bf16.mxu0 0
  %3965 = vmatmul.mubr.bf16.gmra.mrb[0].mxu0 %v465
  %v3966 = vpop.f32.mrb[0].mxu0
  %v3967 = vadd.f32 %v3374, %v3966
  %v3968 = vpop.f32.mrb[0].mxu0
  %v3969 = vpop.f32.mrb[0].mxu0
  %v3970 = vadd.f32 %v3377, %v3969
  %v3971 = vpop.f32.mrb[0].mxu0
  %3972 = vmatprep.mubr.bf16.mxu0 0
  %3973 = vmatmul.mubr.bf16.gmra.mrb[0].mxu0 %v466
  %v3974 = vpop.f32.mrb[0].mxu0
  %v3975 = vadd.f32 %v3382, %v3974
  %v3976 = vpop.f32.mrb[0].mxu0
  %v3977 = vpop.f32.mrb[0].mxu0
  %v3978 = vadd.f32 %v3385, %v3977
  %v3979 = vpop.f32.mrb[0].mxu0
  %3980 = vmatprep.mubr.bf16.mxu0 0
  %3981 = vmatmul.mubr.bf16.gmra.mrb[0].mxu0 %v467
  %v3982 = vpop.f32.mrb[0].mxu0
  %v3983 = vadd.f32 %v3390, %v3982
  %v3984 = vpop.f32.mrb[0].mxu0
  %v3985 = vpop.f32.mrb[0].mxu0
  %v3986 = vadd.f32 %v3393, %v3985
  %v3987 = vpop.f32.mrb[0].mxu0
  %3988 = vmatprep.mubr.bf16.mxu0 0
  %3989 = vmatmul.mubr.bf16.gmra.mrb[0].mxu0 %v468
  %v3990 = vpop.f32.mrb[0].mxu0
  %v3991 = vadd.f32 %v3398, %v3990
  %v3992 = vpop.f32.mrb[0].mxu0
  %v3993 = vpop.f32.mrb[0].mxu0
  %v3994 = vadd.f32 %v3401, %v3993
  %v3995 = vpop.f32.mrb[0].mxu0
  %3996 = vmatprep.mubr.bf16.mxu0 0
  %3997 = vmatmul.mubr.bf16.gmra.mrb[0].mxu0 %v469
  %v3998 = vpop.f32.mrb[0].mxu0
  %v3999 = vadd.f32 %v3406, %v3998
  %v4000 = vpop.f32.mrb[0].mxu0
  %v4001 = vpop.f32.mrb[0].mxu0
  %v4002 = vadd.f32 %v3409, %v4001
  %v4003 = vpop.f32.mrb[0].mxu0
  %4004 = vmatprep.mubr.bf16.mxu0 0
  %4005 = vmatmul.mubr.bf16.gmra.mrb[0].mxu0 %v470
  %v4006 = vpop.f32.mrb[0].mxu0
  %v4007 = vadd.f32 %v3414, %v4006
  %v4008 = vpop.f32.mrb[0].mxu0
  %v4009 = vpop.f32.mrb[0].mxu0
  %v4010 = vadd.f32 %v3417, %v4009
  %v4011 = vpop.f32.mrb[0].mxu0
  %4012 = vmatprep.mubr.bf16.mxu0 0
  %4013 = vmatmul.mubr.bf16.gmra.mrb[0].mxu0 %v471
  %v4014 = vpop.f32.mrb[0].mxu0
  %v4015 = vadd.f32 %v3422, %v4014
  %v4016 = vpop.f32.mrb[0].mxu0
  %v4017 = vpop.f32.mrb[0].mxu0
  %v4018 = vadd.f32 %v3425, %v4017
  %v4019 = vpop.f32.mrb[0].mxu0
  %4020 = vmatprep.mubr.bf16.mxu0 0
  %4021 = vmatmul.mubr.bf16.gmra.mrb[0].mxu0 %v472
  %v4022 = vpop.f32.mrb[0].mxu0
  %v4023 = vadd.f32 %v3430, %v4022
  %v4024 = vpop.f32.mrb[0].mxu0
  %v4025 = vpop.f32.mrb[0].mxu0
  %v4026 = vadd.f32 %v3433, %v4025
  %v4027 = vpop.f32.mrb[0].mxu0
  %4028 = vmatprep.mubr.bf16.mxu0 0
  %4029 = vmatmul.mubr.bf16.gmra.mrb[0].mxu0 %v473
  %v4030 = vpop.f32.mrb[0].mxu0
  %v4031 = vadd.f32 %v3438, %v4030
  %v4032 = vpop.f32.mrb[0].mxu0
  %v4033 = vpop.f32.mrb[0].mxu0
  %v4034 = vadd.f32 %v3441, %v4033
  %v4035 = vpop.f32.mrb[0].mxu0
  %4036 = vmatprep.mubr.bf16.mxu0 0
  %4037 = vmatmul.mubr.bf16.gmra.mrb[0].mxu0 %v474
  %v4038 = vpop.f32.mrb[0].mxu0
  %v4039 = vadd.f32 %v3446, %v4038
  %v4040 = vpop.f32.mrb[0].mxu0
  %v4041 = vpop.f32.mrb[0].mxu0
  %v4042 = vadd.f32 %v3449, %v4041
  %v4043 = vpop.f32.mrb[0].mxu0
  %4044 = vmatprep.mubr.bf16.mxu0 0
  %4045 = vmatmul.mubr.bf16.gmra.mrb[0].mxu0 %v475
  %v4046 = vpop.f32.mrb[0].mxu0
  %v4047 = vadd.f32 %v3454, %v4046
  %v4048 = vpop.f32.mrb[0].mxu0
  %v4049 = vpop.f32.mrb[0].mxu0
  %v4050 = vadd.f32 %v3457, %v4049
  %v4051 = vpop.f32.mrb[0].mxu0
  %4052 = vmatprep.mubr.bf16.mxu0 0
  %4053 = vmatmul.mubr.bf16.gmra.mrb[0].mxu0 %v476
  %v4054 = vpop.f32.mrb[0].mxu0
  %v4055 = vadd.f32 %v3462, %v4054
  %v4056 = vpop.f32.mrb[0].mxu0
  %v4057 = vpop.f32.mrb[0].mxu0
  %v4058 = vadd.f32 %v3465, %v4057
  %v4059 = vpop.f32.mrb[0].mxu0
  %4060 = vmatprep.mubr.bf16.mxu0 0
  %4061 = vmatmul.mubr.bf16.gmra.mrb[0].mxu0 %v477
  %v4062 = vpop.f32.mrb[0].mxu0
  %v4063 = vadd.f32 %v3470, %v4062
  %v4064 = vpop.f32.mrb[0].mxu0
  %v4065 = vpop.f32.mrb[0].mxu0
  %v4066 = vadd.f32 %v3473, %v4065
  %v4067 = vpop.f32.mrb[0].mxu0
  %4068 = vmatprep.mubr.bf16.mxu0 0
  %4069 = vmatmul.mubr.bf16.gmra.mrb[0].mxu0 %v478
  %v4070 = vpop.f32.mrb[0].mxu0
  %v4071 = vadd.f32 %v3478, %v4070
  %v4072 = vpop.f32.mrb[0].mxu0
  %v4073 = vpop.f32.mrb[0].mxu0
  %v4074 = vadd.f32 %v3481, %v4073
  %v4075 = vpop.f32.mrb[0].mxu0
  %4076 = vmatprep.mubr.bf16.mxu0 0
  %4077 = vmatmul.mubr.bf16.gmra.mrb[0].mxu0 %v479
  %v4078 = vpop.f32.mrb[0].mxu0
  %v4079 = vadd.f32 %v3486, %v4078
  %v4080 = vpop.f32.mrb[0].mxu0
  %v4081 = vpop.f32.mrb[0].mxu0
  %v4082 = vadd.f32 %v3489, %v4081
  %v4083 = vpop.f32.mrb[0].mxu0
  %4084 = vmatprep.mubr.bf16.mxu0 0
  %4085 = vmatmul.mubr.bf16.gmra.mrb[0].mxu0 %v480
  %v4086 = vpop.f32.mrb[0].mxu0
  %v4087 = vadd.f32 %v3494, %v4086
  %v4088 = vpop.f32.mrb[0].mxu0
  %v4089 = vpop.f32.mrb[0].mxu0
  %v4090 = vadd.f32 %v3497, %v4089
  %v4091 = vpop.f32.mrb[0].mxu0
  %4092 = vmatprep.mubr.bf16.mxu0 0
  %4093 = vmatmul.mubr.bf16.gmra.mrb[0].mxu0 %v481
  %v4094 = vpop.f32.mrb[0].mxu0
  %v4095 = vadd.f32 %v3502, %v4094
  %v4096 = vpop.f32.mrb[0].mxu0
  %v4097 = vpop.f32.mrb[0].mxu0
  %v4098 = vadd.f32 %v3505, %v4097
  %v4099 = vpop.f32.mrb[0].mxu0
  %4100 = vmatprep.mubr.bf16.mxu0 0
  %4101 = vmatmul.mubr.bf16.gmra.mrb[0].mxu0 %v482
  %v4102 = vpop.f32.mrb[0].mxu0
  %v4103 = vadd.f32 %v3510, %v4102
  %v4104 = vpop.f32.mrb[0].mxu0
  %v4105 = vpop.f32.mrb[0].mxu0
  %v4106 = vadd.f32 %v3513, %v4105
  %v4107 = vpop.f32.mrb[0].mxu0
  %4108 = vmatprep.mubr.bf16.mxu0 0
  %4109 = vmatmul.mubr.bf16.gmra.mrb[0].mxu0 %v483
  %v4110 = vpop.f32.mrb[0].mxu0
  %v4111 = vadd.f32 %v3518, %v4110
  %v4112 = vpop.f32.mrb[0].mxu0
  %v4113 = vpop.f32.mrb[0].mxu0
  %v4114 = vadd.f32 %v3521, %v4113
  %v4115 = vpop.f32.mrb[0].mxu0
  %4116 = vmatprep.mubr.bf16.mxu0 0
  %4117 = vmatmul.mubr.bf16.gmra.mrb[0].mxu0 %v484
  %v4118 = vpop.f32.mrb[0].mxu0
  %v4119 = vadd.f32 %v3526, %v4118
  %v4120 = vpop.f32.mrb[0].mxu0
  %v4121 = vpop.f32.mrb[0].mxu0
  %v4122 = vadd.f32 %v3529, %v4121
  %v4123 = vpop.f32.mrb[0].mxu0
  %4124 = vmatprep.mubr.bf16.mxu0 0
  %4125 = vmatmul.mubr.bf16.gmra.mrb[0].mxu0 %v485
  %v4126 = vpop.f32.mrb[0].mxu0
  %v4127 = vadd.f32 %v3534, %v4126
  %v4128 = vpop.f32.mrb[0].mxu0
  %v4129 = vpop.f32.mrb[0].mxu0
  %v4130 = vadd.f32 %v3537, %v4129
  %v4131 = vpop.f32.mrb[0].mxu0
  %4132 = vmatprep.mubr.bf16.mxu0 0
  %4133 = vmatmul.mubr.bf16.gmra.mrb[0].mxu0 %v486
  %v4134 = vpop.f32.mrb[0].mxu0
  %v4135 = vadd.f32 %v3542, %v4134
  %v4136 = vpop.f32.mrb[0].mxu0
  %v4137 = vpop.f32.mrb[0].mxu0
  %v4138 = vadd.f32 %v3545, %v4137
  %v4139 = vpop.f32.mrb[0].mxu0
  %4140 = vmatprep.mubr.bf16.mxu0 0
  %4141 = vmatmul.mubr.bf16.gmra.mrb[0].mxu0 %v487
  %v4142 = vpop.f32.mrb[0].mxu0
  %v4143 = vadd.f32 %v3550, %v4142
  %v4144 = vpop.f32.mrb[0].mxu0
  %v4145 = vpop.f32.mrb[0].mxu0
  %v4146 = vadd.f32 %v3553, %v4145
  %v4147 = vpop.f32.mrb[0].mxu0
  %4148 = vmatprep.mubr.bf16.mxu0 0
  %4149 = vmatmul.mubr.bf16.gmra.mrb[0].mxu0 %v488
  %v4150 = vpop.f32.mrb[0].mxu0
  %v4151 = vadd.f32 %v3558, %v4150
  %v4152 = vpop.f32.mrb[0].mxu0
  %v4153 = vpop.f32.mrb[0].mxu0
  %v4154 = vadd.f32 %v3561, %v4153
  %v4155 = vpop.f32.mrb[0].mxu0
  %4156 = vmatprep.mubr.bf16.mxu0 0
  %4157 = vmatmul.mubr.bf16.gmra.mrb[0].mxu0 %v489
  %v4158 = vpop.f32.mrb[0].mxu0
  %v4159 = vadd.f32 %v3566, %v4158
  %v4160 = vpop.f32.mrb[0].mxu0
  %v4161 = vpop.f32.mrb[0].mxu0
  %v4162 = vadd.f32 %v3569, %v4161
  %v4163 = vpop.f32.mrb[0].mxu0
  %4164 = vmatprep.mubr.bf16.mxu0 0
  %4165 = vmatmul.mubr.bf16.gmra.mrb[0].mxu0 %v490
  %v4166 = vpop.f32.mrb[0].mxu0
  %v4167 = vadd.f32 %v3574, %v4166
  %v4168 = vpop.f32.mrb[0].mxu0
  %v4169 = vpop.f32.mrb[0].mxu0
  %v4170 = vadd.f32 %v3577, %v4169
  %v4171 = vpop.f32.mrb[0].mxu0
  %4172 = vmatprep.mubr.bf16.mxu0 0
  %4173 = vmatmul.mubr.bf16.gmra.mrb[0].mxu0 %v491
  %v4174 = vpop.f32.mrb[0].mxu0
  %v4175 = vadd.f32 %v3582, %v4174
  %v4176 = vpop.f32.mrb[0].mxu0
  %v4177 = vpop.f32.mrb[0].mxu0
  %v4178 = vadd.f32 %v3585, %v4177
  %v4179 = vpop.f32.mrb[0].mxu0
  %4180 = vdwg.mxu0
  %s4181 = scalar_lea.vmem %s2, 3
  %v4182 = vld [vmem:[%s4181] sm:$0x1]
  %v4184 = vlaneseq
  %v4185 = vshrl.u32 %v4184, 7
  %v4186 = vsub.s32 0, %v4185
  %v4187 = vrot.slane %v4182, %v4186
  %v4189 = vadd.f32 %v3671, %v4187
  %v4190 = vadd.f32 %v3674, %v4187
  %v4191 = vadd.f32 %v3679, %v4187
  %v4192 = vadd.f32 %v3682, %v4187
  %v4193 = vadd.f32 %v3687, %v4187
  %v4194 = vadd.f32 %v3690, %v4187
  %v4195 = vadd.f32 %v3695, %v4187
  %v4196 = vadd.f32 %v3698, %v4187
  %v4197 = vadd.f32 %v3703, %v4187
  %v4198 = vadd.f32 %v3706, %v4187
  %v4199 = vadd.f32 %v3711, %v4187
  %v4200 = vadd.f32 %v3714, %v4187
  %v4201 = vadd.f32 %v3719, %v4187
  %v4202 = vadd.f32 %v3722, %v4187
  %v4203 = vadd.f32 %v3727, %v4187
  %v4204 = vadd.f32 %v3730, %v4187
  %v4205 = vadd.f32 %v3735, %v4187
  %v4206 = vadd.f32 %v3738, %v4187
  %v4207 = vadd.f32 %v3743, %v4187
  %v4208 = vadd.f32 %v3746, %v4187
  %v4209 = vadd.f32 %v3751, %v4187
  %v4210 = vadd.f32 %v3754, %v4187
  %v4211 = vadd.f32 %v3759, %v4187
  %v4212 = vadd.f32 %v3762, %v4187
  %v4213 = vadd.f32 %v3767, %v4187
  %v4214 = vadd.f32 %v3770, %v4187
  %v4215 = vadd.f32 %v3775, %v4187
  %v4216 = vadd.f32 %v3778, %v4187
  %v4217 = vadd.f32 %v3783, %v4187
  %v4218 = vadd.f32 %v3786, %v4187
  %v4219 = vadd.f32 %v3791, %v4187
  %v4220 = vadd.f32 %v3794, %v4187
  %v4221 = vadd.f32 %v3799, %v4187
  %v4222 = vadd.f32 %v3802, %v4187
  %v4223 = vadd.f32 %v3807, %v4187
  %v4224 = vadd.f32 %v3810, %v4187
  %v4225 = vadd.f32 %v3815, %v4187
  %v4226 = vadd.f32 %v3818, %v4187
  %v4227 = vadd.f32 %v3823, %v4187
  %v4228 = vadd.f32 %v3826, %v4187
  %v4229 = vadd.f32 %v3831, %v4187
  %v4230 = vadd.f32 %v3834, %v4187
  %v4231 = vadd.f32 %v3839, %v4187
  %v4232 = vadd.f32 %v3842, %v4187
  %v4233 = vadd.f32 %v3847, %v4187
  %v4234 = vadd.f32 %v3850, %v4187
  %v4235 = vadd.f32 %v3855, %v4187
  %v4236 = vadd.f32 %v3858, %v4187
  %v4237 = vadd.f32 %v3863, %v4187
  %v4238 = vadd.f32 %v3866, %v4187
  %v4239 = vadd.f32 %v3871, %v4187
  %v4240 = vadd.f32 %v3874, %v4187
  %v4241 = vadd.f32 %v3879, %v4187
  %v4242 = vadd.f32 %v3882, %v4187
  %v4243 = vadd.f32 %v3887, %v4187
  %v4244 = vadd.f32 %v3890, %v4187
  %v4245 = vadd.f32 %v3895, %v4187
  %v4246 = vadd.f32 %v3898, %v4187
  %v4247 = vadd.f32 %v3903, %v4187
  %v4248 = vadd.f32 %v3906, %v4187
  %v4249 = vadd.f32 %v3911, %v4187
  %v4250 = vadd.f32 %v3914, %v4187
  %v4251 = vadd.f32 %v3919, %v4187
  %v4252 = vadd.f32 %v3922, %v4187
  %v4253 = vadd.f32 %v3927, %v4187
  %v4254 = vadd.f32 %v3930, %v4187
  %v4255 = vadd.f32 %v3935, %v4187
  %v4256 = vadd.f32 %v3938, %v4187
  %v4257 = vadd.f32 %v3943, %v4187
  %v4258 = vadd.f32 %v3946, %v4187
  %v4259 = vadd.f32 %v3951, %v4187
  %v4260 = vadd.f32 %v3954, %v4187
  %v4261 = vadd.f32 %v3959, %v4187
  %v4262 = vadd.f32 %v3962, %v4187
  %v4263 = vadd.f32 %v3967, %v4187
  %v4264 = vadd.f32 %v3970, %v4187
  %v4265 = vadd.f32 %v3975, %v4187
  %v4266 = vadd.f32 %v3978, %v4187
  %v4267 = vadd.f32 %v3983, %v4187
  %v4268 = vadd.f32 %v3986, %v4187
  %v4269 = vadd.f32 %v3991, %v4187
  %v4270 = vadd.f32 %v3994, %v4187
  %v4271 = vadd.f32 %v3999, %v4187
  %v4272 = vadd.f32 %v4002, %v4187
  %v4273 = vadd.f32 %v4007, %v4187
  %v4274 = vadd.f32 %v4010, %v4187
  %v4275 = vadd.f32 %v4015, %v4187
  %v4276 = vadd.f32 %v4018, %v4187
  %v4277 = vadd.f32 %v4023, %v4187
  %v4278 = vadd.f32 %v4026, %v4187
  %v4279 = vadd.f32 %v4031, %v4187
  %v4280 = vadd.f32 %v4034, %v4187
  %v4281 = vadd.f32 %v4039, %v4187
  %v4282 = vadd.f32 %v4042, %v4187
  %v4283 = vadd.f32 %v4047, %v4187
  %v4284 = vadd.f32 %v4050, %v4187
  %v4285 = vadd.f32 %v4055, %v4187
  %v4286 = vadd.f32 %v4058, %v4187
  %v4287 = vadd.f32 %v4063, %v4187
  %v4288 = vadd.f32 %v4066, %v4187
  %v4289 = vadd.f32 %v4071, %v4187
  %v4290 = vadd.f32 %v4074, %v4187
  %v4291 = vadd.f32 %v4079, %v4187
  %v4292 = vadd.f32 %v4082, %v4187
  %v4293 = vadd.f32 %v4087, %v4187
  %v4294 = vadd.f32 %v4090, %v4187
  %v4295 = vadd.f32 %v4095, %v4187
  %v4296 = vadd.f32 %v4098, %v4187
  %v4297 = vadd.f32 %v4103, %v4187
  %v4298 = vadd.f32 %v4106, %v4187
  %v4299 = vadd.f32 %v4111, %v4187
  %v4300 = vadd.f32 %v4114, %v4187
  %v4301 = vadd.f32 %v4119, %v4187
  %v4302 = vadd.f32 %v4122, %v4187
  %v4303 = vadd.f32 %v4127, %v4187
  %v4304 = vadd.f32 %v4130, %v4187
  %v4305 = vadd.f32 %v4135, %v4187
  %v4306 = vadd.f32 %v4138, %v4187
  %v4307 = vadd.f32 %v4143, %v4187
  %v4308 = vadd.f32 %v4146, %v4187
  %v4309 = vadd.f32 %v4151, %v4187
  %v4310 = vadd.f32 %v4154, %v4187
  %v4311 = vadd.f32 %v4159, %v4187
  %v4312 = vadd.f32 %v4162, %v4187
  %v4313 = vadd.f32 %v4167, %v4187
  %v4314 = vadd.f32 %v4170, %v4187
  %v4315 = vadd.f32 %v4175, %v4187
  %v4316 = vadd.f32 %v4178, %v4187
  %v4317 = vmax.f32 %v4189, 0.0
  %v4318 = vmax.f32 %v4190, 0.0
  %v4319 = vmax.f32 %v4191, 0.0
  %v4320 = vmax.f32 %v4192, 0.0
  %v4321 = vmax.f32 %v4193, 0.0
  %v4322 = vmax.f32 %v4194, 0.0
  %v4323 = vmax.f32 %v4195, 0.0
  %v4324 = vmax.f32 %v4196, 0.0
  %v4325 = vmax.f32 %v4197, 0.0
  %v4326 = vmax.f32 %v4198, 0.0
  %v4327 = vmax.f32 %v4199, 0.0
  %v4328 = vmax.f32 %v4200, 0.0
  %v4329 = vmax.f32 %v4201, 0.0
  %v4330 = vmax.f32 %v4202, 0.0
  %v4331 = vmax.f32 %v4203, 0.0
  %v4332 = vmax.f32 %v4204, 0.0
  %v4333 = vmax.f32 %v4205, 0.0
  %v4334 = vmax.f32 %v4206, 0.0
  %v4335 = vmax.f32 %v4207, 0.0
  %v4336 = vmax.f32 %v4208, 0.0
  %v4337 = vmax.f32 %v4209, 0.0
  %v4338 = vmax.f32 %v4210, 0.0
  %v4339 = vmax.f32 %v4211, 0.0
  %v4340 = vmax.f32 %v4212, 0.0
  %v4341 = vmax.f32 %v4213, 0.0
  %v4342 = vmax.f32 %v4214, 0.0
  %v4343 = vmax.f32 %v4215, 0.0
  %v4344 = vmax.f32 %v4216, 0.0
  %v4345 = vmax.f32 %v4217, 0.0
  %v4346 = vmax.f32 %v4218, 0.0
  %v4347 = vmax.f32 %v4219, 0.0
  %v4348 = vmax.f32 %v4220, 0.0
  %v4349 = vmax.f32 %v4221, 0.0
  %v4350 = vmax.f32 %v4222, 0.0
  %v4351 = vmax.f32 %v4223, 0.0
  %v4352 = vmax.f32 %v4224, 0.0
  %v4353 = vmax.f32 %v4225, 0.0
  %v4354 = vmax.f32 %v4226, 0.0
  %v4355 = vmax.f32 %v4227, 0.0
  %v4356 = vmax.f32 %v4228, 0.0
  %v4357 = vmax.f32 %v4229, 0.0
  %v4358 = vmax.f32 %v4230, 0.0
  %v4359 = vmax.f32 %v4231, 0.0
  %v4360 = vmax.f32 %v4232, 0.0
  %v4361 = vmax.f32 %v4233, 0.0
  %v4362 = vmax.f32 %v4234, 0.0
  %v4363 = vmax.f32 %v4235, 0.0
  %v4364 = vmax.f32 %v4236, 0.0
  %v4365 = vmax.f32 %v4237, 0.0
  %v4366 = vmax.f32 %v4238, 0.0
  %v4367 = vmax.f32 %v4239, 0.0
  %v4368 = vmax.f32 %v4240, 0.0
  %v4369 = vmax.f32 %v4241, 0.0
  %v4370 = vmax.f32 %v4242, 0.0
  %v4371 = vmax.f32 %v4243, 0.0
  %v4372 = vmax.f32 %v4244, 0.0
  %v4373 = vmax.f32 %v4245, 0.0
  %v4374 = vmax.f32 %v4246, 0.0
  %v4375 = vmax.f32 %v4247, 0.0
  %v4376 = vmax.f32 %v4248, 0.0
  %v4377 = vmax.f32 %v4249, 0.0
  %v4378 = vmax.f32 %v4250, 0.0
  %v4379 = vmax.f32 %v4251, 0.0
  %v4380 = vmax.f32 %v4252, 0.0
  %v4381 = vmax.f32 %v4253, 0.0
  %v4382 = vmax.f32 %v4254, 0.0
  %v4383 = vmax.f32 %v4255, 0.0
  %v4384 = vmax.f32 %v4256, 0.0
  %v4385 = vmax.f32 %v4257, 0.0
  %v4386 = vmax.f32 %v4258, 0.0
  %v4387 = vmax.f32 %v4259, 0.0
  %v4388 = vmax.f32 %v4260, 0.0
  %v4389 = vmax.f32 %v4261, 0.0
  %v4390 = vmax.f32 %v4262, 0.0
  %v4391 = vmax.f32 %v4263, 0.0
  %v4392 = vmax.f32 %v4264, 0.0
  %v4393 = vmax.f32 %v4265, 0.0
  %v4394 = vmax.f32 %v4266, 0.0
  %v4395 = vmax.f32 %v4267, 0.0
  %v4396 = vmax.f32 %v4268, 0.0
  %v4397 = vmax.f32 %v4269, 0.0
  %v4398 = vmax.f32 %v4270, 0.0
  %v4399 = vmax.f32 %v4271, 0.0
  %v4400 = vmax.f32 %v4272, 0.0
  %v4401 = vmax.f32 %v4273, 0.0
  %v4402 = vmax.f32 %v4274, 0.0
  %v4403 = vmax.f32 %v4275, 0.0
  %v4404 = vmax.f32 %v4276, 0.0
  %v4405 = vmax.f32 %v4277, 0.0
  %v4406 = vmax.f32 %v4278, 0.0
  %v4407 = vmax.f32 %v4279, 0.0
  %v4408 = vmax.f32 %v4280, 0.0
  %v4409 = vmax.f32 %v4281, 0.0
  %v4410 = vmax.f32 %v4282, 0.0
  %v4411 = vmax.f32 %v4283, 0.0
  %v4412 = vmax.f32 %v4284, 0.0
  %v4413 = vmax.f32 %v4285, 0.0
  %v4414 = vmax.f32 %v4286, 0.0
  %v4415 = vmax.f32 %v4287, 0.0
  %v4416 = vmax.f32 %v4288, 0.0
  %v4417 = vmax.f32 %v4289, 0.0
  %v4418 = vmax.f32 %v4290, 0.0
  %v4419 = vmax.f32 %v4291, 0.0
  %v4420 = vmax.f32 %v4292, 0.0
  %v4421 = vmax.f32 %v4293, 0.0
  %v4422 = vmax.f32 %v4294, 0.0
  %v4423 = vmax.f32 %v4295, 0.0
  %v4424 = vmax.f32 %v4296, 0.0
  %v4425 = vmax.f32 %v4297, 0.0
  %v4426 = vmax.f32 %v4298, 0.0
  %v4427 = vmax.f32 %v4299, 0.0
  %v4428 = vmax.f32 %v4300, 0.0
  %v4429 = vmax.f32 %v4301, 0.0
  %v4430 = vmax.f32 %v4302, 0.0
  %v4431 = vmax.f32 %v4303, 0.0
  %v4432 = vmax.f32 %v4304, 0.0
  %v4433 = vmax.f32 %v4305, 0.0
  %v4434 = vmax.f32 %v4306, 0.0
  %v4435 = vmax.f32 %v4307, 0.0
  %v4436 = vmax.f32 %v4308, 0.0
  %v4437 = vmax.f32 %v4309, 0.0
  %v4438 = vmax.f32 %v4310, 0.0
  %v4439 = vmax.f32 %v4311, 0.0
  %v4440 = vmax.f32 %v4312, 0.0
  %v4441 = vmax.f32 %v4313, 0.0
  %v4442 = vmax.f32 %v4314, 0.0
  %v4443 = vmax.f32 %v4315, 0.0
  %v4444 = vmax.f32 %v4316, 0.0
  %v4445 = vpack.c.bf16 %v4318, %v4317
  %v4446 = vpack.c.bf16 %v4320, %v4319
  %v4447 = vpack.c.bf16 %v4322, %v4321
  %v4448 = vpack.c.bf16 %v4324, %v4323
  %v4449 = vpack.c.bf16 %v4326, %v4325
  %v4450 = vpack.c.bf16 %v4328, %v4327
  %v4451 = vpack.c.bf16 %v4330, %v4329
  %v4452 = vpack.c.bf16 %v4332, %v4331
  %v4453 = vpack.c.bf16 %v4334, %v4333
  %v4454 = vpack.c.bf16 %v4336, %v4335
  %v4455 = vpack.c.bf16 %v4338, %v4337
  %v4456 = vpack.c.bf16 %v4340, %v4339
  %v4457 = vpack.c.bf16 %v4342, %v4341
  %v4458 = vpack.c.bf16 %v4344, %v4343
  %v4459 = vpack.c.bf16 %v4346, %v4345
  %v4460 = vpack.c.bf16 %v4348, %v4347
  %v4461 = vpack.c.bf16 %v4350, %v4349
  %v4462 = vpack.c.bf16 %v4352, %v4351
  %v4463 = vpack.c.bf16 %v4354, %v4353
  %v4464 = vpack.c.bf16 %v4356, %v4355
  %v4465 = vpack.c.bf16 %v4358, %v4357
  %v4466 = vpack.c.bf16 %v4360, %v4359
  %v4467 = vpack.c.bf16 %v4362, %v4361
  %v4468 = vpack.c.bf16 %v4364, %v4363
  %v4469 = vpack.c.bf16 %v4366, %v4365
  %v4470 = vpack.c.bf16 %v4368, %v4367
  %v4471 = vpack.c.bf16 %v4370, %v4369
  %v4472 = vpack.c.bf16 %v4372, %v4371
  %v4473 = vpack.c.bf16 %v4374, %v4373
  %v4474 = vpack.c.bf16 %v4376, %v4375
  %v4475 = vpack.c.bf16 %v4378, %v4377
  %v4476 = vpack.c.bf16 %v4380, %v4379
  %v4477 = vpack.c.bf16 %v4382, %v4381
  %v4478 = vpack.c.bf16 %v4384, %v4383
  %v4479 = vpack.c.bf16 %v4386, %v4385
  %v4480 = vpack.c.bf16 %v4388, %v4387
  %v4481 = vpack.c.bf16 %v4390, %v4389
  %v4482 = vpack.c.bf16 %v4392, %v4391
  %v4483 = vpack.c.bf16 %v4394, %v4393
  %v4484 = vpack.c.bf16 %v4396, %v4395
  %v4485 = vpack.c.bf16 %v4398, %v4397
  %v4486 = vpack.c.bf16 %v4400, %v4399
  %v4487 = vpack.c.bf16 %v4402, %v4401
  %v4488 = vpack.c.bf16 %v4404, %v4403
  %v4489 = vpack.c.bf16 %v4406, %v4405
  %v4490 = vpack.c.bf16 %v4408, %v4407
  %v4491 = vpack.c.bf16 %v4410, %v4409
  %v4492 = vpack.c.bf16 %v4412, %v4411
  %v4493 = vpack.c.bf16 %v4414, %v4413
  %v4494 = vpack.c.bf16 %v4416, %v4415
  %v4495 = vpack.c.bf16 %v4418, %v4417
  %v4496 = vpack.c.bf16 %v4420, %v4419
  %v4497 = vpack.c.bf16 %v4422, %v4421
  %v4498 = vpack.c.bf16 %v4424, %v4423
  %v4499 = vpack.c.bf16 %v4426, %v4425
  %v4500 = vpack.c.bf16 %v4428, %v4427
  %v4501 = vpack.c.bf16 %v4430, %v4429
  %v4502 = vpack.c.bf16 %v4432, %v4431
  %v4503 = vpack.c.bf16 %v4434, %v4433
  %v4504 = vpack.c.bf16 %v4436, %v4435
  %v4505 = vpack.c.bf16 %v4438, %v4437
  %v4506 = vpack.c.bf16 %v4440, %v4439
  %v4507 = vpack.c.bf16 %v4442, %v4441
  %v4508 = vpack.c.bf16 %v4444, %v4443
  %s4509 = scalar_lea.vmem %s1, 320
  %v4510 = vld [vmem:[%s4509] sm:$0xf]
  %v4511 = vld [vmem:[%s4509 + $0x4] sm:$0xf]
  %v4512 = vld [vmem:[%s4509 + $0x8] sm:$0xf]
  %v4513 = vld [vmem:[%s4509 + $0xc] sm:$0xf]
  %v4514 = vld [vmem:[%s4509 + $0x10] sm:$0xf]
  %v4515 = vld [vmem:[%s4509 + $0x14] sm:$0xf]
  %v4516 = vld [vmem:[%s4509 + $0x18] sm:$0xf]
  %v4517 = vld [vmem:[%s4509 + $0x1c] sm:$0xf]
  %v4518 = vld [vmem:[%s4509 + $0x20] sm:$0xf]
  %v4519 = vld [vmem:[%s4509 + $0x24] sm:$0xf]
  %v4520 = vld [vmem:[%s4509 + $0x28] sm:$0xf]
  %v4521 = vld [vmem:[%s4509 + $0x2c] sm:$0xf]
  %v4522 = vld [vmem:[%s4509 + $0x30] sm:$0xf]
  %v4523 = vld [vmem:[%s4509 + $0x34] sm:$0xf]
  %v4524 = vld [vmem:[%s4509 + $0x38] sm:$0xf]
  %v4525 = vld [vmem:[%s4509 + $0x3c] sm:$0xf]
  %s4526 = scalar_lea.vmem %s2, 4
  %v4527 = vld [vmem:[%s4526] sm:$0x1]
  %v4529 = vlaneseq
  %v4530 = vshrl.u32 %v4529, 7
  %v4531 = vsub.s32 0, %v4530
  %v4532 = vrot.slane %v4527, %v4531
  %v4550 = vunpack.c.l.b16 %v4510
  %v4551 = vunpack.c.l.b16 %v4511
  %v4552 = vunpack.c.l.b16 %v4512
  %v4553 = vunpack.c.l.b16 %v4513
  %v4554 = vunpack.c.l.b16 %v4514
  %v4555 = vunpack.c.l.b16 %v4515
  %v4556 = vunpack.c.l.b16 %v4516
  %v4557 = vunpack.c.l.b16 %v4517
  %v4558 = vunpack.c.l.b16 %v4518
  %v4559 = vunpack.c.l.b16 %v4519
  %v4560 = vunpack.c.l.b16 %v4520
  %v4561 = vunpack.c.l.b16 %v4521
  %v4562 = vunpack.c.l.b16 %v4522
  %v4563 = vunpack.c.l.b16 %v4523
  %v4564 = vunpack.c.l.b16 %v4524
  %v4565 = vunpack.c.l.b16 %v4525
  %v4566 = vpack.c.b16 %v4551, %v4550
  %v4567 = vpack.c.b16 %v4553, %v4552
  %v4568 = vpack.c.b16 %v4555, %v4554
  %v4569 = vpack.c.b16 %v4557, %v4556
  %v4570 = vpack.c.b16 %v4559, %v4558
  %v4571 = vpack.c.b16 %v4561, %v4560
  %v4572 = vpack.c.b16 %v4563, %v4562
  %v4573 = vpack.c.b16 %v4565, %v4564
  %4582 = vmatprep.subr.bf16.mxu0 0
  %4583 = vmatpush1.bf16.msra.mxu0 %v4566
  %4584 = vmatprep.subr.bf16.mxu0 0
  %4585 = vmatpush1.bf16.msra.mxu0 %v4567
  %4586 = vmatprep.subr.bf16.mxu0 0
  %4587 = vmatpush1.bf16.msra.mxu0 %v4568
  %4588 = vmatprep.subr.bf16.mxu0 0
  %4589 = vmatpush1.bf16.msra.mxu0 %v4569
  %4590 = vmatprep.subr.bf16.mxu0 0
  %4591 = vmatpush1.bf16.msra.mxu0 %v4570
  %4592 = vmatprep.subr.bf16.mxu0 0
  %4593 = vmatpush1.bf16.msra.mxu0 %v4571
  %4594 = vmatprep.subr.bf16.mxu0 0
  %4595 = vmatpush1.bf16.msra.mxu0 %v4572
  %4596 = vmatprep.subr.bf16.mxu0 0
  %4597 = vmatpush1.bf16.msra.mxu0 %v4573
  %4598 = vmatprep.subr.bf16.mxu0 0
  %4599 = vmatpush1.bf16.msra.mxu0 0
  %4600 = vmatprep.subr.bf16.mxu0 0
  %4601 = vmatpush1.bf16.msra.mxu0 0
  %4602 = vmatprep.subr.bf16.mxu0 0
  %4603 = vmatpush1.bf16.msra.mxu0 0
  %4604 = vmatprep.subr.bf16.mxu0 0
  %4605 = vmatpush1.bf16.msra.mxu0 0
  %4606 = vmatprep.subr.bf16.mxu0 0
  %4607 = vmatpush1.bf16.msra.mxu0 0
  %4608 = vmatprep.subr.bf16.mxu0 0
  %4609 = vmatpush1.bf16.msra.mxu0 0
  %4610 = vmatprep.subr.bf16.mxu0 0
  %4611 = vmatpush1.bf16.msra.mxu0 0
  %4612 = vmatprep.subr.bf16.mxu0 0
  %4613 = vmatpush1.bf16.msra.mxu0 0
  %4614 = vmatprep.mubr.bf16.mxu0 0
  %4615 = vmatmul.mubr.bf16.gmra.mrb[0].mxu0 %v4445
  %v4616 = vpop.f32.mrb[0].mxu0
  %v4617 = vadd.f32 %v4532, %v4616
  %v4618 = vpop.f32.mrb[0].mxu0
  %v4619 = vpop.f32.mrb[0].mxu0
  %v4620 = vadd.f32 %v4532, %v4619
  %v4621 = vpop.f32.mrb[0].mxu0
  %4622 = vmatprep.mubr.bf16.mxu0 0
  %4623 = vmatmul.mubr.bf16.gmra.mrb[0].mxu0 %v4446
  %v4624 = vpop.f32.mrb[0].mxu0
  %v4625 = vadd.f32 %v4532, %v4624
  %v4626 = vpop.f32.mrb[0].mxu0
  %v4627 = vpop.f32.mrb[0].mxu0
  %v4628 = vadd.f32 %v4532, %v4627
  %v4629 = vpop.f32.mrb[0].mxu0
  %4630 = vmatprep.mubr.bf16.mxu0 0
  %4631 = vmatmul.mubr.bf16.gmra.mrb[0].mxu0 %v4447
  %v4632 = vpop.f32.mrb[0].mxu0
  %v4633 = vadd.f32 %v4532, %v4632
  %v4634 = vpop.f32.mrb[0].mxu0
  %v4635 = vpop.f32.mrb[0].mxu0
  %v4636 = vadd.f32 %v4532, %v4635
  %v4637 = vpop.f32.mrb[0].mxu0
  %4638 = vmatprep.mubr.bf16.mxu0 0
  %4639 = vmatmul.mubr.bf16.gmra.mrb[0].mxu0 %v4448
  %v4640 = vpop.f32.mrb[0].mxu0
  %v4641 = vadd.f32 %v4532, %v4640
  %v4642 = vpop.f32.mrb[0].mxu0
  %v4643 = vpop.f32.mrb[0].mxu0
  %v4644 = vadd.f32 %v4532, %v4643
  %v4645 = vpop.f32.mrb[0].mxu0
  %4646 = vmatprep.mubr.bf16.mxu0 0
  %4647 = vmatmul.mubr.bf16.gmra.mrb[0].mxu0 %v4449
  %v4648 = vpop.f32.mrb[0].mxu0
  %v4649 = vadd.f32 %v4532, %v4648
  %v4650 = vpop.f32.mrb[0].mxu0
  %v4651 = vpop.f32.mrb[0].mxu0
  %v4652 = vadd.f32 %v4532, %v4651
  %v4653 = vpop.f32.mrb[0].mxu0
  %4654 = vmatprep.mubr.bf16.mxu0 0
  %4655 = vmatmul.mubr.bf16.gmra.mrb[0].mxu0 %v4450
  %v4656 = vpop.f32.mrb[0].mxu0
  %v4657 = vadd.f32 %v4532, %v4656
  %v4658 = vpop.f32.mrb[0].mxu0
  %v4659 = vpop.f32.mrb[0].mxu0
  %v4660 = vadd.f32 %v4532, %v4659
  %v4661 = vpop.f32.mrb[0].mxu0
  %4662 = vmatprep.mubr.bf16.mxu0 0
  %4663 = vmatmul.mubr.bf16.gmra.mrb[0].mxu0 %v4451
  %v4664 = vpop.f32.mrb[0].mxu0
  %v4665 = vadd.f32 %v4532, %v4664
  %v4666 = vpop.f32.mrb[0].mxu0
  %v4667 = vpop.f32.mrb[0].mxu0
  %v4668 = vadd.f32 %v4532, %v4667
  %v4669 = vpop.f32.mrb[0].mxu0
  %4670 = vmatprep.mubr.bf16.mxu0 0
  %4671 = vmatmul.mubr.bf16.gmra.mrb[0].mxu0 %v4452
  %v4672 = vpop.f32.mrb[0].mxu0
  %v4673 = vadd.f32 %v4532, %v4672
  %v4674 = vpop.f32.mrb[0].mxu0
  %v4675 = vpop.f32.mrb[0].mxu0
  %v4676 = vadd.f32 %v4532, %v4675
  %v4677 = vpop.f32.mrb[0].mxu0
  %4678 = vmatprep.mubr.bf16.mxu0 0
  %4679 = vmatmul.mubr.bf16.gmra.mrb[0].mxu0 %v4453
  %v4680 = vpop.f32.mrb[0].mxu0
  %v4681 = vadd.f32 %v4532, %v4680
  %v4682 = vpop.f32.mrb[0].mxu0
  %v4683 = vpop.f32.mrb[0].mxu0
  %v4684 = vadd.f32 %v4532, %v4683
  %v4685 = vpop.f32.mrb[0].mxu0
  %4686 = vmatprep.mubr.bf16.mxu0 0
  %4687 = vmatmul.mubr.bf16.gmra.mrb[0].mxu0 %v4454
  %v4688 = vpop.f32.mrb[0].mxu0
  %v4689 = vadd.f32 %v4532, %v4688
  %v4690 = vpop.f32.mrb[0].mxu0
  %v4691 = vpop.f32.mrb[0].mxu0
  %v4692 = vadd.f32 %v4532, %v4691
  %v4693 = vpop.f32.mrb[0].mxu0
  %4694 = vmatprep.mubr.bf16.mxu0 0
  %4695 = vmatmul.mubr.bf16.gmra.mrb[0].mxu0 %v4455
  %v4696 = vpop.f32.mrb[0].mxu0
  %v4697 = vadd.f32 %v4532, %v4696
  %v4698 = vpop.f32.mrb[0].mxu0
  %v4699 = vpop.f32.mrb[0].mxu0
  %v4700 = vadd.f32 %v4532, %v4699
  %v4701 = vpop.f32.mrb[0].mxu0
  %4702 = vmatprep.mubr.bf16.mxu0 0
  %4703 = vmatmul.mubr.bf16.gmra.mrb[0].mxu0 %v4456
  %v4704 = vpop.f32.mrb[0].mxu0
  %v4705 = vadd.f32 %v4532, %v4704
  %v4706 = vpop.f32.mrb[0].mxu0
  %v4707 = vpop.f32.mrb[0].mxu0
  %v4708 = vadd.f32 %v4532, %v4707
  %v4709 = vpop.f32.mrb[0].mxu0
  %4710 = vmatprep.mubr.bf16.mxu0 0
  %4711 = vmatmul.mubr.bf16.gmra.mrb[0].mxu0 %v4457
  %v4712 = vpop.f32.mrb[0].mxu0
  %v4713 = vadd.f32 %v4532, %v4712
  %v4714 = vpop.f32.mrb[0].mxu0
  %v4715 = vpop.f32.mrb[0].mxu0
  %v4716 = vadd.f32 %v4532, %v4715
  %v4717 = vpop.f32.mrb[0].mxu0
  %4718 = vmatprep.mubr.bf16.mxu0 0
  %4719 = vmatmul.mubr.bf16.gmra.mrb[0].mxu0 %v4458
  %v4720 = vpop.f32.mrb[0].mxu0
  %v4721 = vadd.f32 %v4532, %v4720
  %v4722 = vpop.f32.mrb[0].mxu0
  %v4723 = vpop.f32.mrb[0].mxu0
  %v4724 = vadd.f32 %v4532, %v4723
  %v4725 = vpop.f32.mrb[0].mxu0
  %4726 = vmatprep.mubr.bf16.mxu0 0
  %4727 = vmatmul.mubr.bf16.gmra.mrb[0].mxu0 %v4459
  %v4728 = vpop.f32.mrb[0].mxu0
  %v4729 = vadd.f32 %v4532, %v4728
  %v4730 = vpop.f32.mrb[0].mxu0
  %v4731 = vpop.f32.mrb[0].mxu0
  %v4732 = vadd.f32 %v4532, %v4731
  %v4733 = vpop.f32.mrb[0].mxu0
  %4734 = vmatprep.mubr.bf16.mxu0 0
  %4735 = vmatmul.mubr.bf16.gmra.mrb[0].mxu0 %v4460
  %v4736 = vpop.f32.mrb[0].mxu0
  %v4737 = vadd.f32 %v4532, %v4736
  %v4738 = vpop.f32.mrb[0].mxu0
  %v4739 = vpop.f32.mrb[0].mxu0
  %v4740 = vadd.f32 %v4532, %v4739
  %v4741 = vpop.f32.mrb[0].mxu0
  %4742 = vmatprep.mubr.bf16.mxu0 0
  %4743 = vmatmul.mubr.bf16.gmra.mrb[0].mxu0 %v4461
  %v4744 = vpop.f32.mrb[0].mxu0
  %v4745 = vadd.f32 %v4532, %v4744
  %v4746 = vpop.f32.mrb[0].mxu0
  %v4747 = vpop.f32.mrb[0].mxu0
  %v4748 = vadd.f32 %v4532, %v4747
  %v4749 = vpop.f32.mrb[0].mxu0
  %4750 = vmatprep.mubr.bf16.mxu0 0
  %4751 = vmatmul.mubr.bf16.gmra.mrb[0].mxu0 %v4462
  %v4752 = vpop.f32.mrb[0].mxu0
  %v4753 = vadd.f32 %v4532, %v4752
  %v4754 = vpop.f32.mrb[0].mxu0
  %v4755 = vpop.f32.mrb[0].mxu0
  %v4756 = vadd.f32 %v4532, %v4755
  %v4757 = vpop.f32.mrb[0].mxu0
  %4758 = vmatprep.mubr.bf16.mxu0 0
  %4759 = vmatmul.mubr.bf16.gmra.mrb[0].mxu0 %v4463
  %v4760 = vpop.f32.mrb[0].mxu0
  %v4761 = vadd.f32 %v4532, %v4760
  %v4762 = vpop.f32.mrb[0].mxu0
  %v4763 = vpop.f32.mrb[0].mxu0
  %v4764 = vadd.f32 %v4532, %v4763
  %v4765 = vpop.f32.mrb[0].mxu0
  %4766 = vmatprep.mubr.bf16.mxu0 0
  %4767 = vmatmul.mubr.bf16.gmra.mrb[0].mxu0 %v4464
  %v4768 = vpop.f32.mrb[0].mxu0
  %v4769 = vadd.f32 %v4532, %v4768
  %v4770 = vpop.f32.mrb[0].mxu0
  %v4771 = vpop.f32.mrb[0].mxu0
  %v4772 = vadd.f32 %v4532, %v4771
  %v4773 = vpop.f32.mrb[0].mxu0
  %4774 = vmatprep.mubr.bf16.mxu0 0
  %4775 = vmatmul.mubr.bf16.gmra.mrb[0].mxu0 %v4465
  %v4776 = vpop.f32.mrb[0].mxu0
  %v4777 = vadd.f32 %v4532, %v4776
  %v4778 = vpop.f32.mrb[0].mxu0
  %v4779 = vpop.f32.mrb[0].mxu0
  %v4780 = vadd.f32 %v4532, %v4779
  %v4781 = vpop.f32.mrb[0].mxu0
  %4782 = vmatprep.mubr.bf16.mxu0 0
  %4783 = vmatmul.mubr.bf16.gmra.mrb[0].mxu0 %v4466
  %v4784 = vpop.f32.mrb[0].mxu0
  %v4785 = vadd.f32 %v4532, %v4784
  %v4786 = vpop.f32.mrb[0].mxu0
  %v4787 = vpop.f32.mrb[0].mxu0
  %v4788 = vadd.f32 %v4532, %v4787
  %v4789 = vpop.f32.mrb[0].mxu0
  %4790 = vmatprep.mubr.bf16.mxu0 0
  %4791 = vmatmul.mubr.bf16.gmra.mrb[0].mxu0 %v4467
  %v4792 = vpop.f32.mrb[0].mxu0
  %v4793 = vadd.f32 %v4532, %v4792
  %v4794 = vpop.f32.mrb[0].mxu0
  %v4795 = vpop.f32.mrb[0].mxu0
  %v4796 = vadd.f32 %v4532, %v4795
  %v4797 = vpop.f32.mrb[0].mxu0
  %4798 = vmatprep.mubr.bf16.mxu0 0
  %4799 = vmatmul.mubr.bf16.gmra.mrb[0].mxu0 %v4468
  %v4800 = vpop.f32.mrb[0].mxu0
  %v4801 = vadd.f32 %v4532, %v4800
  %v4802 = vpop.f32.mrb[0].mxu0
  %v4803 = vpop.f32.mrb[0].mxu0
  %v4804 = vadd.f32 %v4532, %v4803
  %v4805 = vpop.f32.mrb[0].mxu0
  %4806 = vmatprep.mubr.bf16.mxu0 0
  %4807 = vmatmul.mubr.bf16.gmra.mrb[0].mxu0 %v4469
  %v4808 = vpop.f32.mrb[0].mxu0
  %v4809 = vadd.f32 %v4532, %v4808
  %v4810 = vpop.f32.mrb[0].mxu0
  %v4811 = vpop.f32.mrb[0].mxu0
  %v4812 = vadd.f32 %v4532, %v4811
  %v4813 = vpop.f32.mrb[0].mxu0
  %4814 = vmatprep.mubr.bf16.mxu0 0
  %4815 = vmatmul.mubr.bf16.gmra.mrb[0].mxu0 %v4470
  %v4816 = vpop.f32.mrb[0].mxu0
  %v4817 = vadd.f32 %v4532, %v4816
  %v4818 = vpop.f32.mrb[0].mxu0
  %v4819 = vpop.f32.mrb[0].mxu0
  %v4820 = vadd.f32 %v4532, %v4819
  %v4821 = vpop.f32.mrb[0].mxu0
  %4822 = vmatprep.mubr.bf16.mxu0 0
  %4823 = vmatmul.mubr.bf16.gmra.mrb[0].mxu0 %v4471
  %v4824 = vpop.f32.mrb[0].mxu0
  %v4825 = vadd.f32 %v4532, %v4824
  %v4826 = vpop.f32.mrb[0].mxu0
  %v4827 = vpop.f32.mrb[0].mxu0
  %v4828 = vadd.f32 %v4532, %v4827
  %v4829 = vpop.f32.mrb[0].mxu0
  %4830 = vmatprep.mubr.bf16.mxu0 0
  %4831 = vmatmul.mubr.bf16.gmra.mrb[0].mxu0 %v4472
  %v4832 = vpop.f32.mrb[0].mxu0
  %v4833 = vadd.f32 %v4532, %v4832
  %v4834 = vpop.f32.mrb[0].mxu0
  %v4835 = vpop.f32.mrb[0].mxu0
  %v4836 = vadd.f32 %v4532, %v4835
  %v4837 = vpop.f32.mrb[0].mxu0
  %4838 = vmatprep.mubr.bf16.mxu0 0
  %4839 = vmatmul.mubr.bf16.gmra.mrb[0].mxu0 %v4473
  %v4840 = vpop.f32.mrb[0].mxu0
  %v4841 = vadd.f32 %v4532, %v4840
  %v4842 = vpop.f32.mrb[0].mxu0
  %v4843 = vpop.f32.mrb[0].mxu0
  %v4844 = vadd.f32 %v4532, %v4843
  %v4845 = vpop.f32.mrb[0].mxu0
  %4846 = vmatprep.mubr.bf16.mxu0 0
  %4847 = vmatmul.mubr.bf16.gmra.mrb[0].mxu0 %v4474
  %v4848 = vpop.f32.mrb[0].mxu0
  %v4849 = vadd.f32 %v4532, %v4848
  %v4850 = vpop.f32.mrb[0].mxu0
  %v4851 = vpop.f32.mrb[0].mxu0
  %v4852 = vadd.f32 %v4532, %v4851
  %v4853 = vpop.f32.mrb[0].mxu0
  %4854 = vmatprep.mubr.bf16.mxu0 0
  %4855 = vmatmul.mubr.bf16.gmra.mrb[0].mxu0 %v4475
  %v4856 = vpop.f32.mrb[0].mxu0
  %v4857 = vadd.f32 %v4532, %v4856
  %v4858 = vpop.f32.mrb[0].mxu0
  %v4859 = vpop.f32.mrb[0].mxu0
  %v4860 = vadd.f32 %v4532, %v4859
  %v4861 = vpop.f32.mrb[0].mxu0
  %4862 = vmatprep.mubr.bf16.mxu0 0
  %4863 = vmatmul.mubr.bf16.gmra.mrb[0].mxu0 %v4476
  %v4864 = vpop.f32.mrb[0].mxu0
  %v4865 = vadd.f32 %v4532, %v4864
  %v4866 = vpop.f32.mrb[0].mxu0
  %v4867 = vpop.f32.mrb[0].mxu0
  %v4868 = vadd.f32 %v4532, %v4867
  %v4869 = vpop.f32.mrb[0].mxu0
  %4870 = vmatprep.mubr.bf16.mxu0 0
  %4871 = vmatmul.mubr.bf16.gmra.mrb[0].mxu0 %v4477
  %v4872 = vpop.f32.mrb[0].mxu0
  %v4873 = vadd.f32 %v4532, %v4872
  %v4874 = vpop.f32.mrb[0].mxu0
  %v4875 = vpop.f32.mrb[0].mxu0
  %v4876 = vadd.f32 %v4532, %v4875
  %v4877 = vpop.f32.mrb[0].mxu0
  %4878 = vmatprep.mubr.bf16.mxu0 0
  %4879 = vmatmul.mubr.bf16.gmra.mrb[0].mxu0 %v4478
  %v4880 = vpop.f32.mrb[0].mxu0
  %v4881 = vadd.f32 %v4532, %v4880
  %v4882 = vpop.f32.mrb[0].mxu0
  %v4883 = vpop.f32.mrb[0].mxu0
  %v4884 = vadd.f32 %v4532, %v4883
  %v4885 = vpop.f32.mrb[0].mxu0
  %4886 = vmatprep.mubr.bf16.mxu0 0
  %4887 = vmatmul.mubr.bf16.gmra.mrb[0].mxu0 %v4479
  %v4888 = vpop.f32.mrb[0].mxu0
  %v4889 = vadd.f32 %v4532, %v4888
  %v4890 = vpop.f32.mrb[0].mxu0
  %v4891 = vpop.f32.mrb[0].mxu0
  %v4892 = vadd.f32 %v4532, %v4891
  %v4893 = vpop.f32.mrb[0].mxu0
  %4894 = vmatprep.mubr.bf16.mxu0 0
  %4895 = vmatmul.mubr.bf16.gmra.mrb[0].mxu0 %v4480
  %v4896 = vpop.f32.mrb[0].mxu0
  %v4897 = vadd.f32 %v4532, %v4896
  %v4898 = vpop.f32.mrb[0].mxu0
  %v4899 = vpop.f32.mrb[0].mxu0
  %v4900 = vadd.f32 %v4532, %v4899
  %v4901 = vpop.f32.mrb[0].mxu0
  %4902 = vmatprep.mubr.bf16.mxu0 0
  %4903 = vmatmul.mubr.bf16.gmra.mrb[0].mxu0 %v4481
  %v4904 = vpop.f32.mrb[0].mxu0
  %v4905 = vadd.f32 %v4532, %v4904
  %v4906 = vpop.f32.mrb[0].mxu0
  %v4907 = vpop.f32.mrb[0].mxu0
  %v4908 = vadd.f32 %v4532, %v4907
  %v4909 = vpop.f32.mrb[0].mxu0
  %4910 = vmatprep.mubr.bf16.mxu0 0
  %4911 = vmatmul.mubr.bf16.gmra.mrb[0].mxu0 %v4482
  %v4912 = vpop.f32.mrb[0].mxu0
  %v4913 = vadd.f32 %v4532, %v4912
  %v4914 = vpop.f32.mrb[0].mxu0
  %v4915 = vpop.f32.mrb[0].mxu0
  %v4916 = vadd.f32 %v4532, %v4915
  %v4917 = vpop.f32.mrb[0].mxu0
  %4918 = vmatprep.mubr.bf16.mxu0 0
  %4919 = vmatmul.mubr.bf16.gmra.mrb[0].mxu0 %v4483
  %v4920 = vpop.f32.mrb[0].mxu0
  %v4921 = vadd.f32 %v4532, %v4920
  %v4922 = vpop.f32.mrb[0].mxu0
  %v4923 = vpop.f32.mrb[0].mxu0
  %v4924 = vadd.f32 %v4532, %v4923
  %v4925 = vpop.f32.mrb[0].mxu0
  %4926 = vmatprep.mubr.bf16.mxu0 0
  %4927 = vmatmul.mubr.bf16.gmra.mrb[0].mxu0 %v4484
  %v4928 = vpop.f32.mrb[0].mxu0
  %v4929 = vadd.f32 %v4532, %v4928
  %v4930 = vpop.f32.mrb[0].mxu0
  %v4931 = vpop.f32.mrb[0].mxu0
  %v4932 = vadd.f32 %v4532, %v4931
  %v4933 = vpop.f32.mrb[0].mxu0
  %4934 = vmatprep.mubr.bf16.mxu0 0
  %4935 = vmatmul.mubr.bf16.gmra.mrb[0].mxu0 %v4485
  %v4936 = vpop.f32.mrb[0].mxu0
  %v4937 = vadd.f32 %v4532, %v4936
  %v4938 = vpop.f32.mrb[0].mxu0
  %v4939 = vpop.f32.mrb[0].mxu0
  %v4940 = vadd.f32 %v4532, %v4939
  %v4941 = vpop.f32.mrb[0].mxu0
  %4942 = vmatprep.mubr.bf16.mxu0 0
  %4943 = vmatmul.mubr.bf16.gmra.mrb[0].mxu0 %v4486
  %v4944 = vpop.f32.mrb[0].mxu0
  %v4945 = vadd.f32 %v4532, %v4944
  %v4946 = vpop.f32.mrb[0].mxu0
  %v4947 = vpop.f32.mrb[0].mxu0
  %v4948 = vadd.f32 %v4532, %v4947
  %v4949 = vpop.f32.mrb[0].mxu0
  %4950 = vmatprep.mubr.bf16.mxu0 0
  %4951 = vmatmul.mubr.bf16.gmra.mrb[0].mxu0 %v4487
  %v4952 = vpop.f32.mrb[0].mxu0
  %v4953 = vadd.f32 %v4532, %v4952
  %v4954 = vpop.f32.mrb[0].mxu0
  %v4955 = vpop.f32.mrb[0].mxu0
  %v4956 = vadd.f32 %v4532, %v4955
  %v4957 = vpop.f32.mrb[0].mxu0
  %4958 = vmatprep.mubr.bf16.mxu0 0
  %4959 = vmatmul.mubr.bf16.gmra.mrb[0].mxu0 %v4488
  %v4960 = vpop.f32.mrb[0].mxu0
  %v4961 = vadd.f32 %v4532, %v4960
  %v4962 = vpop.f32.mrb[0].mxu0
  %v4963 = vpop.f32.mrb[0].mxu0
  %v4964 = vadd.f32 %v4532, %v4963
  %v4965 = vpop.f32.mrb[0].mxu0
  %4966 = vmatprep.mubr.bf16.mxu0 0
  %4967 = vmatmul.mubr.bf16.gmra.mrb[0].mxu0 %v4489
  %v4968 = vpop.f32.mrb[0].mxu0
  %v4969 = vadd.f32 %v4532, %v4968
  %v4970 = vpop.f32.mrb[0].mxu0
  %v4971 = vpop.f32.mrb[0].mxu0
  %v4972 = vadd.f32 %v4532, %v4971
  %v4973 = vpop.f32.mrb[0].mxu0
  %4974 = vmatprep.mubr.bf16.mxu0 0
  %4975 = vmatmul.mubr.bf16.gmra.mrb[0].mxu0 %v4490
  %v4976 = vpop.f32.mrb[0].mxu0
  %v4977 = vadd.f32 %v4532, %v4976
  %v4978 = vpop.f32.mrb[0].mxu0
  %v4979 = vpop.f32.mrb[0].mxu0
  %v4980 = vadd.f32 %v4532, %v4979
  %v4981 = vpop.f32.mrb[0].mxu0
  %4982 = vmatprep.mubr.bf16.mxu0 0
  %4983 = vmatmul.mubr.bf16.gmra.mrb[0].mxu0 %v4491
  %v4984 = vpop.f32.mrb[0].mxu0
  %v4985 = vadd.f32 %v4532, %v4984
  %v4986 = vpop.f32.mrb[0].mxu0
  %v4987 = vpop.f32.mrb[0].mxu0
  %v4988 = vadd.f32 %v4532, %v4987
  %v4989 = vpop.f32.mrb[0].mxu0
  %4990 = vmatprep.mubr.bf16.mxu0 0
  %4991 = vmatmul.mubr.bf16.gmra.mrb[0].mxu0 %v4492
  %v4992 = vpop.f32.mrb[0].mxu0
  %v4993 = vadd.f32 %v4532, %v4992
  %v4994 = vpop.f32.mrb[0].mxu0
  %v4995 = vpop.f32.mrb[0].mxu0
  %v4996 = vadd.f32 %v4532, %v4995
  %v4997 = vpop.f32.mrb[0].mxu0
  %4998 = vmatprep.mubr.bf16.mxu0 0
  %4999 = vmatmul.mubr.bf16.gmra.mrb[0].mxu0 %v4493
  %v5000 = vpop.f32.mrb[0].mxu0
  %v5001 = vadd.f32 %v4532, %v5000
  %v5002 = vpop.f32.mrb[0].mxu0
  %v5003 = vpop.f32.mrb[0].mxu0
  %v5004 = vadd.f32 %v4532, %v5003
  %v5005 = vpop.f32.mrb[0].mxu0
  %5006 = vmatprep.mubr.bf16.mxu0 0
  %5007 = vmatmul.mubr.bf16.gmra.mrb[0].mxu0 %v4494
  %v5008 = vpop.f32.mrb[0].mxu0
  %v5009 = vadd.f32 %v4532, %v5008
  %v5010 = vpop.f32.mrb[0].mxu0
  %v5011 = vpop.f32.mrb[0].mxu0
  %v5012 = vadd.f32 %v4532, %v5011
  %v5013 = vpop.f32.mrb[0].mxu0
  %5014 = vmatprep.mubr.bf16.mxu0 0
  %5015 = vmatmul.mubr.bf16.gmra.mrb[0].mxu0 %v4495
  %v5016 = vpop.f32.mrb[0].mxu0
  %v5017 = vadd.f32 %v4532, %v5016
  %v5018 = vpop.f32.mrb[0].mxu0
  %v5019 = vpop.f32.mrb[0].mxu0
  %v5020 = vadd.f32 %v4532, %v5019
  %v5021 = vpop.f32.mrb[0].mxu0
  %5022 = vmatprep.mubr.bf16.mxu0 0
  %5023 = vmatmul.mubr.bf16.gmra.mrb[0].mxu0 %v4496
  %v5024 = vpop.f32.mrb[0].mxu0
  %v5025 = vadd.f32 %v4532, %v5024
  %v5026 = vpop.f32.mrb[0].mxu0
  %v5027 = vpop.f32.mrb[0].mxu0
  %v5028 = vadd.f32 %v4532, %v5027
  %v5029 = vpop.f32.mrb[0].mxu0
  %5030 = vmatprep.mubr.bf16.mxu0 0
  %5031 = vmatmul.mubr.bf16.gmra.mrb[0].mxu0 %v4497
  %v5032 = vpop.f32.mrb[0].mxu0
  %v5033 = vadd.f32 %v4532, %v5032
  %v5034 = vpop.f32.mrb[0].mxu0
  %v5035 = vpop.f32.mrb[0].mxu0
  %v5036 = vadd.f32 %v4532, %v5035
  %v5037 = vpop.f32.mrb[0].mxu0
  %5038 = vmatprep.mubr.bf16.mxu0 0
  %5039 = vmatmul.mubr.bf16.gmra.mrb[0].mxu0 %v4498
  %v5040 = vpop.f32.mrb[0].mxu0
  %v5041 = vadd.f32 %v4532, %v5040
  %v5042 = vpop.f32.mrb[0].mxu0
  %v5043 = vpop.f32.mrb[0].mxu0
  %v5044 = vadd.f32 %v4532, %v5043
  %v5045 = vpop.f32.mrb[0].mxu0
  %5046 = vmatprep.mubr.bf16.mxu0 0
  %5047 = vmatmul.mubr.bf16.gmra.mrb[0].mxu0 %v4499
  %v5048 = vpop.f32.mrb[0].mxu0
  %v5049 = vadd.f32 %v4532, %v5048
  %v5050 = vpop.f32.mrb[0].mxu0
  %v5051 = vpop.f32.mrb[0].mxu0
  %v5052 = vadd.f32 %v4532, %v5051
  %v5053 = vpop.f32.mrb[0].mxu0
  %5054 = vmatprep.mubr.bf16.mxu0 0
  %5055 = vmatmul.mubr.bf16.gmra.mrb[0].mxu0 %v4500
  %v5056 = vpop.f32.mrb[0].mxu0
  %v5057 = vadd.f32 %v4532, %v5056
  %v5058 = vpop.f32.mrb[0].mxu0
  %v5059 = vpop.f32.mrb[0].mxu0
  %v5060 = vadd.f32 %v4532, %v5059
  %v5061 = vpop.f32.mrb[0].mxu0
  %5062 = vmatprep.mubr.bf16.mxu0 0
  %5063 = vmatmul.mubr.bf16.gmra.mrb[0].mxu0 %v4501
  %v5064 = vpop.f32.mrb[0].mxu0
  %v5065 = vadd.f32 %v4532, %v5064
  %v5066 = vpop.f32.mrb[0].mxu0
  %v5067 = vpop.f32.mrb[0].mxu0
  %v5068 = vadd.f32 %v4532, %v5067
  %v5069 = vpop.f32.mrb[0].mxu0
  %5070 = vmatprep.mubr.bf16.mxu0 0
  %5071 = vmatmul.mubr.bf16.gmra.mrb[0].mxu0 %v4502
  %v5072 = vpop.f32.mrb[0].mxu0
  %v5073 = vadd.f32 %v4532, %v5072
  %v5074 = vpop.f32.mrb[0].mxu0
  %v5075 = vpop.f32.mrb[0].mxu0
  %v5076 = vadd.f32 %v4532, %v5075
  %v5077 = vpop.f32.mrb[0].mxu0
  %5078 = vmatprep.mubr.bf16.mxu0 0
  %5079 = vmatmul.mubr.bf16.gmra.mrb[0].mxu0 %v4503
  %v5080 = vpop.f32.mrb[0].mxu0
  %v5081 = vadd.f32 %v4532, %v5080
  %v5082 = vpop.f32.mrb[0].mxu0
  %v5083 = vpop.f32.mrb[0].mxu0
  %v5084 = vadd.f32 %v4532, %v5083
  %v5085 = vpop.f32.mrb[0].mxu0
  %5086 = vmatprep.mubr.bf16.mxu0 0
  %5087 = vmatmul.mubr.bf16.gmra.mrb[0].mxu0 %v4504
  %v5088 = vpop.f32.mrb[0].mxu0
  %v5089 = vadd.f32 %v4532, %v5088
  %v5090 = vpop.f32.mrb[0].mxu0
  %v5091 = vpop.f32.mrb[0].mxu0
  %v5092 = vadd.f32 %v4532, %v5091
  %v5093 = vpop.f32.mrb[0].mxu0
  %5094 = vmatprep.mubr.bf16.mxu0 0
  %5095 = vmatmul.mubr.bf16.gmra.mrb[0].mxu0 %v4505
  %v5096 = vpop.f32.mrb[0].mxu0
  %v5097 = vadd.f32 %v4532, %v5096
  %v5098 = vpop.f32.mrb[0].mxu0
  %v5099 = vpop.f32.mrb[0].mxu0
  %v5100 = vadd.f32 %v4532, %v5099
  %v5101 = vpop.f32.mrb[0].mxu0
  %5102 = vmatprep.mubr.bf16.mxu0 0
  %5103 = vmatmul.mubr.bf16.gmra.mrb[0].mxu0 %v4506
  %v5104 = vpop.f32.mrb[0].mxu0
  %v5105 = vadd.f32 %v4532, %v5104
  %v5106 = vpop.f32.mrb[0].mxu0
  %v5107 = vpop.f32.mrb[0].mxu0
  %v5108 = vadd.f32 %v4532, %v5107
  %v5109 = vpop.f32.mrb[0].mxu0
  %5110 = vmatprep.mubr.bf16.mxu0 0
  %5111 = vmatmul.mubr.bf16.gmra.mrb[0].mxu0 %v4507
  %v5112 = vpop.f32.mrb[0].mxu0
  %v5113 = vadd.f32 %v4532, %v5112
  %v5114 = vpop.f32.mrb[0].mxu0
  %v5115 = vpop.f32.mrb[0].mxu0
  %v5116 = vadd.f32 %v4532, %v5115
  %v5117 = vpop.f32.mrb[0].mxu0
  %5118 = vmatprep.mubr.bf16.mxu0 0
  %5119 = vmatmul.mubr.bf16.gmra.mrb[0].mxu0 %v4508
  %v5120 = vpop.f32.mrb[0].mxu0
  %v5121 = vadd.f32 %v4532, %v5120
  %v5122 = vpop.f32.mrb[0].mxu0
  %v5123 = vpop.f32.mrb[0].mxu0
  %v5124 = vadd.f32 %v4532, %v5123
  %v5125 = vpop.f32.mrb[0].mxu0
  %5126 = vdwg.mxu0
  %v5127 = vmax.f32 %v4617, 0.0
  %v5128 = vmax.f32 %v4620, 0.0
  %v5129 = vmax.f32 %v4625, 0.0
  %v5130 = vmax.f32 %v4628, 0.0
  %v5131 = vmax.f32 %v4633, 0.0
  %v5132 = vmax.f32 %v4636, 0.0
  %v5133 = vmax.f32 %v4641, 0.0
  %v5134 = vmax.f32 %v4644, 0.0
  %v5135 = vmax.f32 %v4649, 0.0
  %v5136 = vmax.f32 %v4652, 0.0
  %v5137 = vmax.f32 %v4657, 0.0
  %v5138 = vmax.f32 %v4660, 0.0
  %v5139 = vmax.f32 %v4665, 0.0
  %v5140 = vmax.f32 %v4668, 0.0
  %v5141 = vmax.f32 %v4673, 0.0
  %v5142 = vmax.f32 %v4676, 0.0
  %v5143 = vmax.f32 %v4681, 0.0
  %v5144 = vmax.f32 %v4684, 0.0
  %v5145 = vmax.f32 %v4689, 0.0
  %v5146 = vmax.f32 %v4692, 0.0
  %v5147 = vmax.f32 %v4697, 0.0
  %v5148 = vmax.f32 %v4700, 0.0
  %v5149 = vmax.f32 %v4705, 0.0
  %v5150 = vmax.f32 %v4708, 0.0
  %v5151 = vmax.f32 %v4713, 0.0
  %v5152 = vmax.f32 %v4716, 0.0
  %v5153 = vmax.f32 %v4721, 0.0
  %v5154 = vmax.f32 %v4724, 0.0
  %v5155 = vmax.f32 %v4729, 0.0
  %v5156 = vmax.f32 %v4732, 0.0
  %v5157 = vmax.f32 %v4737, 0.0
  %v5158 = vmax.f32 %v4740, 0.0
  %v5159 = vmax.f32 %v4745, 0.0
  %v5160 = vmax.f32 %v4748, 0.0
  %v5161 = vmax.f32 %v4753, 0.0
  %v5162 = vmax.f32 %v4756, 0.0
  %v5163 = vmax.f32 %v4761, 0.0
  %v5164 = vmax.f32 %v4764, 0.0
  %v5165 = vmax.f32 %v4769, 0.0
  %v5166 = vmax.f32 %v4772, 0.0
  %v5167 = vmax.f32 %v4777, 0.0
  %v5168 = vmax.f32 %v4780, 0.0
  %v5169 = vmax.f32 %v4785, 0.0
  %v5170 = vmax.f32 %v4788, 0.0
  %v5171 = vmax.f32 %v4793, 0.0
  %v5172 = vmax.f32 %v4796, 0.0
  %v5173 = vmax.f32 %v4801, 0.0
  %v5174 = vmax.f32 %v4804, 0.0
  %v5175 = vmax.f32 %v4809, 0.0
  %v5176 = vmax.f32 %v4812, 0.0
  %v5177 = vmax.f32 %v4817, 0.0
  %v5178 = vmax.f32 %v4820, 0.0
  %v5179 = vmax.f32 %v4825, 0.0
  %v5180 = vmax.f32 %v4828, 0.0
  %v5181 = vmax.f32 %v4833, 0.0
  %v5182 = vmax.f32 %v4836, 0.0
  %v5183 = vmax.f32 %v4841, 0.0
  %v5184 = vmax.f32 %v4844, 0.0
  %v5185 = vmax.f32 %v4849, 0.0
  %v5186 = vmax.f32 %v4852, 0.0
  %v5187 = vmax.f32 %v4857, 0.0
  %v5188 = vmax.f32 %v4860, 0.0
  %v5189 = vmax.f32 %v4865, 0.0
  %v5190 = vmax.f32 %v4868, 0.0
  %v5191 = vmax.f32 %v4873, 0.0
  %v5192 = vmax.f32 %v4876, 0.0
  %v5193 = vmax.f32 %v4881, 0.0
  %v5194 = vmax.f32 %v4884, 0.0
  %v5195 = vmax.f32 %v4889, 0.0
  %v5196 = vmax.f32 %v4892, 0.0
  %v5197 = vmax.f32 %v4897, 0.0
  %v5198 = vmax.f32 %v4900, 0.0
  %v5199 = vmax.f32 %v4905, 0.0
  %v5200 = vmax.f32 %v4908, 0.0
  %v5201 = vmax.f32 %v4913, 0.0
  %v5202 = vmax.f32 %v4916, 0.0
  %v5203 = vmax.f32 %v4921, 0.0
  %v5204 = vmax.f32 %v4924, 0.0
  %v5205 = vmax.f32 %v4929, 0.0
  %v5206 = vmax.f32 %v4932, 0.0
  %v5207 = vmax.f32 %v4937, 0.0
  %v5208 = vmax.f32 %v4940, 0.0
  %v5209 = vmax.f32 %v4945, 0.0
  %v5210 = vmax.f32 %v4948, 0.0
  %v5211 = vmax.f32 %v4953, 0.0
  %v5212 = vmax.f32 %v4956, 0.0
  %v5213 = vmax.f32 %v4961, 0.0
  %v5214 = vmax.f32 %v4964, 0.0
  %v5215 = vmax.f32 %v4969, 0.0
  %v5216 = vmax.f32 %v4972, 0.0
  %v5217 = vmax.f32 %v4977, 0.0
  %v5218 = vmax.f32 %v4980, 0.0
  %v5219 = vmax.f32 %v4985, 0.0
  %v5220 = vmax.f32 %v4988, 0.0
  %v5221 = vmax.f32 %v4993, 0.0
  %v5222 = vmax.f32 %v4996, 0.0
  %v5223 = vmax.f32 %v5001, 0.0
  %v5224 = vmax.f32 %v5004, 0.0
  %v5225 = vmax.f32 %v5009, 0.0
  %v5226 = vmax.f32 %v5012, 0.0
  %v5227 = vmax.f32 %v5017, 0.0
  %v5228 = vmax.f32 %v5020, 0.0
  %v5229 = vmax.f32 %v5025, 0.0
  %v5230 = vmax.f32 %v5028, 0.0
  %v5231 = vmax.f32 %v5033, 0.0
  %v5232 = vmax.f32 %v5036, 0.0
  %v5233 = vmax.f32 %v5041, 0.0
  %v5234 = vmax.f32 %v5044, 0.0
  %v5235 = vmax.f32 %v5049, 0.0
  %v5236 = vmax.f32 %v5052, 0.0
  %v5237 = vmax.f32 %v5057, 0.0
  %v5238 = vmax.f32 %v5060, 0.0
  %v5239 = vmax.f32 %v5065, 0.0
  %v5240 = vmax.f32 %v5068, 0.0
  %v5241 = vmax.f32 %v5073, 0.0
  %v5242 = vmax.f32 %v5076, 0.0
  %v5243 = vmax.f32 %v5081, 0.0
  %v5244 = vmax.f32 %v5084, 0.0
  %v5245 = vmax.f32 %v5089, 0.0
  %v5246 = vmax.f32 %v5092, 0.0
  %v5247 = vmax.f32 %v5097, 0.0
  %v5248 = vmax.f32 %v5100, 0.0
  %v5249 = vmax.f32 %v5105, 0.0
  %v5250 = vmax.f32 %v5108, 0.0
  %v5251 = vmax.f32 %v5113, 0.0
  %v5252 = vmax.f32 %v5116, 0.0
  %v5253 = vmax.f32 %v5121, 0.0
  %v5254 = vmax.f32 %v5124, 0.0
  %v5255 = vpack.c.bf16 %v5128, %v5127
  %v5256 = vpack.c.bf16 %v5130, %v5129
  %v5257 = vpack.c.bf16 %v5132, %v5131
  %v5258 = vpack.c.bf16 %v5134, %v5133
  %v5259 = vpack.c.bf16 %v5136, %v5135
  %v5260 = vpack.c.bf16 %v5138, %v5137
  %v5261 = vpack.c.bf16 %v5140, %v5139
  %v5262 = vpack.c.bf16 %v5142, %v5141
  %v5263 = vpack.c.bf16 %v5144, %v5143
  %v5264 = vpack.c.bf16 %v5146, %v5145
  %v5265 = vpack.c.bf16 %v5148, %v5147
  %v5266 = vpack.c.bf16 %v5150, %v5149
  %v5267 = vpack.c.bf16 %v5152, %v5151
  %v5268 = vpack.c.bf16 %v5154, %v5153
  %v5269 = vpack.c.bf16 %v5156, %v5155
  %v5270 = vpack.c.bf16 %v5158, %v5157
  %v5271 = vpack.c.bf16 %v5160, %v5159
  %v5272 = vpack.c.bf16 %v5162, %v5161
  %v5273 = vpack.c.bf16 %v5164, %v5163
  %v5274 = vpack.c.bf16 %v5166, %v5165
  %v5275 = vpack.c.bf16 %v5168, %v5167
  %v5276 = vpack.c.bf16 %v5170, %v5169
  %v5277 = vpack.c.bf16 %v5172, %v5171
  %v5278 = vpack.c.bf16 %v5174, %v5173
  %v5279 = vpack.c.bf16 %v5176, %v5175
  %v5280 = vpack.c.bf16 %v5178, %v5177
  %v5281 = vpack.c.bf16 %v5180, %v5179
  %v5282 = vpack.c.bf16 %v5182, %v5181
  %v5283 = vpack.c.bf16 %v5184, %v5183
  %v5284 = vpack.c.bf16 %v5186, %v5185
  %v5285 = vpack.c.bf16 %v5188, %v5187
  %v5286 = vpack.c.bf16 %v5190, %v5189
  %v5287 = vpack.c.bf16 %v5192, %v5191
  %v5288 = vpack.c.bf16 %v5194, %v5193
  %v5289 = vpack.c.bf16 %v5196, %v5195
  %v5290 = vpack.c.bf16 %v5198, %v5197
  %v5291 = vpack.c.bf16 %v5200, %v5199
  %v5292 = vpack.c.bf16 %v5202, %v5201
  %v5293 = vpack.c.bf16 %v5204, %v5203
  %v5294 = vpack.c.bf16 %v5206, %v5205
  %v5295 = vpack.c.bf16 %v5208, %v5207
  %v5296 = vpack.c.bf16 %v5210, %v5209
  %v5297 = vpack.c.bf16 %v5212, %v5211
  %v5298 = vpack.c.bf16 %v5214, %v5213
  %v5299 = vpack.c.bf16 %v5216, %v5215
  %v5300 = vpack.c.bf16 %v5218, %v5217
  %v5301 = vpack.c.bf16 %v5220, %v5219
  %v5302 = vpack.c.bf16 %v5222, %v5221
  %v5303 = vpack.c.bf16 %v5224, %v5223
  %v5304 = vpack.c.bf16 %v5226, %v5225
  %v5305 = vpack.c.bf16 %v5228, %v5227
  %v5306 = vpack.c.bf16 %v5230, %v5229
  %v5307 = vpack.c.bf16 %v5232, %v5231
  %v5308 = vpack.c.bf16 %v5234, %v5233
  %v5309 = vpack.c.bf16 %v5236, %v5235
  %v5310 = vpack.c.bf16 %v5238, %v5237
  %v5311 = vpack.c.bf16 %v5240, %v5239
  %v5312 = vpack.c.bf16 %v5242, %v5241
  %v5313 = vpack.c.bf16 %v5244, %v5243
  %v5314 = vpack.c.bf16 %v5246, %v5245
  %v5315 = vpack.c.bf16 %v5248, %v5247
  %v5316 = vpack.c.bf16 %v5250, %v5249
  %v5317 = vpack.c.bf16 %v5252, %v5251
  %v5318 = vpack.c.bf16 %v5254, %v5253
  %v5319 = vld [vmem:[%s3] sm:$0xf]
  %v5320 = vld [vmem:[%s3 + $0x4] sm:$0xf]
  %v5321 = vld [vmem:[%s3 + $0x8] sm:$0xf]
  %v5322 = vld [vmem:[%s3 + $0xc] sm:$0xf]
  %v5323 = vld [vmem:[%s3 + $0x10] sm:$0xf]
  %v5324 = vld [vmem:[%s3 + $0x14] sm:$0xf]
  %v5325 = vld [vmem:[%s3 + $0x18] sm:$0xf]
  %v5326 = vld [vmem:[%s3 + $0x1c] sm:$0xf]
  %v5327 = vld [vmem:[%s3 + $0x20] sm:$0xf]
  %v5328 = vld [vmem:[%s3 + $0x24] sm:$0xf]
  %v5329 = vld [vmem:[%s3 + $0x28] sm:$0xf]
  %v5330 = vld [vmem:[%s3 + $0x2c] sm:$0xf]
  %v5331 = vld [vmem:[%s3 + $0x30] sm:$0xf]
  %v5332 = vld [vmem:[%s3 + $0x34] sm:$0xf]
  %v5333 = vld [vmem:[%s3 + $0x38] sm:$0xf]
  %v5334 = vld [vmem:[%s3 + $0x3c] sm:$0xf]
  %v5335 = vld [vmem:[%s4] sm:$0x1]
  %v5337 = vlaneseq
  %v5338 = vshrl.u32 %v5337, 7
  %v5339 = vsub.s32 0, %v5338
  %v5340 = vrot.slane %v5335, %v5339
  %v5358 = vunpack.c.l.b16 %v5319
  %v5359 = vunpack.c.l.b16 %v5320
  %v5360 = vunpack.c.l.b16 %v5321
  %v5361 = vunpack.c.l.b16 %v5322
  %v5362 = vunpack.c.l.b16 %v5323
  %v5363 = vunpack.c.l.b16 %v5324
  %v5364 = vunpack.c.l.b16 %v5325
  %v5365 = vunpack.c.l.b16 %v5326
  %v5366 = vunpack.c.l.b16 %v5327
  %v5367 = vunpack.c.l.b16 %v5328
  %v5368 = vunpack.c.l.b16 %v5329
  %v5369 = vunpack.c.l.b16 %v5330
  %v5370 = vunpack.c.l.b16 %v5331
  %v5371 = vunpack.c.l.b16 %v5332
  %v5372 = vunpack.c.l.b16 %v5333
  %v5373 = vunpack.c.l.b16 %v5334
  %v5374 = vpack.c.b16 %v5359, %v5358
  %v5375 = vpack.c.b16 %v5361, %v5360
  %v5376 = vpack.c.b16 %v5363, %v5362
  %v5377 = vpack.c.b16 %v5365, %v5364
  %v5378 = vpack.c.b16 %v5367, %v5366
  %v5379 = vpack.c.b16 %v5369, %v5368
  %v5380 = vpack.c.b16 %v5371, %v5370
  %v5381 = vpack.c.b16 %v5373, %v5372
  %5390 = vmatprep.subr.bf16.mxu0 0
  %5391 = vmatpush1.bf16.msra.mxu0 %v5374
  %5392 = vmatprep.subr.bf16.mxu0 0
  %5393 = vmatpush1.bf16.msra.mxu0 %v5375
  %5394 = vmatprep.subr.bf16.mxu0 0
  %5395 = vmatpush1.bf16.msra.mxu0 %v5376
  %5396 = vmatprep.subr.bf16.mxu0 0
  %5397 = vmatpush1.bf16.msra.mxu0 %v5377
  %5398 = vmatprep.subr.bf16.mxu0 0
  %5399 = vmatpush1.bf16.msra.mxu0 %v5378
  %5400 = vmatprep.subr.bf16.mxu0 0
  %5401 = vmatpush1.bf16.msra.mxu0 %v5379
  %5402 = vmatprep.subr.bf16.mxu0 0
  %5403 = vmatpush1.bf16.msra.mxu0 %v5380
  %5404 = vmatprep.subr.bf16.mxu0 0
  %5405 = vmatpush1.bf16.msra.mxu0 %v5381
  %5406 = vmatprep.subr.bf16.mxu0 0
  %5407 = vmatpush1.bf16.msra.mxu0 0
  %5408 = vmatprep.subr.bf16.mxu0 0
  %5409 = vmatpush1.bf16.msra.mxu0 0
  %5410 = vmatprep.subr.bf16.mxu0 0
  %5411 = vmatpush1.bf16.msra.mxu0 0
  %5412 = vmatprep.subr.bf16.mxu0 0
  %5413 = vmatpush1.bf16.msra.mxu0 0
  %5414 = vmatprep.subr.bf16.mxu0 0
  %5415 = vmatpush1.bf16.msra.mxu0 0
  %5416 = vmatprep.subr.bf16.mxu0 0
  %5417 = vmatpush1.bf16.msra.mxu0 0
  %5418 = vmatprep.subr.bf16.mxu0 0
  %5419 = vmatpush1.bf16.msra.mxu0 0
  %5420 = vmatprep.subr.bf16.mxu0 0
  %5421 = vmatpush1.bf16.msra.mxu0 0
  %5422 = vmatprep.mubr.bf16.mxu0 0
  %5423 = vmatmul.mubr.bf16.gmra.mrb[0].mxu0 %v5255
  %v5424 = vpop.f32.mrb[0].mxu0
  %v5425 = vadd.f32 %v5340, %v5424
  %v5426 = vpop.f32.mrb[0].mxu0
  %v5427 = vpop.f32.mrb[0].mxu0
  %v5428 = vadd.f32 %v5340, %v5427
  %v5429 = vpop.f32.mrb[0].mxu0
  %5430 = vmatprep.mubr.bf16.mxu0 0
  %5431 = vmatmul.mubr.bf16.gmra.mrb[0].mxu0 %v5256
  %v5432 = vpop.f32.mrb[0].mxu0
  %v5433 = vadd.f32 %v5340, %v5432
  %v5434 = vpop.f32.mrb[0].mxu0
  %v5435 = vpop.f32.mrb[0].mxu0
  %v5436 = vadd.f32 %v5340, %v5435
  %v5437 = vpop.f32.mrb[0].mxu0
  %5438 = vmatprep.mubr.bf16.mxu0 0
  %5439 = vmatmul.mubr.bf16.gmra.mrb[0].mxu0 %v5257
  %v5440 = vpop.f32.mrb[0].mxu0
  %v5441 = vadd.f32 %v5340, %v5440
  %v5442 = vpop.f32.mrb[0].mxu0
  %v5443 = vpop.f32.mrb[0].mxu0
  %v5444 = vadd.f32 %v5340, %v5443
  %v5445 = vpop.f32.mrb[0].mxu0
  %5446 = vmatprep.mubr.bf16.mxu0 0
  %5447 = vmatmul.mubr.bf16.gmra.mrb[0].mxu0 %v5258
  %v5448 = vpop.f32.mrb[0].mxu0
  %v5449 = vadd.f32 %v5340, %v5448
  %v5450 = vpop.f32.mrb[0].mxu0
  %v5451 = vpop.f32.mrb[0].mxu0
  %v5452 = vadd.f32 %v5340, %v5451
  %v5453 = vpop.f32.mrb[0].mxu0
  %5454 = vmatprep.mubr.bf16.mxu0 0
  %5455 = vmatmul.mubr.bf16.gmra.mrb[0].mxu0 %v5259
  %v5456 = vpop.f32.mrb[0].mxu0
  %v5457 = vadd.f32 %v5340, %v5456
  %v5458 = vpop.f32.mrb[0].mxu0
  %v5459 = vpop.f32.mrb[0].mxu0
  %v5460 = vadd.f32 %v5340, %v5459
  %v5461 = vpop.f32.mrb[0].mxu0
  %5462 = vmatprep.mubr.bf16.mxu0 0
  %5463 = vmatmul.mubr.bf16.gmra.mrb[0].mxu0 %v5260
  %v5464 = vpop.f32.mrb[0].mxu0
  %v5465 = vadd.f32 %v5340, %v5464
  %v5466 = vpop.f32.mrb[0].mxu0
  %v5467 = vpop.f32.mrb[0].mxu0
  %v5468 = vadd.f32 %v5340, %v5467
  %v5469 = vpop.f32.mrb[0].mxu0
  %5470 = vmatprep.mubr.bf16.mxu0 0
  %5471 = vmatmul.mubr.bf16.gmra.mrb[0].mxu0 %v5261
  %v5472 = vpop.f32.mrb[0].mxu0
  %v5473 = vadd.f32 %v5340, %v5472
  %v5474 = vpop.f32.mrb[0].mxu0
  %v5475 = vpop.f32.mrb[0].mxu0
  %v5476 = vadd.f32 %v5340, %v5475
  %v5477 = vpop.f32.mrb[0].mxu0
  %5478 = vmatprep.mubr.bf16.mxu0 0
  %5479 = vmatmul.mubr.bf16.gmra.mrb[0].mxu0 %v5262
  %v5480 = vpop.f32.mrb[0].mxu0
  %v5481 = vadd.f32 %v5340, %v5480
  %v5482 = vpop.f32.mrb[0].mxu0
  %v5483 = vpop.f32.mrb[0].mxu0
  %v5484 = vadd.f32 %v5340, %v5483
  %v5485 = vpop.f32.mrb[0].mxu0
  %5486 = vmatprep.mubr.bf16.mxu0 0
  %5487 = vmatmul.mubr.bf16.gmra.mrb[0].mxu0 %v5263
  %v5488 = vpop.f32.mrb[0].mxu0
  %v5489 = vadd.f32 %v5340, %v5488
  %v5490 = vpop.f32.mrb[0].mxu0
  %v5491 = vpop.f32.mrb[0].mxu0
  %v5492 = vadd.f32 %v5340, %v5491
  %v5493 = vpop.f32.mrb[0].mxu0
  %5494 = vmatprep.mubr.bf16.mxu0 0
  %5495 = vmatmul.mubr.bf16.gmra.mrb[0].mxu0 %v5264
  %v5496 = vpop.f32.mrb[0].mxu0
  %v5497 = vadd.f32 %v5340, %v5496
  %v5498 = vpop.f32.mrb[0].mxu0
  %v5499 = vpop.f32.mrb[0].mxu0
  %v5500 = vadd.f32 %v5340, %v5499
  %v5501 = vpop.f32.mrb[0].mxu0
  %5502 = vmatprep.mubr.bf16.mxu0 0
  %5503 = vmatmul.mubr.bf16.gmra.mrb[0].mxu0 %v5265
  %v5504 = vpop.f32.mrb[0].mxu0
  %v5505 = vadd.f32 %v5340, %v5504
  %v5506 = vpop.f32.mrb[0].mxu0
  %v5507 = vpop.f32.mrb[0].mxu0
  %v5508 = vadd.f32 %v5340, %v5507
  %v5509 = vpop.f32.mrb[0].mxu0
  %5510 = vmatprep.mubr.bf16.mxu0 0
  %5511 = vmatmul.mubr.bf16.gmra.mrb[0].mxu0 %v5266
  %v5512 = vpop.f32.mrb[0].mxu0
  %v5513 = vadd.f32 %v5340, %v5512
  %v5514 = vpop.f32.mrb[0].mxu0
  %v5515 = vpop.f32.mrb[0].mxu0
  %v5516 = vadd.f32 %v5340, %v5515
  %v5517 = vpop.f32.mrb[0].mxu0
  %5518 = vmatprep.mubr.bf16.mxu0 0
  %5519 = vmatmul.mubr.bf16.gmra.mrb[0].mxu0 %v5267
  %v5520 = vpop.f32.mrb[0].mxu0
  %v5521 = vadd.f32 %v5340, %v5520
  %v5522 = vpop.f32.mrb[0].mxu0
  %v5523 = vpop.f32.mrb[0].mxu0
  %v5524 = vadd.f32 %v5340, %v5523
  %v5525 = vpop.f32.mrb[0].mxu0
  %5526 = vmatprep.mubr.bf16.mxu0 0
  %5527 = vmatmul.mubr.bf16.gmra.mrb[0].mxu0 %v5268
  %v5528 = vpop.f32.mrb[0].mxu0
  %v5529 = vadd.f32 %v5340, %v5528
  %v5530 = vpop.f32.mrb[0].mxu0
  %v5531 = vpop.f32.mrb[0].mxu0
  %v5532 = vadd.f32 %v5340, %v5531
  %v5533 = vpop.f32.mrb[0].mxu0
  %5534 = vmatprep.mubr.bf16.mxu0 0
  %5535 = vmatmul.mubr.bf16.gmra.mrb[0].mxu0 %v5269
  %v5536 = vpop.f32.mrb[0].mxu0
  %v5537 = vadd.f32 %v5340, %v5536
  %v5538 = vpop.f32.mrb[0].mxu0
  %v5539 = vpop.f32.mrb[0].mxu0
  %v5540 = vadd.f32 %v5340, %v5539
  %v5541 = vpop.f32.mrb[0].mxu0
  %5542 = vmatprep.mubr.bf16.mxu0 0
  %5543 = vmatmul.mubr.bf16.gmra.mrb[0].mxu0 %v5270
  %v5544 = vpop.f32.mrb[0].mxu0
  %v5545 = vadd.f32 %v5340, %v5544
  %v5546 = vpop.f32.mrb[0].mxu0
  %v5547 = vpop.f32.mrb[0].mxu0
  %v5548 = vadd.f32 %v5340, %v5547
  %v5549 = vpop.f32.mrb[0].mxu0
  %5550 = vmatprep.mubr.bf16.mxu0 0
  %5551 = vmatmul.mubr.bf16.gmra.mrb[0].mxu0 %v5271
  %v5552 = vpop.f32.mrb[0].mxu0
  %v5553 = vadd.f32 %v5340, %v5552
  %v5554 = vpop.f32.mrb[0].mxu0
  %v5555 = vpop.f32.mrb[0].mxu0
  %v5556 = vadd.f32 %v5340, %v5555
  %v5557 = vpop.f32.mrb[0].mxu0
  %5558 = vmatprep.mubr.bf16.mxu0 0
  %5559 = vmatmul.mubr.bf16.gmra.mrb[0].mxu0 %v5272
  %v5560 = vpop.f32.mrb[0].mxu0
  %v5561 = vadd.f32 %v5340, %v5560
  %v5562 = vpop.f32.mrb[0].mxu0
  %v5563 = vpop.f32.mrb[0].mxu0
  %v5564 = vadd.f32 %v5340, %v5563
  %v5565 = vpop.f32.mrb[0].mxu0
  %5566 = vmatprep.mubr.bf16.mxu0 0
  %5567 = vmatmul.mubr.bf16.gmra.mrb[0].mxu0 %v5273
  %v5568 = vpop.f32.mrb[0].mxu0
  %v5569 = vadd.f32 %v5340, %v5568
  %v5570 = vpop.f32.mrb[0].mxu0
  %v5571 = vpop.f32.mrb[0].mxu0
  %v5572 = vadd.f32 %v5340, %v5571
  %v5573 = vpop.f32.mrb[0].mxu0
  %5574 = vmatprep.mubr.bf16.mxu0 0
  %5575 = vmatmul.mubr.bf16.gmra.mrb[0].mxu0 %v5274
  %v5576 = vpop.f32.mrb[0].mxu0
  %v5577 = vadd.f32 %v5340, %v5576
  %v5578 = vpop.f32.mrb[0].mxu0
  %v5579 = vpop.f32.mrb[0].mxu0
  %v5580 = vadd.f32 %v5340, %v5579
  %v5581 = vpop.f32.mrb[0].mxu0
  %5582 = vmatprep.mubr.bf16.mxu0 0
  %5583 = vmatmul.mubr.bf16.gmra.mrb[0].mxu0 %v5275
  %v5584 = vpop.f32.mrb[0].mxu0
  %v5585 = vadd.f32 %v5340, %v5584
  %v5586 = vpop.f32.mrb[0].mxu0
  %v5587 = vpop.f32.mrb[0].mxu0
  %v5588 = vadd.f32 %v5340, %v5587
  %v5589 = vpop.f32.mrb[0].mxu0
  %5590 = vmatprep.mubr.bf16.mxu0 0
  %5591 = vmatmul.mubr.bf16.gmra.mrb[0].mxu0 %v5276
  %v5592 = vpop.f32.mrb[0].mxu0
  %v5593 = vadd.f32 %v5340, %v5592
  %v5594 = vpop.f32.mrb[0].mxu0
  %v5595 = vpop.f32.mrb[0].mxu0
  %v5596 = vadd.f32 %v5340, %v5595
  %v5597 = vpop.f32.mrb[0].mxu0
  %5598 = vmatprep.mubr.bf16.mxu0 0
  %5599 = vmatmul.mubr.bf16.gmra.mrb[0].mxu0 %v5277
  %v5600 = vpop.f32.mrb[0].mxu0
  %v5601 = vadd.f32 %v5340, %v5600
  %v5602 = vpop.f32.mrb[0].mxu0
  %v5603 = vpop.f32.mrb[0].mxu0
  %v5604 = vadd.f32 %v5340, %v5603
  %v5605 = vpop.f32.mrb[0].mxu0
  %5606 = vmatprep.mubr.bf16.mxu0 0
  %5607 = vmatmul.mubr.bf16.gmra.mrb[0].mxu0 %v5278
  %v5608 = vpop.f32.mrb[0].mxu0
  %v5609 = vadd.f32 %v5340, %v5608
  %v5610 = vpop.f32.mrb[0].mxu0
  %v5611 = vpop.f32.mrb[0].mxu0
  %v5612 = vadd.f32 %v5340, %v5611
  %v5613 = vpop.f32.mrb[0].mxu0
  %5614 = vmatprep.mubr.bf16.mxu0 0
  %5615 = vmatmul.mubr.bf16.gmra.mrb[0].mxu0 %v5279
  %v5616 = vpop.f32.mrb[0].mxu0
  %v5617 = vadd.f32 %v5340, %v5616
  %v5618 = vpop.f32.mrb[0].mxu0
  %v5619 = vpop.f32.mrb[0].mxu0
  %v5620 = vadd.f32 %v5340, %v5619
  %v5621 = vpop.f32.mrb[0].mxu0
  %5622 = vmatprep.mubr.bf16.mxu0 0
  %5623 = vmatmul.mubr.bf16.gmra.mrb[0].mxu0 %v5280
  %v5624 = vpop.f32.mrb[0].mxu0
  %v5625 = vadd.f32 %v5340, %v5624
  %v5626 = vpop.f32.mrb[0].mxu0
  %v5627 = vpop.f32.mrb[0].mxu0
  %v5628 = vadd.f32 %v5340, %v5627
  %v5629 = vpop.f32.mrb[0].mxu0
  %5630 = vmatprep.mubr.bf16.mxu0 0
  %5631 = vmatmul.mubr.bf16.gmra.mrb[0].mxu0 %v5281
  %v5632 = vpop.f32.mrb[0].mxu0
  %v5633 = vadd.f32 %v5340, %v5632
  %v5634 = vpop.f32.mrb[0].mxu0
  %v5635 = vpop.f32.mrb[0].mxu0
  %v5636 = vadd.f32 %v5340, %v5635
  %v5637 = vpop.f32.mrb[0].mxu0
  %5638 = vmatprep.mubr.bf16.mxu0 0
  %5639 = vmatmul.mubr.bf16.gmra.mrb[0].mxu0 %v5282
  %v5640 = vpop.f32.mrb[0].mxu0
  %v5641 = vadd.f32 %v5340, %v5640
  %v5642 = vpop.f32.mrb[0].mxu0
  %v5643 = vpop.f32.mrb[0].mxu0
  %v5644 = vadd.f32 %v5340, %v5643
  %v5645 = vpop.f32.mrb[0].mxu0
  %5646 = vmatprep.mubr.bf16.mxu0 0
  %5647 = vmatmul.mubr.bf16.gmra.mrb[0].mxu0 %v5283
  %v5648 = vpop.f32.mrb[0].mxu0
  %v5649 = vadd.f32 %v5340, %v5648
  %v5650 = vpop.f32.mrb[0].mxu0
  %v5651 = vpop.f32.mrb[0].mxu0
  %v5652 = vadd.f32 %v5340, %v5651
  %v5653 = vpop.f32.mrb[0].mxu0
  %5654 = vmatprep.mubr.bf16.mxu0 0
  %5655 = vmatmul.mubr.bf16.gmra.mrb[0].mxu0 %v5284
  %v5656 = vpop.f32.mrb[0].mxu0
  %v5657 = vadd.f32 %v5340, %v5656
  %v5658 = vpop.f32.mrb[0].mxu0
  %v5659 = vpop.f32.mrb[0].mxu0
  %v5660 = vadd.f32 %v5340, %v5659
  %v5661 = vpop.f32.mrb[0].mxu0
  %5662 = vmatprep.mubr.bf16.mxu0 0
  %5663 = vmatmul.mubr.bf16.gmra.mrb[0].mxu0 %v5285
  %v5664 = vpop.f32.mrb[0].mxu0
  %v5665 = vadd.f32 %v5340, %v5664
  %v5666 = vpop.f32.mrb[0].mxu0
  %v5667 = vpop.f32.mrb[0].mxu0
  %v5668 = vadd.f32 %v5340, %v5667
  %v5669 = vpop.f32.mrb[0].mxu0
  %5670 = vmatprep.mubr.bf16.mxu0 0
  %5671 = vmatmul.mubr.bf16.gmra.mrb[0].mxu0 %v5286
  %v5672 = vpop.f32.mrb[0].mxu0
  %v5673 = vadd.f32 %v5340, %v5672
  %v5674 = vpop.f32.mrb[0].mxu0
  %v5675 = vpop.f32.mrb[0].mxu0
  %v5676 = vadd.f32 %v5340, %v5675
  %v5677 = vpop.f32.mrb[0].mxu0
  %5678 = vmatprep.mubr.bf16.mxu0 0
  %5679 = vmatmul.mubr.bf16.gmra.mrb[0].mxu0 %v5287
  %v5680 = vpop.f32.mrb[0].mxu0
  %v5681 = vadd.f32 %v5340, %v5680
  %v5682 = vpop.f32.mrb[0].mxu0
  %v5683 = vpop.f32.mrb[0].mxu0
  %v5684 = vadd.f32 %v5340, %v5683
  %v5685 = vpop.f32.mrb[0].mxu0
  %5686 = vmatprep.mubr.bf16.mxu0 0
  %5687 = vmatmul.mubr.bf16.gmra.mrb[0].mxu0 %v5288
  %v5688 = vpop.f32.mrb[0].mxu0
  %v5689 = vadd.f32 %v5340, %v5688
  %v5690 = vpop.f32.mrb[0].mxu0
  %v5691 = vpop.f32.mrb[0].mxu0
  %v5692 = vadd.f32 %v5340, %v5691
  %v5693 = vpop.f32.mrb[0].mxu0
  %5694 = vmatprep.mubr.bf16.mxu0 0
  %5695 = vmatmul.mubr.bf16.gmra.mrb[0].mxu0 %v5289
  %v5696 = vpop.f32.mrb[0].mxu0
  %v5697 = vadd.f32 %v5340, %v5696
  %v5698 = vpop.f32.mrb[0].mxu0
  %v5699 = vpop.f32.mrb[0].mxu0
  %v5700 = vadd.f32 %v5340, %v5699
  %v5701 = vpop.f32.mrb[0].mxu0
  %5702 = vmatprep.mubr.bf16.mxu0 0
  %5703 = vmatmul.mubr.bf16.gmra.mrb[0].mxu0 %v5290
  %v5704 = vpop.f32.mrb[0].mxu0
  %v5705 = vadd.f32 %v5340, %v5704
  %v5706 = vpop.f32.mrb[0].mxu0
  %v5707 = vpop.f32.mrb[0].mxu0
  %v5708 = vadd.f32 %v5340, %v5707
  %v5709 = vpop.f32.mrb[0].mxu0
  %5710 = vmatprep.mubr.bf16.mxu0 0
  %5711 = vmatmul.mubr.bf16.gmra.mrb[0].mxu0 %v5291
  %v5712 = vpop.f32.mrb[0].mxu0
  %v5713 = vadd.f32 %v5340, %v5712
  %v5714 = vpop.f32.mrb[0].mxu0
  %v5715 = vpop.f32.mrb[0].mxu0
  %v5716 = vadd.f32 %v5340, %v5715
  %v5717 = vpop.f32.mrb[0].mxu0
  %5718 = vmatprep.mubr.bf16.mxu0 0
  %5719 = vmatmul.mubr.bf16.gmra.mrb[0].mxu0 %v5292
  %v5720 = vpop.f32.mrb[0].mxu0
  %v5721 = vadd.f32 %v5340, %v5720
  %v5722 = vpop.f32.mrb[0].mxu0
  %v5723 = vpop.f32.mrb[0].mxu0
  %v5724 = vadd.f32 %v5340, %v5723
  %v5725 = vpop.f32.mrb[0].mxu0
  %5726 = vmatprep.mubr.bf16.mxu0 0
  %5727 = vmatmul.mubr.bf16.gmra.mrb[0].mxu0 %v5293
  %v5728 = vpop.f32.mrb[0].mxu0
  %v5729 = vadd.f32 %v5340, %v5728
  %v5730 = vpop.f32.mrb[0].mxu0
  %v5731 = vpop.f32.mrb[0].mxu0
  %v5732 = vadd.f32 %v5340, %v5731
  %v5733 = vpop.f32.mrb[0].mxu0
  %5734 = vmatprep.mubr.bf16.mxu0 0
  %5735 = vmatmul.mubr.bf16.gmra.mrb[0].mxu0 %v5294
  %v5736 = vpop.f32.mrb[0].mxu0
  %v5737 = vadd.f32 %v5340, %v5736
  %v5738 = vpop.f32.mrb[0].mxu0
  %v5739 = vpop.f32.mrb[0].mxu0
  %v5740 = vadd.f32 %v5340, %v5739
  %v5741 = vpop.f32.mrb[0].mxu0
  %5742 = vmatprep.mubr.bf16.mxu0 0
  %5743 = vmatmul.mubr.bf16.gmra.mrb[0].mxu0 %v5295
  %v5744 = vpop.f32.mrb[0].mxu0
  %v5745 = vadd.f32 %v5340, %v5744
  %v5746 = vpop.f32.mrb[0].mxu0
  %v5747 = vpop.f32.mrb[0].mxu0
  %v5748 = vadd.f32 %v5340, %v5747
  %v5749 = vpop.f32.mrb[0].mxu0
  %5750 = vmatprep.mubr.bf16.mxu0 0
  %5751 = vmatmul.mubr.bf16.gmra.mrb[0].mxu0 %v5296
  %v5752 = vpop.f32.mrb[0].mxu0
  %v5753 = vadd.f32 %v5340, %v5752
  %v5754 = vpop.f32.mrb[0].mxu0
  %v5755 = vpop.f32.mrb[0].mxu0
  %v5756 = vadd.f32 %v5340, %v5755
  %v5757 = vpop.f32.mrb[0].mxu0
  %5758 = vmatprep.mubr.bf16.mxu0 0
  %5759 = vmatmul.mubr.bf16.gmra.mrb[0].mxu0 %v5297
  %v5760 = vpop.f32.mrb[0].mxu0
  %v5761 = vadd.f32 %v5340, %v5760
  %v5762 = vpop.f32.mrb[0].mxu0
  %v5763 = vpop.f32.mrb[0].mxu0
  %v5764 = vadd.f32 %v5340, %v5763
  %v5765 = vpop.f32.mrb[0].mxu0
  %5766 = vmatprep.mubr.bf16.mxu0 0
  %5767 = vmatmul.mubr.bf16.gmra.mrb[0].mxu0 %v5298
  %v5768 = vpop.f32.mrb[0].mxu0
  %v5769 = vadd.f32 %v5340, %v5768
  %v5770 = vpop.f32.mrb[0].mxu0
  %v5771 = vpop.f32.mrb[0].mxu0
  %v5772 = vadd.f32 %v5340, %v5771
  %v5773 = vpop.f32.mrb[0].mxu0
  %5774 = vmatprep.mubr.bf16.mxu0 0
  %5775 = vmatmul.mubr.bf16.gmra.mrb[0].mxu0 %v5299
  %v5776 = vpop.f32.mrb[0].mxu0
  %v5777 = vadd.f32 %v5340, %v5776
  %v5778 = vpop.f32.mrb[0].mxu0
  %v5779 = vpop.f32.mrb[0].mxu0
  %v5780 = vadd.f32 %v5340, %v5779
  %v5781 = vpop.f32.mrb[0].mxu0
  %5782 = vmatprep.mubr.bf16.mxu0 0
  %5783 = vmatmul.mubr.bf16.gmra.mrb[0].mxu0 %v5300
  %v5784 = vpop.f32.mrb[0].mxu0
  %v5785 = vadd.f32 %v5340, %v5784
  %v5786 = vpop.f32.mrb[0].mxu0
  %v5787 = vpop.f32.mrb[0].mxu0
  %v5788 = vadd.f32 %v5340, %v5787
  %v5789 = vpop.f32.mrb[0].mxu0
  %5790 = vmatprep.mubr.bf16.mxu0 0
  %5791 = vmatmul.mubr.bf16.gmra.mrb[0].mxu0 %v5301
  %v5792 = vpop.f32.mrb[0].mxu0
  %v5793 = vadd.f32 %v5340, %v5792
  %v5794 = vpop.f32.mrb[0].mxu0
  %v5795 = vpop.f32.mrb[0].mxu0
  %v5796 = vadd.f32 %v5340, %v5795
  %v5797 = vpop.f32.mrb[0].mxu0
  %5798 = vmatprep.mubr.bf16.mxu0 0
  %5799 = vmatmul.mubr.bf16.gmra.mrb[0].mxu0 %v5302
  %v5800 = vpop.f32.mrb[0].mxu0
  %v5801 = vadd.f32 %v5340, %v5800
  %v5802 = vpop.f32.mrb[0].mxu0
  %v5803 = vpop.f32.mrb[0].mxu0
  %v5804 = vadd.f32 %v5340, %v5803
  %v5805 = vpop.f32.mrb[0].mxu0
  %5806 = vmatprep.mubr.bf16.mxu0 0
  %5807 = vmatmul.mubr.bf16.gmra.mrb[0].mxu0 %v5303
  %v5808 = vpop.f32.mrb[0].mxu0
  %v5809 = vadd.f32 %v5340, %v5808
  %v5810 = vpop.f32.mrb[0].mxu0
  %v5811 = vpop.f32.mrb[0].mxu0
  %v5812 = vadd.f32 %v5340, %v5811
  %v5813 = vpop.f32.mrb[0].mxu0
  %5814 = vmatprep.mubr.bf16.mxu0 0
  %5815 = vmatmul.mubr.bf16.gmra.mrb[0].mxu0 %v5304
  %v5816 = vpop.f32.mrb[0].mxu0
  %v5817 = vadd.f32 %v5340, %v5816
  %v5818 = vpop.f32.mrb[0].mxu0
  %v5819 = vpop.f32.mrb[0].mxu0
  %v5820 = vadd.f32 %v5340, %v5819
  %v5821 = vpop.f32.mrb[0].mxu0
  %5822 = vmatprep.mubr.bf16.mxu0 0
  %5823 = vmatmul.mubr.bf16.gmra.mrb[0].mxu0 %v5305
  %v5824 = vpop.f32.mrb[0].mxu0
  %v5825 = vadd.f32 %v5340, %v5824
  %v5826 = vpop.f32.mrb[0].mxu0
  %v5827 = vpop.f32.mrb[0].mxu0
  %v5828 = vadd.f32 %v5340, %v5827
  %v5829 = vpop.f32.mrb[0].mxu0
  %5830 = vmatprep.mubr.bf16.mxu0 0
  %5831 = vmatmul.mubr.bf16.gmra.mrb[0].mxu0 %v5306
  %v5832 = vpop.f32.mrb[0].mxu0
  %v5833 = vadd.f32 %v5340, %v5832
  %v5834 = vpop.f32.mrb[0].mxu0
  %v5835 = vpop.f32.mrb[0].mxu0
  %v5836 = vadd.f32 %v5340, %v5835
  %v5837 = vpop.f32.mrb[0].mxu0
  %5838 = vmatprep.mubr.bf16.mxu0 0
  %5839 = vmatmul.mubr.bf16.gmra.mrb[0].mxu0 %v5307
  %v5840 = vpop.f32.mrb[0].mxu0
  %v5841 = vadd.f32 %v5340, %v5840
  %v5842 = vpop.f32.mrb[0].mxu0
  %v5843 = vpop.f32.mrb[0].mxu0
  %v5844 = vadd.f32 %v5340, %v5843
  %v5845 = vpop.f32.mrb[0].mxu0
  %5846 = vmatprep.mubr.bf16.mxu0 0
  %5847 = vmatmul.mubr.bf16.gmra.mrb[0].mxu0 %v5308
  %v5848 = vpop.f32.mrb[0].mxu0
  %v5849 = vadd.f32 %v5340, %v5848
  %v5850 = vpop.f32.mrb[0].mxu0
  %v5851 = vpop.f32.mrb[0].mxu0
  %v5852 = vadd.f32 %v5340, %v5851
  %v5853 = vpop.f32.mrb[0].mxu0
  %5854 = vmatprep.mubr.bf16.mxu0 0
  %5855 = vmatmul.mubr.bf16.gmra.mrb[0].mxu0 %v5309
  %v5856 = vpop.f32.mrb[0].mxu0
  %v5857 = vadd.f32 %v5340, %v5856
  %v5858 = vpop.f32.mrb[0].mxu0
  %v5859 = vpop.f32.mrb[0].mxu0
  %v5860 = vadd.f32 %v5340, %v5859
  %v5861 = vpop.f32.mrb[0].mxu0
  %5862 = vmatprep.mubr.bf16.mxu0 0
  %5863 = vmatmul.mubr.bf16.gmra.mrb[0].mxu0 %v5310
  %v5864 = vpop.f32.mrb[0].mxu0
  %v5865 = vadd.f32 %v5340, %v5864
  %v5866 = vpop.f32.mrb[0].mxu0
  %v5867 = vpop.f32.mrb[0].mxu0
  %v5868 = vadd.f32 %v5340, %v5867
  %v5869 = vpop.f32.mrb[0].mxu0
  %5870 = vmatprep.mubr.bf16.mxu0 0
  %5871 = vmatmul.mubr.bf16.gmra.mrb[0].mxu0 %v5311
  %v5872 = vpop.f32.mrb[0].mxu0
  %v5873 = vadd.f32 %v5340, %v5872
  %v5874 = vpop.f32.mrb[0].mxu0
  %v5875 = vpop.f32.mrb[0].mxu0
  %v5876 = vadd.f32 %v5340, %v5875
  %v5877 = vpop.f32.mrb[0].mxu0
  %5878 = vmatprep.mubr.bf16.mxu0 0
  %5879 = vmatmul.mubr.bf16.gmra.mrb[0].mxu0 %v5312
  %v5880 = vpop.f32.mrb[0].mxu0
  %v5881 = vadd.f32 %v5340, %v5880
  %v5882 = vpop.f32.mrb[0].mxu0
  %v5883 = vpop.f32.mrb[0].mxu0
  %v5884 = vadd.f32 %v5340, %v5883
  %v5885 = vpop.f32.mrb[0].mxu0
  %5886 = vmatprep.mubr.bf16.mxu0 0
  %5887 = vmatmul.mubr.bf16.gmra.mrb[0].mxu0 %v5313
  %v5888 = vpop.f32.mrb[0].mxu0
  %v5889 = vadd.f32 %v5340, %v5888
  %v5890 = vpop.f32.mrb[0].mxu0
  %v5891 = vpop.f32.mrb[0].mxu0
  %v5892 = vadd.f32 %v5340, %v5891
  %v5893 = vpop.f32.mrb[0].mxu0
  %5894 = vmatprep.mubr.bf16.mxu0 0
  %5895 = vmatmul.mubr.bf16.gmra.mrb[0].mxu0 %v5314
  %v5896 = vpop.f32.mrb[0].mxu0
  %v5897 = vadd.f32 %v5340, %v5896
  %v5898 = vpop.f32.mrb[0].mxu0
  %v5899 = vpop.f32.mrb[0].mxu0
  %v5900 = vadd.f32 %v5340, %v5899
  %v5901 = vpop.f32.mrb[0].mxu0
  %5902 = vmatprep.mubr.bf16.mxu0 0
  %5903 = vmatmul.mubr.bf16.gmra.mrb[0].mxu0 %v5315
  %v5904 = vpop.f32.mrb[0].mxu0
  %v5905 = vadd.f32 %v5340, %v5904
  %v5906 = vpop.f32.mrb[0].mxu0
  %v5907 = vpop.f32.mrb[0].mxu0
  %v5908 = vadd.f32 %v5340, %v5907
  %v5909 = vpop.f32.mrb[0].mxu0
  %5910 = vmatprep.mubr.bf16.mxu0 0
  %5911 = vmatmul.mubr.bf16.gmra.mrb[0].mxu0 %v5316
  %v5912 = vpop.f32.mrb[0].mxu0
  %v5913 = vadd.f32 %v5340, %v5912
  %v5914 = vpop.f32.mrb[0].mxu0
  %v5915 = vpop.f32.mrb[0].mxu0
  %v5916 = vadd.f32 %v5340, %v5915
  %v5917 = vpop.f32.mrb[0].mxu0
  %5918 = vmatprep.mubr.bf16.mxu0 0
  %5919 = vmatmul.mubr.bf16.gmra.mrb[0].mxu0 %v5317
  %v5920 = vpop.f32.mrb[0].mxu0
  %v5921 = vadd.f32 %v5340, %v5920
  %v5922 = vpop.f32.mrb[0].mxu0
  %v5923 = vpop.f32.mrb[0].mxu0
  %v5924 = vadd.f32 %v5340, %v5923
  %v5925 = vpop.f32.mrb[0].mxu0
  %5926 = vmatprep.mubr.bf16.mxu0 0
  %5927 = vmatmul.mubr.bf16.gmra.mrb[0].mxu0 %v5318
  %v5928 = vpop.f32.mrb[0].mxu0
  %v5929 = vadd.f32 %v5340, %v5928
  %v5930 = vpop.f32.mrb[0].mxu0
  %v5931 = vpop.f32.mrb[0].mxu0
  %v5932 = vadd.f32 %v5340, %v5931
  %v5933 = vpop.f32.mrb[0].mxu0
  %5934 = vdwg.mxu0
  %vm5935 = vcmask 31744
  %5936 = vst.msk [vmem:[%s5] sm:$0xff] %vm5935, %v5425
  %5937 = vst.msk [vmem:[%s5 + $0x8] sm:$0xff] %vm5935, %v5428
  %5938 = vst.msk [vmem:[%s5 + $0x10] sm:$0xff] %vm5935, %v5433
  %5939 = vst.msk [vmem:[%s5 + $0x18] sm:$0xff] %vm5935, %v5436
  %5940 = vst.msk [vmem:[%s5 + $0x20] sm:$0xff] %vm5935, %v5441
  %5941 = vst.msk [vmem:[%s5 + $0x28] sm:$0xff] %vm5935, %v5444
  %5942 = vst.msk [vmem:[%s5 + $0x30] sm:$0xff] %vm5935, %v5449
  %5943 = vst.msk [vmem:[%s5 + $0x38] sm:$0xff] %vm5935, %v5452
  %5944 = vst.msk [vmem:[%s5 + $0x40] sm:$0xff] %vm5935, %v5457
  %5945 = vst.msk [vmem:[%s5 + $0x48] sm:$0xff] %vm5935, %v5460
  %5946 = vst.msk [vmem:[%s5 + $0x50] sm:$0xff] %vm5935, %v5465
  %5947 = vst.msk [vmem:[%s5 + $0x58] sm:$0xff] %vm5935, %v5468
  %5948 = vst.msk [vmem:[%s5 + $0x60] sm:$0xff] %vm5935, %v5473
  %5949 = vst.msk [vmem:[%s5 + $0x68] sm:$0xff] %vm5935, %v5476
  %5950 = vst.msk [vmem:[%s5 + $0x70] sm:$0xff] %vm5935, %v5481
  %5951 = vst.msk [vmem:[%s5 + $0x78] sm:$0xff] %vm5935, %v5484
  %5952 = vst.msk [vmem:[%s5 + $0x80] sm:$0xff] %vm5935, %v5489
  %5953 = vst.msk [vmem:[%s5 + $0x88] sm:$0xff] %vm5935, %v5492
  %5954 = vst.msk [vmem:[%s5 + $0x90] sm:$0xff] %vm5935, %v5497
  %5955 = vst.msk [vmem:[%s5 + $0x98] sm:$0xff] %vm5935, %v5500
  %5956 = vst.msk [vmem:[%s5 + $0xa0] sm:$0xff] %vm5935, %v5505
  %5957 = vst.msk [vmem:[%s5 + $0xa8] sm:$0xff] %vm5935, %v5508
  %5958 = vst.msk [vmem:[%s5 + $0xb0] sm:$0xff] %vm5935, %v5513
  %5959 = vst.msk [vmem:[%s5 + $0xb8] sm:$0xff] %vm5935, %v5516
  %5960 = vst.msk [vmem:[%s5 + $0xc0] sm:$0xff] %vm5935, %v5521
  %5961 = vst.msk [vmem:[%s5 + $0xc8] sm:$0xff] %vm5935, %v5524
  %5962 = vst.msk [vmem:[%s5 + $0xd0] sm:$0xff] %vm5935, %v5529
  %5963 = vst.msk [vmem:[%s5 + $0xd8] sm:$0xff] %vm5935, %v5532
  %5964 = vst.msk [vmem:[%s5 + $0xe0] sm:$0xff] %vm5935, %v5537
  %5965 = vst.msk [vmem:[%s5 + $0xe8] sm:$0xff] %vm5935, %v5540
  %5966 = vst.msk [vmem:[%s5 + $0xf0] sm:$0xff] %vm5935, %v5545
  %5967 = vst.msk [vmem:[%s5 + $0xf8] sm:$0xff] %vm5935, %v5548
  %5968 = vst.msk [vmem:[%s5 + $0x100] sm:$0xff] %vm5935, %v5553
  %5969 = vst.msk [vmem:[%s5 + $0x108] sm:$0xff] %vm5935, %v5556
  %5970 = vst.msk [vmem:[%s5 + $0x110] sm:$0xff] %vm5935, %v5561
  %5971 = vst.msk [vmem:[%s5 + $0x118] sm:$0xff] %vm5935, %v5564
  %5972 = vst.msk [vmem:[%s5 + $0x120] sm:$0xff] %vm5935, %v5569
  %5973 = vst.msk [vmem:[%s5 + $0x128] sm:$0xff] %vm5935, %v5572
  %5974 = vst.msk [vmem:[%s5 + $0x130] sm:$0xff] %vm5935, %v5577
  %5975 = vst.msk [vmem:[%s5 + $0x138] sm:$0xff] %vm5935, %v5580
  %5976 = vst.msk [vmem:[%s5 + $0x140] sm:$0xff] %vm5935, %v5585
  %5977 = vst.msk [vmem:[%s5 + $0x148] sm:$0xff] %vm5935, %v5588
  %5978 = vst.msk [vmem:[%s5 + $0x150] sm:$0xff] %vm5935, %v5593
  %5979 = vst.msk [vmem:[%s5 + $0x158] sm:$0xff] %vm5935, %v5596
  %5980 = vst.msk [vmem:[%s5 + $0x160] sm:$0xff] %vm5935, %v5601
  %5981 = vst.msk [vmem:[%s5 + $0x168] sm:$0xff] %vm5935, %v5604
  %5982 = vst.msk [vmem:[%s5 + $0x170] sm:$0xff] %vm5935, %v5609
  %5983 = vst.msk [vmem:[%s5 + $0x178] sm:$0xff] %vm5935, %v5612
  %5984 = vst.msk [vmem:[%s5 + $0x180] sm:$0xff] %vm5935, %v5617
  %5985 = vst.msk [vmem:[%s5 + $0x188] sm:$0xff] %vm5935, %v5620
  %5986 = vst.msk [vmem:[%s5 + $0x190] sm:$0xff] %vm5935, %v5625
  %5987 = vst.msk [vmem:[%s5 + $0x198] sm:$0xff] %vm5935, %v5628
  %5988 = vst.msk [vmem:[%s5 + $0x1a0] sm:$0xff] %vm5935, %v5633
  %5989 = vst.msk [vmem:[%s5 + $0x1a8] sm:$0xff] %vm5935, %v5636
  %5990 = vst.msk [vmem:[%s5 + $0x1b0] sm:$0xff] %vm5935, %v5641
  %5991 = vst.msk [vmem:[%s5 + $0x1b8] sm:$0xff] %vm5935, %v5644
  %5992 = vst.msk [vmem:[%s5 + $0x1c0] sm:$0xff] %vm5935, %v5649
  %5993 = vst.msk [vmem:[%s5 + $0x1c8] sm:$0xff] %vm5935, %v5652
  %5994 = vst.msk [vmem:[%s5 + $0x1d0] sm:$0xff] %vm5935, %v5657
  %5995 = vst.msk [vmem:[%s5 + $0x1d8] sm:$0xff] %vm5935, %v5660
  %5996 = vst.msk [vmem:[%s5 + $0x1e0] sm:$0xff] %vm5935, %v5665
  %5997 = vst.msk [vmem:[%s5 + $0x1e8] sm:$0xff] %vm5935, %v5668
  %5998 = vst.msk [vmem:[%s5 + $0x1f0] sm:$0xff] %vm5935, %v5673
  %5999 = vst.msk [vmem:[%s5 + $0x1f8] sm:$0xff] %vm5935, %v5676
  %6000 = vst.msk [vmem:[%s5 + $0x200] sm:$0xff] %vm5935, %v5681
  %6001 = vst.msk [vmem:[%s5 + $0x208] sm:$0xff] %vm5935, %v5684
  %6002 = vst.msk [vmem:[%s5 + $0x210] sm:$0xff] %vm5935, %v5689
  %6003 = vst.msk [vmem:[%s5 + $0x218] sm:$0xff] %vm5935, %v5692
  %6004 = vst.msk [vmem:[%s5 + $0x220] sm:$0xff] %vm5935, %v5697
  %6005 = vst.msk [vmem:[%s5 + $0x228] sm:$0xff] %vm5935, %v5700
  %6006 = vst.msk [vmem:[%s5 + $0x230] sm:$0xff] %vm5935, %v5705
  %6007 = vst.msk [vmem:[%s5 + $0x238] sm:$0xff] %vm5935, %v5708
  %6008 = vst.msk [vmem:[%s5 + $0x240] sm:$0xff] %vm5935, %v5713
  %6009 = vst.msk [vmem:[%s5 + $0x248] sm:$0xff] %vm5935, %v5716
  %6010 = vst.msk [vmem:[%s5 + $0x250] sm:$0xff] %vm5935, %v5721
  %6011 = vst.msk [vmem:[%s5 + $0x258] sm:$0xff] %vm5935, %v5724
  %6012 = vst.msk [vmem:[%s5 + $0x260] sm:$0xff] %vm5935, %v5729
  %6013 = vst.msk [vmem:[%s5 + $0x268] sm:$0xff] %vm5935, %v5732
  %6014 = vst.msk [vmem:[%s5 + $0x270] sm:$0xff] %vm5935, %v5737
  %6015 = vst.msk [vmem:[%s5 + $0x278] sm:$0xff] %vm5935, %v5740
  %6016 = vst.msk [vmem:[%s5 + $0x280] sm:$0xff] %vm5935, %v5745
  %6017 = vst.msk [vmem:[%s5 + $0x288] sm:$0xff] %vm5935, %v5748
  %6018 = vst.msk [vmem:[%s5 + $0x290] sm:$0xff] %vm5935, %v5753
  %6019 = vst.msk [vmem:[%s5 + $0x298] sm:$0xff] %vm5935, %v5756
  %6020 = vst.msk [vmem:[%s5 + $0x2a0] sm:$0xff] %vm5935, %v5761
  %6021 = vst.msk [vmem:[%s5 + $0x2a8] sm:$0xff] %vm5935, %v5764
  %6022 = vst.msk [vmem:[%s5 + $0x2b0] sm:$0xff] %vm5935, %v5769
  %6023 = vst.msk [vmem:[%s5 + $0x2b8] sm:$0xff] %vm5935, %v5772
  %6024 = vst.msk [vmem:[%s5 + $0x2c0] sm:$0xff] %vm5935, %v5777
  %6025 = vst.msk [vmem:[%s5 + $0x2c8] sm:$0xff] %vm5935, %v5780
  %6026 = vst.msk [vmem:[%s5 + $0x2d0] sm:$0xff] %vm5935, %v5785
  %6027 = vst.msk [vmem:[%s5 + $0x2d8] sm:$0xff] %vm5935, %v5788
  %6028 = vst.msk [vmem:[%s5 + $0x2e0] sm:$0xff] %vm5935, %v5793
  %6029 = vst.msk [vmem:[%s5 + $0x2e8] sm:$0xff] %vm5935, %v5796
  %6030 = vst.msk [vmem:[%s5 + $0x2f0] sm:$0xff] %vm5935, %v5801
  %6031 = vst.msk [vmem:[%s5 + $0x2f8] sm:$0xff] %vm5935, %v5804
  %6032 = vst.msk [vmem:[%s5 + $0x300] sm:$0xff] %vm5935, %v5809
  %6033 = vst.msk [vmem:[%s5 + $0x308] sm:$0xff] %vm5935, %v5812
  %6034 = vst.msk [vmem:[%s5 + $0x310] sm:$0xff] %vm5935, %v5817
  %6035 = vst.msk [vmem:[%s5 + $0x318] sm:$0xff] %vm5935, %v5820
  %6036 = vst.msk [vmem:[%s5 + $0x320] sm:$0xff] %vm5935, %v5825
  %6037 = vst.msk [vmem:[%s5 + $0x328] sm:$0xff] %vm5935, %v5828
  %6038 = vst.msk [vmem:[%s5 + $0x330] sm:$0xff] %vm5935, %v5833
  %6039 = vst.msk [vmem:[%s5 + $0x338] sm:$0xff] %vm5935, %v5836
  %6040 = vst.msk [vmem:[%s5 + $0x340] sm:$0xff] %vm5935, %v5841
  %6041 = vst.msk [vmem:[%s5 + $0x348] sm:$0xff] %vm5935, %v5844
  %6042 = vst.msk [vmem:[%s5 + $0x350] sm:$0xff] %vm5935, %v5849
  %6043 = vst.msk [vmem:[%s5 + $0x358] sm:$0xff] %vm5935, %v5852
  %6044 = vst.msk [vmem:[%s5 + $0x360] sm:$0xff] %vm5935, %v5857
  %6045 = vst.msk [vmem:[%s5 + $0x368] sm:$0xff] %vm5935, %v5860
  %6046 = vst.msk [vmem:[%s5 + $0x370] sm:$0xff] %vm5935, %v5865
  %6047 = vst.msk [vmem:[%s5 + $0x378] sm:$0xff] %vm5935, %v5868
  %6048 = vst.msk [vmem:[%s5 + $0x380] sm:$0xff] %vm5935, %v5873
  %6049 = vst.msk [vmem:[%s5 + $0x388] sm:$0xff] %vm5935, %v5876
  %6050 = vst.msk [vmem:[%s5 + $0x390] sm:$0xff] %vm5935, %v5881
  %6051 = vst.msk [vmem:[%s5 + $0x398] sm:$0xff] %vm5935, %v5884
  %6052 = vst.msk [vmem:[%s5 + $0x3a0] sm:$0xff] %vm5935, %v5889
  %6053 = vst.msk [vmem:[%s5 + $0x3a8] sm:$0xff] %vm5935, %v5892
  %6054 = vst.msk [vmem:[%s5 + $0x3b0] sm:$0xff] %vm5935, %v5897
  %6055 = vst.msk [vmem:[%s5 + $0x3b8] sm:$0xff] %vm5935, %v5900
  %6056 = vst.msk [vmem:[%s5 + $0x3c0] sm:$0xff] %vm5935, %v5905
  %6057 = vst.msk [vmem:[%s5 + $0x3c8] sm:$0xff] %vm5935, %v5908
  %6058 = vst.msk [vmem:[%s5 + $0x3d0] sm:$0xff] %vm5935, %v5913
  %6059 = vst.msk [vmem:[%s5 + $0x3d8] sm:$0xff] %vm5935, %v5916
  %6060 = vst.msk [vmem:[%s5 + $0x3e0] sm:$0xff] %vm5935, %v5921
  %6061 = vst.msk [vmem:[%s5 + $0x3e8] sm:$0xff] %vm5935, %v5924
  %6062 = vst.msk [vmem:[%s5 + $0x3f0] sm:$0xff] %vm5935, %v5929
  %6063 = vst.msk [vmem:[%s5 + $0x3f8] sm:$0xff] %vm5935, %v5932
  // Predicated region
  $region22: #{mlp_no_xyz_forward.1} parent=0 // pred_check
    _
  $region23: #{mlp_no_xyz_forward.1} parent=0 // pred_check_branch
    %6065 = sbr.rel (0) target = $region25
  $region24: #{mlp_no_xyz_forward.1} parent=0 // pred_region
    _
  $region25: #{mlp_no_xyz_forward.1} parent=0 // pred_fallthru
    _
  // Predicated region
  $region26: #{mlp_no_xyz_forward.1} parent=0 // pred_check
    _
  $region27: #{mlp_no_xyz_forward.1} parent=0 // pred_check_branch
    %6067 = sbr.rel (0) target = $region29
  $region28: #{mlp_no_xyz_forward.1} parent=0 // pred_region
    _
  $region29: #{mlp_no_xyz_forward.1} parent=0 // pred_fallthru
    _

</llo_original>
